<compile_context>
chip_gen: v5e
topology: v5e:2x2
jax: 0.10.0
libtpu: 0.0.40
codegen_flags: <defaults>
</compile_context>

<pallas_src>
import math

import jax
import jax.numpy as jnp
from jax import lax
from jax.experimental import pallas as pl
from jax.experimental.pallas import tpu as pltpu


def encoder_forward(ids, emb_table, params, *, n_heads):
    """Full Encoder forward (embedding + all layers) in a single pallas_call."""
    B, S = ids.shape
    V, D = emb_table.shape
    L = params["wq"].shape[0]
    assert D % n_heads == 0
    d_k = D // n_heads
    scale = 1.0 / math.sqrt(d_k)
    eps = 1e-6

    arg_names = ("wq", "bq", "wk", "bk", "wv", "bv", "wo", "bo",
                 "g1", "be1", "w1", "bf1", "w2", "bf2", "g2", "be2")
    layer_args = [params[n] for n in arg_names]

    def kernel(ids_ref, emb_ref,
               wq_ref, bq_ref, wk_ref, bk_ref, wv_ref, bv_ref, wo_ref, bo_ref,
               g1_ref, be1_ref, w1_ref, bf1_ref, w2_ref, bf2_ref, g2_ref, be2_ref,
               o_ref):
        # ---- sinusoidal positional encoding for positions 0..S-1 (computed once) ----
        pos = lax.broadcasted_iota(jnp.int32, (S, D), 0).astype(jnp.float32)
        dim = lax.broadcasted_iota(jnp.int32, (S, D), 1)
        two_i = (dim - (dim % 2)).astype(jnp.float32)
        inv_freq = jnp.exp(-(two_i / jnp.float32(D)) * jnp.log(jnp.float32(10000.0)))
        angle = pos * inv_freq
        pe = jnp.where((dim % 2) == 0, jnp.sin(angle), jnp.cos(angle))  # (S, D) f32

        def layer_norm(x, gamma, beta):
            mean = jnp.mean(x, axis=-1, keepdims=True)
            var = jnp.mean((x - mean) ** 2, axis=-1, keepdims=True)
            return gamma * ((x - mean) / jnp.sqrt(var + eps)) + beta

        def mha(x, l):
            q = jnp.dot(x, wq_ref[l], preferred_element_type=jnp.float32) + bq_ref[l]
            k = jnp.dot(x, wk_ref[l], preferred_element_type=jnp.float32) + bk_ref[l]
            v = jnp.dot(x, wv_ref[l], preferred_element_type=jnp.float32) + bv_ref[l]
            heads = []
            for h in range(n_heads):            # static unroll: n_heads is small
                sl = slice(h * d_k, (h + 1) * d_k)
                qh, kh, vh = q[:, sl], k[:, sl], v[:, sl]
                s_ = jnp.einsum("qd,kd->qk", qh, kh,
                                preferred_element_type=jnp.float32) * scale
                # TODO(synk): mask path (masked_fill(mask == 0, 1e-9)) not implemented;
                #             the example forward uses mask=None.
                s_ = s_ - jnp.max(s_, axis=-1, keepdims=True)
                p = jnp.exp(s_)
                p = p / jnp.sum(p, axis=-1, keepdims=True)
                heads.append(jnp.dot(p, vh, preferred_element_type=jnp.float32))
            a = jnp.concatenate(heads, axis=-1)                       # (S, D)
            return jnp.dot(a, wo_ref[l], preferred_element_type=jnp.float32) + bo_ref[l]

        def ffn(x, l):
            h = jnp.dot(x, w1_ref[l], preferred_element_type=jnp.float32) + bf1_ref[l]
            h = jnp.maximum(h, 0.0)
            return jnp.dot(h, w2_ref[l], preferred_element_type=jnp.float32) + bf2_ref[l]

        # TODO(synk): all Dropout layers are identity here (eval-mode semantics).
        for b in range(B):                      # static unroll: B is small
            # fused token-embedding gather: ids live in SMEM (scalar reads), the
            # embedding table in VMEM; dynamic row loads via pl.ds.
            rows = [emb_ref[pl.ds(ids_ref[b, s], 1), :] for s in range(S)]
            x = jnp.concatenate(rows, axis=0) + pe                    # (S, D)

            for l in range(L):                  # static unroll over layers
                attn = mha(x, l)
                x = layer_norm(x + attn + x, g1_ref[l], be1_ref[l])   # norm1(2x + attn)
                x = layer_norm(x + ffn(x, l) + x, g2_ref[l], be2_ref[l])

            o_ref[b * S:(b + 1) * S, :] = x

    out2d = pl.pallas_call(
        kernel,
        out_shape=jax.ShapeDtypeStruct((B * S, D), jnp.float32),
        in_specs=(
            [pl.BlockSpec(memory_space=pltpu.MemorySpace.SMEM)]        # token ids
            + [pl.BlockSpec(memory_space=pltpu.MemorySpace.VMEM)]      # embedding table
            + [pl.BlockSpec(memory_space=pltpu.MemorySpace.VMEM)] * len(layer_args)
        ),
        out_specs=pl.BlockSpec(memory_space=pltpu.MemorySpace.VMEM),
    )(ids, emb_table, *layer_args)

    return out2d.reshape(B, S, D)


def init_params(key, vocab_size, d_model, d_ff, n_layers):
    ks = iter(jax.random.split(key, 16))

    def nrm(shape, scale=0.1):
        return jax.random.normal(next(ks), shape, dtype=jnp.float32) * scale

    emb = jax.random.normal(next(ks), (vocab_size, d_model), dtype=jnp.float32)
    emb = emb.at[1].set(0.0)    # TokenEmbedding: nn.Embedding(padding_idx=1) zero row
    L, D, F = n_layers, d_model, d_ff
    params = dict(
        wq=nrm((L, D, D)), bq=nrm((L, 1, D)),
        wk=nrm((L, D, D)), bk=nrm((L, 1, D)),
        wv=nrm((L, D, D)), bv=nrm((L, 1, D)),
        wo=nrm((L, D, D)), bo=nrm((L, 1, D)),
        g1=jnp.ones((L, 1, D), jnp.float32), be1=jnp.zeros((L, 1, D), jnp.float32),
        w1=nrm((L, D, F)), bf1=nrm((L, 1, F)),
        w2=nrm((L, F, D)), bf2=nrm((L, 1, D)),
        g2=jnp.ones((L, 1, D), jnp.float32), be2=jnp.zeros((L, 1, D), jnp.float32),
    )
    return emb, params


def reference_encoder(ids, emb_table, params, *, n_heads):
    """Pure-JAX reference of the intended Encoder forward (eval mode, mask=None)."""
    B, S = ids.shape
    V, D = emb_table.shape
    L = params["wq"].shape[0]
    d_k = D // n_heads
    scale = 1.0 / math.sqrt(d_k)
    eps = 1e-6

    tok = emb_table[ids]                                              # (B, S, D)
    pos = jnp.arange(S, dtype=jnp.float32)[:, None]
    dim = jnp.arange(D)
    two_i = (dim - (dim % 2)).astype(jnp.float32)
    inv_freq = jnp.exp(-(two_i / jnp.float32(D)) * jnp.log(jnp.float32(10000.0)))
    pe = jnp.where((dim % 2) == 0, jnp.sin(pos * inv_freq), jnp.cos(pos * inv_freq))
    x = tok + pe[None]

    def ln(y, g, b):
        m = jnp.mean(y, axis=-1, keepdims=True)
        v = jnp.mean((y - m) ** 2, axis=-1, keepdims=True)
        return g * ((y - m) / jnp.sqrt(v + eps)) + b

    for l in range(L):
        q = x @ params["wq"][l] + params["bq"][l]
        k = x @ params["wk"][l] + params["bk"][l]
        v = x @ params["wv"][l] + params["bv"][l]
        q = q.reshape(B, S, n_heads, d_k).transpose(0, 2, 1, 3)
        k = k.reshape(B, S, n_heads, d_k).transpose(0, 2, 1, 3)
        v = v.reshape(B, S, n_heads, d_k).transpose(0, 2, 1, 3)
        s_ = jnp.einsum("bhqd,bhkd->bhqk", q, k) * scale
        p = jax.nn.softmax(s_, axis=-1)
        a = jnp.einsum("bhqk,bhkd->bhqd", p, v).transpose(0, 2, 1, 3).reshape(B, S, D)
        attn = a @ params["wo"][l] + params["bo"][l]
        x = ln(x + attn + x, params["g1"][l], params["be1"][l])
        ff = jnp.maximum(x @ params["w1"][l] + params["bf1"][l], 0.0)
        ff = ff @ params["w2"][l] + params["bf2"][l]
        x = ln(x + ff + x, params["g2"][l], params["be2"][l])
    return x


if __name__ == "__main__":
    B, S = 2, 8                      # batch, sequence length (seq <= maxlen = 16)
    D_MODEL, N_HEADS, D_FF = 32, 4, 64
    N_LAYERS, VOCAB = 2, 64

    key = jax.random.PRNGKey(0)
    k_ids, k_par = jax.random.split(key)
    ids = jax.random.randint(k_ids, (B, S), 0, VOCAB, dtype=jnp.int32)

    emb_table, params = init_params(k_par, VOCAB, D_MODEL, D_FF, N_LAYERS)

    out = encoder_forward(ids, emb_table, params, n_heads=N_HEADS)
    out = jax.block_until_ready(out)

    ref = reference_encoder(ids, emb_table, params, n_heads=N_HEADS)
    assert out.shape == (B, S, D_MODEL)
    max_err = float(jnp.max(jnp.abs(out - ref)))
    assert jnp.allclose(out, ref, atol=1e-3, rtol=1e-3), (
        f"mismatch vs reference (max abs err {max_err})")

    print("KERNEL_OK")
</pallas_src>

<mosaic_0001>
module attributes {stable_mosaic.version = 11 : i64} {
  func.func @kernel(%arg0: memref<2x8xi32, #tpu.memory_space<smem>>, %arg1: memref<64x32xf32, #tpu.memory_space<vmem>>, %arg2: memref<2x32x32xf32, #tpu.memory_space<vmem>>, %arg3: memref<2x1x32xf32, #tpu.memory_space<vmem>>, %arg4: memref<2x32x32xf32, #tpu.memory_space<vmem>>, %arg5: memref<2x1x32xf32, #tpu.memory_space<vmem>>, %arg6: memref<2x32x32xf32, #tpu.memory_space<vmem>>, %arg7: memref<2x1x32xf32, #tpu.memory_space<vmem>>, %arg8: memref<2x32x32xf32, #tpu.memory_space<vmem>>, %arg9: memref<2x1x32xf32, #tpu.memory_space<vmem>>, %arg10: memref<2x1x32xf32, #tpu.memory_space<vmem>>, %arg11: memref<2x1x32xf32, #tpu.memory_space<vmem>>, %arg12: memref<2x32x64xf32, #tpu.memory_space<vmem>>, %arg13: memref<2x1x64xf32, #tpu.memory_space<vmem>>, %arg14: memref<2x64x32xf32, #tpu.memory_space<vmem>>, %arg15: memref<2x1x32xf32, #tpu.memory_space<vmem>>, %arg16: memref<2x1x32xf32, #tpu.memory_space<vmem>>, %arg17: memref<2x1x32xf32, #tpu.memory_space<vmem>>, %arg18: memref<16x32xf32, #tpu.memory_space<vmem>>) attributes {dimension_semantics = [], scalar_prefetch = 0 : i64, scratch_operands = 0 : i64, tpu.core_type = #tpu.core_type<tc>} {
    %0 = tpu.iota {dimensions = array<i32: 0>} : vector<8x32xi32>
    %1 = arith.sitofp %0 : vector<8x32xi32> to vector<8x32xf32>
    %2 = tpu.iota {dimensions = array<i32: 1>} : vector<8x32xi32>
    %c2_i32 = arith.constant 2 : i32
    %c0_i32 = arith.constant 0 : i32
    %3 = arith.cmpi eq, %c2_i32, %c0_i32 : i32
    %c1_i32 = arith.constant 1 : i32
    %4 = arith.select %3, %c1_i32, %c2_i32 : i32
    %5 = vector.broadcast %4 : i32 to vector<8x32xi32>
    %6 = arith.remsi %2, %5 : vector<8x32xi32>
    %c0_i32_0 = arith.constant 0 : i32
    %7 = vector.broadcast %c0_i32_0 : i32 to vector<8x32xi32>
    %8 = arith.cmpi ne, %6, %7 : vector<8x32xi32>
    %c0_i32_1 = arith.constant 0 : i32
    %9 = vector.broadcast %c0_i32_1 : i32 to vector<8x32xi32>
    %10 = arith.cmpi slt, %6, %9 : vector<8x32xi32>
    %c0_i32_2 = arith.constant 0 : i32
    %11 = arith.cmpi slt, %4, %c0_i32_2 : i32
    %12 = vector.broadcast %11 : i1 to vector<8x32xi1>
    %13 = vector.broadcast %12 : vector<8x32xi1> to vector<8x32xi1>
    %14 = arith.xori %10, %13 : vector<8x32xi1>
    %15 = arith.andi %14, %8 : vector<8x32xi1>
    %16 = vector.broadcast %4 : i32 to vector<8x32xi32>
    %17 = arith.addi %6, %16 : vector<8x32xi32>
    %18 = arith.select %15, %17, %6 : vector<8x32xi1>, vector<8x32xi32>
    %19 = arith.subi %2, %18 : vector<8x32xi32>
    %20 = arith.sitofp %19 : vector<8x32xi32> to vector<8x32xf32>
    %cst = arith.constant 3.200000e+01 : f32
    %21 = vector.broadcast %cst : f32 to vector<8x32xf32>
    %22 = arith.divf %20, %21 : vector<8x32xf32>
    %cst_3 = arith.constant 0.000000e+00 : f32
    %23 = vector.broadcast %cst_3 : f32 to vector<8x32xf32>
    %24 = arith.subf %23, %22 : vector<8x32xf32>
    %cst_4 = arith.constant 1.000000e+04 : f32
    %25 = math.log %cst_4 : f32
    %26 = vector.broadcast %25 : f32 to vector<8x32xf32>
    %27 = arith.mulf %24, %26 : vector<8x32xf32>
    %28 = math.exp %27 : vector<8x32xf32>
    %29 = arith.mulf %1, %28 : vector<8x32xf32>
    %c2_i32_5 = arith.constant 2 : i32
    %c0_i32_6 = arith.constant 0 : i32
    %30 = arith.cmpi eq, %c2_i32_5, %c0_i32_6 : i32
    %c1_i32_7 = arith.constant 1 : i32
    %31 = arith.select %30, %c1_i32_7, %c2_i32_5 : i32
    %32 = vector.broadcast %31 : i32 to vector<8x32xi32>
    %33 = arith.remsi %2, %32 : vector<8x32xi32>
    %c0_i32_8 = arith.constant 0 : i32
    %34 = vector.broadcast %c0_i32_8 : i32 to vector<8x32xi32>
    %35 = arith.cmpi ne, %33, %34 : vector<8x32xi32>
    %c0_i32_9 = arith.constant 0 : i32
    %36 = vector.broadcast %c0_i32_9 : i32 to vector<8x32xi32>
    %37 = arith.cmpi slt, %33, %36 : vector<8x32xi32>
    %c0_i32_10 = arith.constant 0 : i32
    %38 = arith.cmpi slt, %31, %c0_i32_10 : i32
    %39 = vector.broadcast %38 : i1 to vector<8x32xi1>
    %40 = vector.broadcast %39 : vector<8x32xi1> to vector<8x32xi1>
    %41 = arith.xori %37, %40 : vector<8x32xi1>
    %42 = arith.andi %41, %35 : vector<8x32xi1>
    %43 = vector.broadcast %31 : i32 to vector<8x32xi32>
    %44 = arith.addi %33, %43 : vector<8x32xi32>
    %45 = arith.select %42, %44, %33 : vector<8x32xi1>, vector<8x32xi32>
    %c0_i32_11 = arith.constant 0 : i32
    %46 = vector.broadcast %c0_i32_11 : i32 to vector<8x32xi32>
    %47 = arith.cmpi eq, %45, %46 : vector<8x32xi32>
    %48 = math.sin %29 : vector<8x32xf32>
    %49 = math.cos %29 : vector<8x32xf32>
    %50 = arith.select %47, %48, %49 : vector<8x32xi1>, vector<8x32xf32>
    %c0 = arith.constant 0 : index
    %c0_12 = arith.constant 0 : index
    %51 = memref.load %arg0[%c0, %c0_12] : memref<2x8xi32, #tpu.memory_space<smem>>
    %52 = arith.index_cast %51 : i32 to index
    %c0_13 = arith.constant 0 : index
    %53 = vector.load %arg1[%52, %c0_13] : memref<64x32xf32, #tpu.memory_space<vmem>>, vector<1x32xf32>
    %c0_14 = arith.constant 0 : index
    %c1 = arith.constant 1 : index
    %54 = memref.load %arg0[%c0_14, %c1] : memref<2x8xi32, #tpu.memory_space<smem>>
    %55 = arith.index_cast %54 : i32 to index
    %c0_15 = arith.constant 0 : index
    %56 = vector.load %arg1[%55, %c0_15] : memref<64x32xf32, #tpu.memory_space<vmem>>, vector<1x32xf32>
    %c0_16 = arith.constant 0 : index
    %c2 = arith.constant 2 : index
    %57 = memref.load %arg0[%c0_16, %c2] : memref<2x8xi32, #tpu.memory_space<smem>>
    %58 = arith.index_cast %57 : i32 to index
    %c0_17 = arith.constant 0 : index
    %59 = vector.load %arg1[%58, %c0_17] : memref<64x32xf32, #tpu.memory_space<vmem>>, vector<1x32xf32>
    %c0_18 = arith.constant 0 : index
    %c3 = arith.constant 3 : index
    %60 = memref.load %arg0[%c0_18, %c3] : memref<2x8xi32, #tpu.memory_space<smem>>
    %61 = arith.index_cast %60 : i32 to index
    %c0_19 = arith.constant 0 : index
    %62 = vector.load %arg1[%61, %c0_19] : memref<64x32xf32, #tpu.memory_space<vmem>>, vector<1x32xf32>
    %c0_20 = arith.constant 0 : index
    %c4 = arith.constant 4 : index
    %63 = memref.load %arg0[%c0_20, %c4] : memref<2x8xi32, #tpu.memory_space<smem>>
    %64 = arith.index_cast %63 : i32 to index
    %c0_21 = arith.constant 0 : index
    %65 = vector.load %arg1[%64, %c0_21] : memref<64x32xf32, #tpu.memory_space<vmem>>, vector<1x32xf32>
    %c0_22 = arith.constant 0 : index
    %c5 = arith.constant 5 : index
    %66 = memref.load %arg0[%c0_22, %c5] : memref<2x8xi32, #tpu.memory_space<smem>>
    %67 = arith.index_cast %66 : i32 to index
    %c0_23 = arith.constant 0 : index
    %68 = vector.load %arg1[%67, %c0_23] : memref<64x32xf32, #tpu.memory_space<vmem>>, vector<1x32xf32>
    %c0_24 = arith.constant 0 : index
    %c6 = arith.constant 6 : index
    %69 = memref.load %arg0[%c0_24, %c6] : memref<2x8xi32, #tpu.memory_space<smem>>
    %70 = arith.index_cast %69 : i32 to index
    %c0_25 = arith.constant 0 : index
    %71 = vector.load %arg1[%70, %c0_25] : memref<64x32xf32, #tpu.memory_space<vmem>>, vector<1x32xf32>
    %c0_26 = arith.constant 0 : index
    %c7 = arith.constant 7 : index
    %72 = memref.load %arg0[%c0_26, %c7] : memref<2x8xi32, #tpu.memory_space<smem>>
    %73 = arith.index_cast %72 : i32 to index
    %c0_27 = arith.constant 0 : index
    %74 = vector.load %arg1[%73, %c0_27] : memref<64x32xf32, #tpu.memory_space<vmem>>, vector<1x32xf32>
    %75 = tpu.concatenate %53, %56, %59, %62, %65, %68, %71, %74 in 0 : vector<1x32xf32>, vector<1x32xf32>, vector<1x32xf32>, vector<1x32xf32>, vector<1x32xf32>, vector<1x32xf32>, vector<1x32xf32>, vector<1x32xf32> -> vector<8x32xf32>
    %76 = arith.addf %75, %50 : vector<8x32xf32>
    %c0_28 = arith.constant 0 : index
    %c0_29 = arith.constant 0 : index
    %c0_30 = arith.constant 0 : index
    %77 = vector.load %arg2[%c0_28, %c0_29, %c0_30] : memref<2x32x32xf32, #tpu.memory_space<vmem>>, vector<1x32x32xf32>
    %78 = vector.shape_cast %77 : vector<1x32x32xf32> to vector<32x32xf32>
    %cst_31 = arith.constant dense<0.000000e+00> : vector<8x32xf32>
    %79 = tpu.matmul %76, %78, %cst_31 {dimension_numbers = #tpu.dot_dimension_numbers<[1], [0], [0], [1], [0, 0, 1, 1], [], []>} : vector<8x32xf32>, vector<32x32xf32>, vector<8x32xf32> -> vector<8x32xf32>
    %c0_32 = arith.constant 0 : index
    %c0_33 = arith.constant 0 : index
    %c0_34 = arith.constant 0 : index
    %80 = vector.load %arg3[%c0_32, %c0_33, %c0_34] : memref<2x1x32xf32, #tpu.memory_space<vmem>>, vector<1x1x32xf32>
    %81 = vector.shape_cast %80 : vector<1x1x32xf32> to vector<1x32xf32>
    %82 = vector.broadcast %81 : vector<1x32xf32> to vector<8x32xf32>
    %83 = arith.addf %79, %82 : vector<8x32xf32>
    %c0_35 = arith.constant 0 : index
    %c0_36 = arith.constant 0 : index
    %c0_37 = arith.constant 0 : index
    %84 = vector.load %arg4[%c0_35, %c0_36, %c0_37] : memref<2x32x32xf32, #tpu.memory_space<vmem>>, vector<1x32x32xf32>
    %85 = vector.shape_cast %84 : vector<1x32x32xf32> to vector<32x32xf32>
    %cst_38 = arith.constant dense<0.000000e+00> : vector<8x32xf32>
    %86 = tpu.matmul %76, %85, %cst_38 {dimension_numbers = #tpu.dot_dimension_numbers<[1], [0], [0], [1], [0, 0, 1, 1], [], []>} : vector<8x32xf32>, vector<32x32xf32>, vector<8x32xf32> -> vector<8x32xf32>
    %c0_39 = arith.constant 0 : index
    %c0_40 = arith.constant 0 : index
    %c0_41 = arith.constant 0 : index
    %87 = vector.load %arg5[%c0_39, %c0_40, %c0_41] : memref<2x1x32xf32, #tpu.memory_space<vmem>>, vector<1x1x32xf32>
    %88 = vector.shape_cast %87 : vector<1x1x32xf32> to vector<1x32xf32>
    %89 = vector.broadcast %88 : vector<1x32xf32> to vector<8x32xf32>
    %90 = arith.addf %86, %89 : vector<8x32xf32>
    %c0_42 = arith.constant 0 : index
    %c0_43 = arith.constant 0 : index
    %c0_44 = arith.constant 0 : index
    %91 = vector.load %arg6[%c0_42, %c0_43, %c0_44] : memref<2x32x32xf32, #tpu.memory_space<vmem>>, vector<1x32x32xf32>
    %92 = vector.shape_cast %91 : vector<1x32x32xf32> to vector<32x32xf32>
    %cst_45 = arith.constant dense<0.000000e+00> : vector<8x32xf32>
    %93 = tpu.matmul %76, %92, %cst_45 {dimension_numbers = #tpu.dot_dimension_numbers<[1], [0], [0], [1], [0, 0, 1, 1], [], []>} : vector<8x32xf32>, vector<32x32xf32>, vector<8x32xf32> -> vector<8x32xf32>
    %c0_46 = arith.constant 0 : index
    %c0_47 = arith.constant 0 : index
    %c0_48 = arith.constant 0 : index
    %94 = vector.load %arg7[%c0_46, %c0_47, %c0_48] : memref<2x1x32xf32, #tpu.memory_space<vmem>>, vector<1x1x32xf32>
    %95 = vector.shape_cast %94 : vector<1x1x32xf32> to vector<1x32xf32>
    %96 = vector.broadcast %95 : vector<1x32xf32> to vector<8x32xf32>
    %97 = arith.addf %93, %96 : vector<8x32xf32>
    %98 = vector.extract_strided_slice %83 {offsets = [0, 0], sizes = [8, 8], strides = [1, 1]} : vector<8x32xf32> to vector<8x8xf32>
    %99 = vector.extract_strided_slice %90 {offsets = [0, 0], sizes = [8, 8], strides = [1, 1]} : vector<8x32xf32> to vector<8x8xf32>
    %100 = vector.extract_strided_slice %97 {offsets = [0, 0], sizes = [8, 8], strides = [1, 1]} : vector<8x32xf32> to vector<8x8xf32>
    "tpu.trace_start"() <{level = 10 : i32, message = "qd,kd->qk"}> : () -> ()
    %cst_49 = arith.constant dense<0.000000e+00> : vector<8x8xf32>
    %101 = tpu.matmul %98, %99, %cst_49 {dimension_numbers = #tpu.dot_dimension_numbers<[1], [1], [0], [0], [0, 0, 1, 0], [], []>} : vector<8x8xf32>, vector<8x8xf32>, vector<8x8xf32> -> vector<8x8xf32>
    "tpu.trace_stop"() : () -> ()
    %cst_50 = arith.constant 0.353553385 : f32
    %102 = vector.broadcast %cst_50 : f32 to vector<8x8xf32>
    %103 = arith.mulf %101, %102 : vector<8x8xf32>
    %cst_51 = arith.constant dense<0xFF800000> : vector<8xf32>
    %104 = vector.multi_reduction <maximumf>, %103, %cst_51 [1] : vector<8x8xf32> to vector<8xf32>
    %105 = vector.shape_cast %104 : vector<8xf32> to vector<8x1xf32>
    %106 = vector.broadcast %105 : vector<8x1xf32> to vector<8x8xf32>
    %107 = arith.subf %103, %106 : vector<8x8xf32>
    %108 = math.exp %107 : vector<8x8xf32>
    %cst_52 = arith.constant dense<0.000000e+00> : vector<8xf32>
    %109 = vector.multi_reduction <add>, %108, %cst_52 [1] : vector<8x8xf32> to vector<8xf32>
    %110 = vector.shape_cast %109 : vector<8xf32> to vector<8x1xf32>
    %111 = vector.broadcast %110 : vector<8x1xf32> to vector<8x8xf32>
    %112 = arith.divf %108, %111 : vector<8x8xf32>
    %cst_53 = arith.constant dense<0.000000e+00> : vector<8x8xf32>
    %113 = tpu.matmul %112, %100, %cst_53 {dimension_numbers = #tpu.dot_dimension_numbers<[1], [0], [0], [1], [0, 0, 1, 1], [], []>} : vector<8x8xf32>, vector<8x8xf32>, vector<8x8xf32> -> vector<8x8xf32>
    %114 = vector.extract_strided_slice %83 {offsets = [0, 8], sizes = [8, 8], strides = [1, 1]} : vector<8x32xf32> to vector<8x8xf32>
    %115 = vector.extract_strided_slice %90 {offsets = [0, 8], sizes = [8, 8], strides = [1, 1]} : vector<8x32xf32> to vector<8x8xf32>
    %116 = vector.extract_strided_slice %97 {offsets = [0, 8], sizes = [8, 8], strides = [1, 1]} : vector<8x32xf32> to vector<8x8xf32>
    "tpu.trace_start"() <{level = 10 : i32, message = "qd,kd->qk"}> : () -> ()
    %cst_54 = arith.constant dense<0.000000e+00> : vector<8x8xf32>
    %117 = tpu.matmul %114, %115, %cst_54 {dimension_numbers = #tpu.dot_dimension_numbers<[1], [1], [0], [0], [0, 0, 1, 0], [], []>} : vector<8x8xf32>, vector<8x8xf32>, vector<8x8xf32> -> vector<8x8xf32>
    "tpu.trace_stop"() : () -> ()
    %cst_55 = arith.constant 0.353553385 : f32
    %118 = vector.broadcast %cst_55 : f32 to vector<8x8xf32>
    %119 = arith.mulf %117, %118 : vector<8x8xf32>
    %cst_56 = arith.constant dense<0xFF800000> : vector<8xf32>
    %120 = vector.multi_reduction <maximumf>, %119, %cst_56 [1] : vector<8x8xf32> to vector<8xf32>
    %121 = vector.shape_cast %120 : vector<8xf32> to vector<8x1xf32>
    %122 = vector.broadcast %121 : vector<8x1xf32> to vector<8x8xf32>
    %123 = arith.subf %119, %122 : vector<8x8xf32>
    %124 = math.exp %123 : vector<8x8xf32>
    %cst_57 = arith.constant dense<0.000000e+00> : vector<8xf32>
    %125 = vector.multi_reduction <add>, %124, %cst_57 [1] : vector<8x8xf32> to vector<8xf32>
    %126 = vector.shape_cast %125 : vector<8xf32> to vector<8x1xf32>
    %127 = vector.broadcast %126 : vector<8x1xf32> to vector<8x8xf32>
    %128 = arith.divf %124, %127 : vector<8x8xf32>
    %cst_58 = arith.constant dense<0.000000e+00> : vector<8x8xf32>
    %129 = tpu.matmul %128, %116, %cst_58 {dimension_numbers = #tpu.dot_dimension_numbers<[1], [0], [0], [1], [0, 0, 1, 1], [], []>} : vector<8x8xf32>, vector<8x8xf32>, vector<8x8xf32> -> vector<8x8xf32>
    %130 = vector.extract_strided_slice %83 {offsets = [0, 16], sizes = [8, 8], strides = [1, 1]} : vector<8x32xf32> to vector<8x8xf32>
    %131 = vector.extract_strided_slice %90 {offsets = [0, 16], sizes = [8, 8], strides = [1, 1]} : vector<8x32xf32> to vector<8x8xf32>
    %132 = vector.extract_strided_slice %97 {offsets = [0, 16], sizes = [8, 8], strides = [1, 1]} : vector<8x32xf32> to vector<8x8xf32>
    "tpu.trace_start"() <{level = 10 : i32, message = "qd,kd->qk"}> : () -> ()
    %cst_59 = arith.constant dense<0.000000e+00> : vector<8x8xf32>
    %133 = tpu.matmul %130, %131, %cst_59 {dimension_numbers = #tpu.dot_dimension_numbers<[1], [1], [0], [0], [0, 0, 1, 0], [], []>} : vector<8x8xf32>, vector<8x8xf32>, vector<8x8xf32> -> vector<8x8xf32>
    "tpu.trace_stop"() : () -> ()
    %cst_60 = arith.constant 0.353553385 : f32
    %134 = vector.broadcast %cst_60 : f32 to vector<8x8xf32>
    %135 = arith.mulf %133, %134 : vector<8x8xf32>
    %cst_61 = arith.constant dense<0xFF800000> : vector<8xf32>
    %136 = vector.multi_reduction <maximumf>, %135, %cst_61 [1] : vector<8x8xf32> to vector<8xf32>
    %137 = vector.shape_cast %136 : vector<8xf32> to vector<8x1xf32>
    %138 = vector.broadcast %137 : vector<8x1xf32> to vector<8x8xf32>
    %139 = arith.subf %135, %138 : vector<8x8xf32>
    %140 = math.exp %139 : vector<8x8xf32>
    %cst_62 = arith.constant dense<0.000000e+00> : vector<8xf32>
    %141 = vector.multi_reduction <add>, %140, %cst_62 [1] : vector<8x8xf32> to vector<8xf32>
    %142 = vector.shape_cast %141 : vector<8xf32> to vector<8x1xf32>
    %143 = vector.broadcast %142 : vector<8x1xf32> to vector<8x8xf32>
    %144 = arith.divf %140, %143 : vector<8x8xf32>
    %cst_63 = arith.constant dense<0.000000e+00> : vector<8x8xf32>
    %145 = tpu.matmul %144, %132, %cst_63 {dimension_numbers = #tpu.dot_dimension_numbers<[1], [0], [0], [1], [0, 0, 1, 1], [], []>} : vector<8x8xf32>, vector<8x8xf32>, vector<8x8xf32> -> vector<8x8xf32>
    %146 = vector.extract_strided_slice %83 {offsets = [0, 24], sizes = [8, 8], strides = [1, 1]} : vector<8x32xf32> to vector<8x8xf32>
    %147 = vector.extract_strided_slice %90 {offsets = [0, 24], sizes = [8, 8], strides = [1, 1]} : vector<8x32xf32> to vector<8x8xf32>
    %148 = vector.extract_strided_slice %97 {offsets = [0, 24], sizes = [8, 8], strides = [1, 1]} : vector<8x32xf32> to vector<8x8xf32>
    "tpu.trace_start"() <{level = 10 : i32, message = "qd,kd->qk"}> : () -> ()
    %cst_64 = arith.constant dense<0.000000e+00> : vector<8x8xf32>
    %149 = tpu.matmul %146, %147, %cst_64 {dimension_numbers = #tpu.dot_dimension_numbers<[1], [1], [0], [0], [0, 0, 1, 0], [], []>} : vector<8x8xf32>, vector<8x8xf32>, vector<8x8xf32> -> vector<8x8xf32>
    "tpu.trace_stop"() : () -> ()
    %cst_65 = arith.constant 0.353553385 : f32
    %150 = vector.broadcast %cst_65 : f32 to vector<8x8xf32>
    %151 = arith.mulf %149, %150 : vector<8x8xf32>
    %cst_66 = arith.constant dense<0xFF800000> : vector<8xf32>
    %152 = vector.multi_reduction <maximumf>, %151, %cst_66 [1] : vector<8x8xf32> to vector<8xf32>
    %153 = vector.shape_cast %152 : vector<8xf32> to vector<8x1xf32>
    %154 = vector.broadcast %153 : vector<8x1xf32> to vector<8x8xf32>
    %155 = arith.subf %151, %154 : vector<8x8xf32>
    %156 = math.exp %155 : vector<8x8xf32>
    %cst_67 = arith.constant dense<0.000000e+00> : vector<8xf32>
    %157 = vector.multi_reduction <add>, %156, %cst_67 [1] : vector<8x8xf32> to vector<8xf32>
    %158 = vector.shape_cast %157 : vector<8xf32> to vector<8x1xf32>
    %159 = vector.broadcast %158 : vector<8x1xf32> to vector<8x8xf32>
    %160 = arith.divf %156, %159 : vector<8x8xf32>
    %cst_68 = arith.constant dense<0.000000e+00> : vector<8x8xf32>
    %161 = tpu.matmul %160, %148, %cst_68 {dimension_numbers = #tpu.dot_dimension_numbers<[1], [0], [0], [1], [0, 0, 1, 1], [], []>} : vector<8x8xf32>, vector<8x8xf32>, vector<8x8xf32> -> vector<8x8xf32>
    %162 = tpu.concatenate %113, %129, %145, %161 in 1 : vector<8x8xf32>, vector<8x8xf32>, vector<8x8xf32>, vector<8x8xf32> -> vector<8x32xf32>
    %c0_69 = arith.constant 0 : index
    %c0_70 = arith.constant 0 : index
    %c0_71 = arith.constant 0 : index
    %163 = vector.load %arg8[%c0_69, %c0_70, %c0_71] : memref<2x32x32xf32, #tpu.memory_space<vmem>>, vector<1x32x32xf32>
    %164 = vector.shape_cast %163 : vector<1x32x32xf32> to vector<32x32xf32>
    %cst_72 = arith.constant dense<0.000000e+00> : vector<8x32xf32>
    %165 = tpu.matmul %162, %164, %cst_72 {dimension_numbers = #tpu.dot_dimension_numbers<[1], [0], [0], [1], [0, 0, 1, 1], [], []>} : vector<8x32xf32>, vector<32x32xf32>, vector<8x32xf32> -> vector<8x32xf32>
    %c0_73 = arith.constant 0 : index
    %c0_74 = arith.constant 0 : index
    %c0_75 = arith.constant 0 : index
    %166 = vector.load %arg9[%c0_73, %c0_74, %c0_75] : memref<2x1x32xf32, #tpu.memory_space<vmem>>, vector<1x1x32xf32>
    %167 = vector.shape_cast %166 : vector<1x1x32xf32> to vector<1x32xf32>
    %168 = vector.broadcast %167 : vector<1x32xf32> to vector<8x32xf32>
    %169 = arith.addf %165, %168 : vector<8x32xf32>
    %170 = arith.addf %76, %169 : vector<8x32xf32>
    %171 = arith.addf %170, %76 : vector<8x32xf32>
    %c0_76 = arith.constant 0 : index
    %c0_77 = arith.constant 0 : index
    %c0_78 = arith.constant 0 : index
    %172 = vector.load %arg10[%c0_76, %c0_77, %c0_78] : memref<2x1x32xf32, #tpu.memory_space<vmem>>, vector<1x1x32xf32>
    %173 = vector.shape_cast %172 : vector<1x1x32xf32> to vector<1x32xf32>
    %c0_79 = arith.constant 0 : index
    %c0_80 = arith.constant 0 : index
    %c0_81 = arith.constant 0 : index
    %174 = vector.load %arg11[%c0_79, %c0_80, %c0_81] : memref<2x1x32xf32, #tpu.memory_space<vmem>>, vector<1x1x32xf32>
    %175 = vector.shape_cast %174 : vector<1x1x32xf32> to vector<1x32xf32>
    %cst_82 = arith.constant dense<0.000000e+00> : vector<8xf32>
    %176 = vector.multi_reduction <add>, %171, %cst_82 [1] : vector<8x32xf32> to vector<8xf32>
    %177 = vector.shape_cast %176 : vector<8xf32> to vector<8x1xf32>
    %cst_83 = arith.constant 3.200000e+01 : f32
    %178 = vector.broadcast %cst_83 : f32 to vector<8x1xf32>
    %179 = arith.divf %177, %178 : vector<8x1xf32>
    %180 = vector.broadcast %179 : vector<8x1xf32> to vector<8x32xf32>
    %181 = arith.subf %171, %180 : vector<8x32xf32>
    %182 = arith.mulf %181, %181 : vector<8x32xf32>
    %cst_84 = arith.constant dense<0.000000e+00> : vector<8xf32>
    %183 = vector.multi_reduction <add>, %182, %cst_84 [1] : vector<8x32xf32> to vector<8xf32>
    %184 = vector.shape_cast %183 : vector<8xf32> to vector<8x1xf32>
    %cst_85 = arith.constant 3.200000e+01 : f32
    %185 = vector.broadcast %cst_85 : f32 to vector<8x1xf32>
    %186 = arith.divf %184, %185 : vector<8x1xf32>
    %187 = vector.broadcast %179 : vector<8x1xf32> to vector<8x32xf32>
    %188 = arith.subf %171, %187 : vector<8x32xf32>
    %cst_86 = arith.constant 9.99999997E-7 : f32
    %189 = vector.broadcast %cst_86 : f32 to vector<8x1xf32>
    %190 = arith.addf %186, %189 : vector<8x1xf32>
    %191 = math.sqrt %190 : vector<8x1xf32>
    %192 = vector.broadcast %191 : vector<8x1xf32> to vector<8x32xf32>
    %193 = arith.divf %188, %192 : vector<8x32xf32>
    %194 = vector.broadcast %173 : vector<1x32xf32> to vector<8x32xf32>
    %195 = arith.mulf %194, %193 : vector<8x32xf32>
    %196 = vector.broadcast %175 : vector<1x32xf32> to vector<8x32xf32>
    %197 = arith.addf %195, %196 : vector<8x32xf32>
    %c0_87 = arith.constant 0 : index
    %c0_88 = arith.constant 0 : index
    %c0_89 = arith.constant 0 : index
    %198 = vector.load %arg12[%c0_87, %c0_88, %c0_89] : memref<2x32x64xf32, #tpu.memory_space<vmem>>, vector<1x32x64xf32>
    %199 = vector.shape_cast %198 : vector<1x32x64xf32> to vector<32x64xf32>
    %cst_90 = arith.constant dense<0.000000e+00> : vector<8x64xf32>
    %200 = tpu.matmul %197, %199, %cst_90 {dimension_numbers = #tpu.dot_dimension_numbers<[1], [0], [0], [1], [0, 0, 1, 1], [], []>} : vector<8x32xf32>, vector<32x64xf32>, vector<8x64xf32> -> vector<8x64xf32>
    %c0_91 = arith.constant 0 : index
    %c0_92 = arith.constant 0 : index
    %c0_93 = arith.constant 0 : index
    %201 = vector.load %arg13[%c0_91, %c0_92, %c0_93] : memref<2x1x64xf32, #tpu.memory_space<vmem>>, vector<1x1x64xf32>
    %202 = vector.shape_cast %201 : vector<1x1x64xf32> to vector<1x64xf32>
    %203 = vector.broadcast %202 : vector<1x64xf32> to vector<8x64xf32>
    %204 = arith.addf %200, %203 : vector<8x64xf32>
    %cst_94 = arith.constant 0.000000e+00 : f32
    %205 = vector.broadcast %cst_94 : f32 to vector<8x64xf32>
    %206 = arith.maximumf %204, %205 : vector<8x64xf32>
    %c0_95 = arith.constant 0 : index
    %c0_96 = arith.constant 0 : index
    %c0_97 = arith.constant 0 : index
    %207 = vector.load %arg14[%c0_95, %c0_96, %c0_97] : memref<2x64x32xf32, #tpu.memory_space<vmem>>, vector<1x64x32xf32>
    %208 = vector.shape_cast %207 : vector<1x64x32xf32> to vector<64x32xf32>
    %cst_98 = arith.constant dense<0.000000e+00> : vector<8x32xf32>
    %209 = tpu.matmul %206, %208, %cst_98 {dimension_numbers = #tpu.dot_dimension_numbers<[1], [0], [0], [1], [0, 0, 1, 1], [], []>} : vector<8x64xf32>, vector<64x32xf32>, vector<8x32xf32> -> vector<8x32xf32>
    %c0_99 = arith.constant 0 : index
    %c0_100 = arith.constant 0 : index
    %c0_101 = arith.constant 0 : index
    %210 = vector.load %arg15[%c0_99, %c0_100, %c0_101] : memref<2x1x32xf32, #tpu.memory_space<vmem>>, vector<1x1x32xf32>
    %211 = vector.shape_cast %210 : vector<1x1x32xf32> to vector<1x32xf32>
    %212 = vector.broadcast %211 : vector<1x32xf32> to vector<8x32xf32>
    %213 = arith.addf %209, %212 : vector<8x32xf32>
    %214 = arith.addf %197, %213 : vector<8x32xf32>
    %215 = arith.addf %214, %197 : vector<8x32xf32>
    %c0_102 = arith.constant 0 : index
    %c0_103 = arith.constant 0 : index
    %c0_104 = arith.constant 0 : index
    %216 = vector.load %arg16[%c0_102, %c0_103, %c0_104] : memref<2x1x32xf32, #tpu.memory_space<vmem>>, vector<1x1x32xf32>
    %217 = vector.shape_cast %216 : vector<1x1x32xf32> to vector<1x32xf32>
    %c0_105 = arith.constant 0 : index
    %c0_106 = arith.constant 0 : index
    %c0_107 = arith.constant 0 : index
    %218 = vector.load %arg17[%c0_105, %c0_106, %c0_107] : memref<2x1x32xf32, #tpu.memory_space<vmem>>, vector<1x1x32xf32>
    %219 = vector.shape_cast %218 : vector<1x1x32xf32> to vector<1x32xf32>
    %cst_108 = arith.constant dense<0.000000e+00> : vector<8xf32>
    %220 = vector.multi_reduction <add>, %215, %cst_108 [1] : vector<8x32xf32> to vector<8xf32>
    %221 = vector.shape_cast %220 : vector<8xf32> to vector<8x1xf32>
    %cst_109 = arith.constant 3.200000e+01 : f32
    %222 = vector.broadcast %cst_109 : f32 to vector<8x1xf32>
    %223 = arith.divf %221, %222 : vector<8x1xf32>
    %224 = vector.broadcast %223 : vector<8x1xf32> to vector<8x32xf32>
    %225 = arith.subf %215, %224 : vector<8x32xf32>
    %226 = arith.mulf %225, %225 : vector<8x32xf32>
    %cst_110 = arith.constant dense<0.000000e+00> : vector<8xf32>
    %227 = vector.multi_reduction <add>, %226, %cst_110 [1] : vector<8x32xf32> to vector<8xf32>
    %228 = vector.shape_cast %227 : vector<8xf32> to vector<8x1xf32>
    %cst_111 = arith.constant 3.200000e+01 : f32
    %229 = vector.broadcast %cst_111 : f32 to vector<8x1xf32>
    %230 = arith.divf %228, %229 : vector<8x1xf32>
    %231 = vector.broadcast %223 : vector<8x1xf32> to vector<8x32xf32>
    %232 = arith.subf %215, %231 : vector<8x32xf32>
    %cst_112 = arith.constant 9.99999997E-7 : f32
    %233 = vector.broadcast %cst_112 : f32 to vector<8x1xf32>
    %234 = arith.addf %230, %233 : vector<8x1xf32>
    %235 = math.sqrt %234 : vector<8x1xf32>
    %236 = vector.broadcast %235 : vector<8x1xf32> to vector<8x32xf32>
    %237 = arith.divf %232, %236 : vector<8x32xf32>
    %238 = vector.broadcast %217 : vector<1x32xf32> to vector<8x32xf32>
    %239 = arith.mulf %238, %237 : vector<8x32xf32>
    %240 = vector.broadcast %219 : vector<1x32xf32> to vector<8x32xf32>
    %241 = arith.addf %239, %240 : vector<8x32xf32>
    %c1_113 = arith.constant 1 : index
    %c0_114 = arith.constant 0 : index
    %c0_115 = arith.constant 0 : index
    %242 = vector.load %arg2[%c1_113, %c0_114, %c0_115] : memref<2x32x32xf32, #tpu.memory_space<vmem>>, vector<1x32x32xf32>
    %243 = vector.shape_cast %242 : vector<1x32x32xf32> to vector<32x32xf32>
    %cst_116 = arith.constant dense<0.000000e+00> : vector<8x32xf32>
    %244 = tpu.matmul %241, %243, %cst_116 {dimension_numbers = #tpu.dot_dimension_numbers<[1], [0], [0], [1], [0, 0, 1, 1], [], []>} : vector<8x32xf32>, vector<32x32xf32>, vector<8x32xf32> -> vector<8x32xf32>
    %c1_117 = arith.constant 1 : index
    %c0_118 = arith.constant 0 : index
    %c0_119 = arith.constant 0 : index
    %245 = vector.load %arg3[%c1_117, %c0_118, %c0_119] : memref<2x1x32xf32, #tpu.memory_space<vmem>>, vector<1x1x32xf32>
    %246 = vector.shape_cast %245 : vector<1x1x32xf32> to vector<1x32xf32>
    %247 = vector.broadcast %246 : vector<1x32xf32> to vector<8x32xf32>
    %248 = arith.addf %244, %247 : vector<8x32xf32>
    %c1_120 = arith.constant 1 : index
    %c0_121 = arith.constant 0 : index
    %c0_122 = arith.constant 0 : index
    %249 = vector.load %arg4[%c1_120, %c0_121, %c0_122] : memref<2x32x32xf32, #tpu.memory_space<vmem>>, vector<1x32x32xf32>
    %250 = vector.shape_cast %249 : vector<1x32x32xf32> to vector<32x32xf32>
    %cst_123 = arith.constant dense<0.000000e+00> : vector<8x32xf32>
    %251 = tpu.matmul %241, %250, %cst_123 {dimension_numbers = #tpu.dot_dimension_numbers<[1], [0], [0], [1], [0, 0, 1, 1], [], []>} : vector<8x32xf32>, vector<32x32xf32>, vector<8x32xf32> -> vector<8x32xf32>
    %c1_124 = arith.constant 1 : index
    %c0_125 = arith.constant 0 : index
    %c0_126 = arith.constant 0 : index
    %252 = vector.load %arg5[%c1_124, %c0_125, %c0_126] : memref<2x1x32xf32, #tpu.memory_space<vmem>>, vector<1x1x32xf32>
    %253 = vector.shape_cast %252 : vector<1x1x32xf32> to vector<1x32xf32>
    %254 = vector.broadcast %253 : vector<1x32xf32> to vector<8x32xf32>
    %255 = arith.addf %251, %254 : vector<8x32xf32>
    %c1_127 = arith.constant 1 : index
    %c0_128 = arith.constant 0 : index
    %c0_129 = arith.constant 0 : index
    %256 = vector.load %arg6[%c1_127, %c0_128, %c0_129] : memref<2x32x32xf32, #tpu.memory_space<vmem>>, vector<1x32x32xf32>
    %257 = vector.shape_cast %256 : vector<1x32x32xf32> to vector<32x32xf32>
    %cst_130 = arith.constant dense<0.000000e+00> : vector<8x32xf32>
    %258 = tpu.matmul %241, %257, %cst_130 {dimension_numbers = #tpu.dot_dimension_numbers<[1], [0], [0], [1], [0, 0, 1, 1], [], []>} : vector<8x32xf32>, vector<32x32xf32>, vector<8x32xf32> -> vector<8x32xf32>
    %c1_131 = arith.constant 1 : index
    %c0_132 = arith.constant 0 : index
    %c0_133 = arith.constant 0 : index
    %259 = vector.load %arg7[%c1_131, %c0_132, %c0_133] : memref<2x1x32xf32, #tpu.memory_space<vmem>>, vector<1x1x32xf32>
    %260 = vector.shape_cast %259 : vector<1x1x32xf32> to vector<1x32xf32>
    %261 = vector.broadcast %260 : vector<1x32xf32> to vector<8x32xf32>
    %262 = arith.addf %258, %261 : vector<8x32xf32>
    %263 = vector.extract_strided_slice %248 {offsets = [0, 0], sizes = [8, 8], strides = [1, 1]} : vector<8x32xf32> to vector<8x8xf32>
    %264 = vector.extract_strided_slice %255 {offsets = [0, 0], sizes = [8, 8], strides = [1, 1]} : vector<8x32xf32> to vector<8x8xf32>
    %265 = vector.extract_strided_slice %262 {offsets = [0, 0], sizes = [8, 8], strides = [1, 1]} : vector<8x32xf32> to vector<8x8xf32>
    "tpu.trace_start"() <{level = 10 : i32, message = "qd,kd->qk"}> : () -> ()
    %cst_134 = arith.constant dense<0.000000e+00> : vector<8x8xf32>
    %266 = tpu.matmul %263, %264, %cst_134 {dimension_numbers = #tpu.dot_dimension_numbers<[1], [1], [0], [0], [0, 0, 1, 0], [], []>} : vector<8x8xf32>, vector<8x8xf32>, vector<8x8xf32> -> vector<8x8xf32>
    "tpu.trace_stop"() : () -> ()
    %cst_135 = arith.constant 0.353553385 : f32
    %267 = vector.broadcast %cst_135 : f32 to vector<8x8xf32>
    %268 = arith.mulf %266, %267 : vector<8x8xf32>
    %cst_136 = arith.constant dense<0xFF800000> : vector<8xf32>
    %269 = vector.multi_reduction <maximumf>, %268, %cst_136 [1] : vector<8x8xf32> to vector<8xf32>
    %270 = vector.shape_cast %269 : vector<8xf32> to vector<8x1xf32>
    %271 = vector.broadcast %270 : vector<8x1xf32> to vector<8x8xf32>
    %272 = arith.subf %268, %271 : vector<8x8xf32>
    %273 = math.exp %272 : vector<8x8xf32>
    %cst_137 = arith.constant dense<0.000000e+00> : vector<8xf32>
    %274 = vector.multi_reduction <add>, %273, %cst_137 [1] : vector<8x8xf32> to vector<8xf32>
    %275 = vector.shape_cast %274 : vector<8xf32> to vector<8x1xf32>
    %276 = vector.broadcast %275 : vector<8x1xf32> to vector<8x8xf32>
    %277 = arith.divf %273, %276 : vector<8x8xf32>
    %cst_138 = arith.constant dense<0.000000e+00> : vector<8x8xf32>
    %278 = tpu.matmul %277, %265, %cst_138 {dimension_numbers = #tpu.dot_dimension_numbers<[1], [0], [0], [1], [0, 0, 1, 1], [], []>} : vector<8x8xf32>, vector<8x8xf32>, vector<8x8xf32> -> vector<8x8xf32>
    %279 = vector.extract_strided_slice %248 {offsets = [0, 8], sizes = [8, 8], strides = [1, 1]} : vector<8x32xf32> to vector<8x8xf32>
    %280 = vector.extract_strided_slice %255 {offsets = [0, 8], sizes = [8, 8], strides = [1, 1]} : vector<8x32xf32> to vector<8x8xf32>
    %281 = vector.extract_strided_slice %262 {offsets = [0, 8], sizes = [8, 8], strides = [1, 1]} : vector<8x32xf32> to vector<8x8xf32>
    "tpu.trace_start"() <{level = 10 : i32, message = "qd,kd->qk"}> : () -> ()
    %cst_139 = arith.constant dense<0.000000e+00> : vector<8x8xf32>
    %282 = tpu.matmul %279, %280, %cst_139 {dimension_numbers = #tpu.dot_dimension_numbers<[1], [1], [0], [0], [0, 0, 1, 0], [], []>} : vector<8x8xf32>, vector<8x8xf32>, vector<8x8xf32> -> vector<8x8xf32>
    "tpu.trace_stop"() : () -> ()
    %cst_140 = arith.constant 0.353553385 : f32
    %283 = vector.broadcast %cst_140 : f32 to vector<8x8xf32>
    %284 = arith.mulf %282, %283 : vector<8x8xf32>
    %cst_141 = arith.constant dense<0xFF800000> : vector<8xf32>
    %285 = vector.multi_reduction <maximumf>, %284, %cst_141 [1] : vector<8x8xf32> to vector<8xf32>
    %286 = vector.shape_cast %285 : vector<8xf32> to vector<8x1xf32>
    %287 = vector.broadcast %286 : vector<8x1xf32> to vector<8x8xf32>
    %288 = arith.subf %284, %287 : vector<8x8xf32>
    %289 = math.exp %288 : vector<8x8xf32>
    %cst_142 = arith.constant dense<0.000000e+00> : vector<8xf32>
    %290 = vector.multi_reduction <add>, %289, %cst_142 [1] : vector<8x8xf32> to vector<8xf32>
    %291 = vector.shape_cast %290 : vector<8xf32> to vector<8x1xf32>
    %292 = vector.broadcast %291 : vector<8x1xf32> to vector<8x8xf32>
    %293 = arith.divf %289, %292 : vector<8x8xf32>
    %cst_143 = arith.constant dense<0.000000e+00> : vector<8x8xf32>
    %294 = tpu.matmul %293, %281, %cst_143 {dimension_numbers = #tpu.dot_dimension_numbers<[1], [0], [0], [1], [0, 0, 1, 1], [], []>} : vector<8x8xf32>, vector<8x8xf32>, vector<8x8xf32> -> vector<8x8xf32>
    %295 = vector.extract_strided_slice %248 {offsets = [0, 16], sizes = [8, 8], strides = [1, 1]} : vector<8x32xf32> to vector<8x8xf32>
    %296 = vector.extract_strided_slice %255 {offsets = [0, 16], sizes = [8, 8], strides = [1, 1]} : vector<8x32xf32> to vector<8x8xf32>
    %297 = vector.extract_strided_slice %262 {offsets = [0, 16], sizes = [8, 8], strides = [1, 1]} : vector<8x32xf32> to vector<8x8xf32>
    "tpu.trace_start"() <{level = 10 : i32, message = "qd,kd->qk"}> : () -> ()
    %cst_144 = arith.constant dense<0.000000e+00> : vector<8x8xf32>
    %298 = tpu.matmul %295, %296, %cst_144 {dimension_numbers = #tpu.dot_dimension_numbers<[1], [1], [0], [0], [0, 0, 1, 0], [], []>} : vector<8x8xf32>, vector<8x8xf32>, vector<8x8xf32> -> vector<8x8xf32>
    "tpu.trace_stop"() : () -> ()
    %cst_145 = arith.constant 0.353553385 : f32
    %299 = vector.broadcast %cst_145 : f32 to vector<8x8xf32>
    %300 = arith.mulf %298, %299 : vector<8x8xf32>
    %cst_146 = arith.constant dense<0xFF800000> : vector<8xf32>
    %301 = vector.multi_reduction <maximumf>, %300, %cst_146 [1] : vector<8x8xf32> to vector<8xf32>
    %302 = vector.shape_cast %301 : vector<8xf32> to vector<8x1xf32>
    %303 = vector.broadcast %302 : vector<8x1xf32> to vector<8x8xf32>
    %304 = arith.subf %300, %303 : vector<8x8xf32>
    %305 = math.exp %304 : vector<8x8xf32>
    %cst_147 = arith.constant dense<0.000000e+00> : vector<8xf32>
    %306 = vector.multi_reduction <add>, %305, %cst_147 [1] : vector<8x8xf32> to vector<8xf32>
    %307 = vector.shape_cast %306 : vector<8xf32> to vector<8x1xf32>
    %308 = vector.broadcast %307 : vector<8x1xf32> to vector<8x8xf32>
    %309 = arith.divf %305, %308 : vector<8x8xf32>
    %cst_148 = arith.constant dense<0.000000e+00> : vector<8x8xf32>
    %310 = tpu.matmul %309, %297, %cst_148 {dimension_numbers = #tpu.dot_dimension_numbers<[1], [0], [0], [1], [0, 0, 1, 1], [], []>} : vector<8x8xf32>, vector<8x8xf32>, vector<8x8xf32> -> vector<8x8xf32>
    %311 = vector.extract_strided_slice %248 {offsets = [0, 24], sizes = [8, 8], strides = [1, 1]} : vector<8x32xf32> to vector<8x8xf32>
    %312 = vector.extract_strided_slice %255 {offsets = [0, 24], sizes = [8, 8], strides = [1, 1]} : vector<8x32xf32> to vector<8x8xf32>
    %313 = vector.extract_strided_slice %262 {offsets = [0, 24], sizes = [8, 8], strides = [1, 1]} : vector<8x32xf32> to vector<8x8xf32>
    "tpu.trace_start"() <{level = 10 : i32, message = "qd,kd->qk"}> : () -> ()
    %cst_149 = arith.constant dense<0.000000e+00> : vector<8x8xf32>
    %314 = tpu.matmul %311, %312, %cst_149 {dimension_numbers = #tpu.dot_dimension_numbers<[1], [1], [0], [0], [0, 0, 1, 0], [], []>} : vector<8x8xf32>, vector<8x8xf32>, vector<8x8xf32> -> vector<8x8xf32>
    "tpu.trace_stop"() : () -> ()
    %cst_150 = arith.constant 0.353553385 : f32
    %315 = vector.broadcast %cst_150 : f32 to vector<8x8xf32>
    %316 = arith.mulf %314, %315 : vector<8x8xf32>
    %cst_151 = arith.constant dense<0xFF800000> : vector<8xf32>
    %317 = vector.multi_reduction <maximumf>, %316, %cst_151 [1] : vector<8x8xf32> to vector<8xf32>
    %318 = vector.shape_cast %317 : vector<8xf32> to vector<8x1xf32>
    %319 = vector.broadcast %318 : vector<8x1xf32> to vector<8x8xf32>
    %320 = arith.subf %316, %319 : vector<8x8xf32>
    %321 = math.exp %320 : vector<8x8xf32>
    %cst_152 = arith.constant dense<0.000000e+00> : vector<8xf32>
    %322 = vector.multi_reduction <add>, %321, %cst_152 [1] : vector<8x8xf32> to vector<8xf32>
    %323 = vector.shape_cast %322 : vector<8xf32> to vector<8x1xf32>
    %324 = vector.broadcast %323 : vector<8x1xf32> to vector<8x8xf32>
    %325 = arith.divf %321, %324 : vector<8x8xf32>
    %cst_153 = arith.constant dense<0.000000e+00> : vector<8x8xf32>
    %326 = tpu.matmul %325, %313, %cst_153 {dimension_numbers = #tpu.dot_dimension_numbers<[1], [0], [0], [1], [0, 0, 1, 1], [], []>} : vector<8x8xf32>, vector<8x8xf32>, vector<8x8xf32> -> vector<8x8xf32>
    %327 = tpu.concatenate %278, %294, %310, %326 in 1 : vector<8x8xf32>, vector<8x8xf32>, vector<8x8xf32>, vector<8x8xf32> -> vector<8x32xf32>
    %c1_154 = arith.constant 1 : index
    %c0_155 = arith.constant 0 : index
    %c0_156 = arith.constant 0 : index
    %328 = vector.load %arg8[%c1_154, %c0_155, %c0_156] : memref<2x32x32xf32, #tpu.memory_space<vmem>>, vector<1x32x32xf32>
    %329 = vector.shape_cast %328 : vector<1x32x32xf32> to vector<32x32xf32>
    %cst_157 = arith.constant dense<0.000000e+00> : vector<8x32xf32>
    %330 = tpu.matmul %327, %329, %cst_157 {dimension_numbers = #tpu.dot_dimension_numbers<[1], [0], [0], [1], [0, 0, 1, 1], [], []>} : vector<8x32xf32>, vector<32x32xf32>, vector<8x32xf32> -> vector<8x32xf32>
    %c1_158 = arith.constant 1 : index
    %c0_159 = arith.constant 0 : index
    %c0_160 = arith.constant 0 : index
    %331 = vector.load %arg9[%c1_158, %c0_159, %c0_160] : memref<2x1x32xf32, #tpu.memory_space<vmem>>, vector<1x1x32xf32>
    %332 = vector.shape_cast %331 : vector<1x1x32xf32> to vector<1x32xf32>
    %333 = vector.broadcast %332 : vector<1x32xf32> to vector<8x32xf32>
    %334 = arith.addf %330, %333 : vector<8x32xf32>
    %335 = arith.addf %241, %334 : vector<8x32xf32>
    %336 = arith.addf %335, %241 : vector<8x32xf32>
    %c1_161 = arith.constant 1 : index
    %c0_162 = arith.constant 0 : index
    %c0_163 = arith.constant 0 : index
    %337 = vector.load %arg10[%c1_161, %c0_162, %c0_163] : memref<2x1x32xf32, #tpu.memory_space<vmem>>, vector<1x1x32xf32>
    %338 = vector.shape_cast %337 : vector<1x1x32xf32> to vector<1x32xf32>
    %c1_164 = arith.constant 1 : index
    %c0_165 = arith.constant 0 : index
    %c0_166 = arith.constant 0 : index
    %339 = vector.load %arg11[%c1_164, %c0_165, %c0_166] : memref<2x1x32xf32, #tpu.memory_space<vmem>>, vector<1x1x32xf32>
    %340 = vector.shape_cast %339 : vector<1x1x32xf32> to vector<1x32xf32>
    %cst_167 = arith.constant dense<0.000000e+00> : vector<8xf32>
    %341 = vector.multi_reduction <add>, %336, %cst_167 [1] : vector<8x32xf32> to vector<8xf32>
    %342 = vector.shape_cast %341 : vector<8xf32> to vector<8x1xf32>
    %cst_168 = arith.constant 3.200000e+01 : f32
    %343 = vector.broadcast %cst_168 : f32 to vector<8x1xf32>
    %344 = arith.divf %342, %343 : vector<8x1xf32>
    %345 = vector.broadcast %344 : vector<8x1xf32> to vector<8x32xf32>
    %346 = arith.subf %336, %345 : vector<8x32xf32>
    %347 = arith.mulf %346, %346 : vector<8x32xf32>
    %cst_169 = arith.constant dense<0.000000e+00> : vector<8xf32>
    %348 = vector.multi_reduction <add>, %347, %cst_169 [1] : vector<8x32xf32> to vector<8xf32>
    %349 = vector.shape_cast %348 : vector<8xf32> to vector<8x1xf32>
    %cst_170 = arith.constant 3.200000e+01 : f32
    %350 = vector.broadcast %cst_170 : f32 to vector<8x1xf32>
    %351 = arith.divf %349, %350 : vector<8x1xf32>
    %352 = vector.broadcast %344 : vector<8x1xf32> to vector<8x32xf32>
    %353 = arith.subf %336, %352 : vector<8x32xf32>
    %cst_171 = arith.constant 9.99999997E-7 : f32
    %354 = vector.broadcast %cst_171 : f32 to vector<8x1xf32>
    %355 = arith.addf %351, %354 : vector<8x1xf32>
    %356 = math.sqrt %355 : vector<8x1xf32>
    %357 = vector.broadcast %356 : vector<8x1xf32> to vector<8x32xf32>
    %358 = arith.divf %353, %357 : vector<8x32xf32>
    %359 = vector.broadcast %338 : vector<1x32xf32> to vector<8x32xf32>
    %360 = arith.mulf %359, %358 : vector<8x32xf32>
    %361 = vector.broadcast %340 : vector<1x32xf32> to vector<8x32xf32>
    %362 = arith.addf %360, %361 : vector<8x32xf32>
    %c1_172 = arith.constant 1 : index
    %c0_173 = arith.constant 0 : index
    %c0_174 = arith.constant 0 : index
    %363 = vector.load %arg12[%c1_172, %c0_173, %c0_174] : memref<2x32x64xf32, #tpu.memory_space<vmem>>, vector<1x32x64xf32>
    %364 = vector.shape_cast %363 : vector<1x32x64xf32> to vector<32x64xf32>
    %cst_175 = arith.constant dense<0.000000e+00> : vector<8x64xf32>
    %365 = tpu.matmul %362, %364, %cst_175 {dimension_numbers = #tpu.dot_dimension_numbers<[1], [0], [0], [1], [0, 0, 1, 1], [], []>} : vector<8x32xf32>, vector<32x64xf32>, vector<8x64xf32> -> vector<8x64xf32>
    %c1_176 = arith.constant 1 : index
    %c0_177 = arith.constant 0 : index
    %c0_178 = arith.constant 0 : index
    %366 = vector.load %arg13[%c1_176, %c0_177, %c0_178] : memref<2x1x64xf32, #tpu.memory_space<vmem>>, vector<1x1x64xf32>
    %367 = vector.shape_cast %366 : vector<1x1x64xf32> to vector<1x64xf32>
    %368 = vector.broadcast %367 : vector<1x64xf32> to vector<8x64xf32>
    %369 = arith.addf %365, %368 : vector<8x64xf32>
    %cst_179 = arith.constant 0.000000e+00 : f32
    %370 = vector.broadcast %cst_179 : f32 to vector<8x64xf32>
    %371 = arith.maximumf %369, %370 : vector<8x64xf32>
    %c1_180 = arith.constant 1 : index
    %c0_181 = arith.constant 0 : index
    %c0_182 = arith.constant 0 : index
    %372 = vector.load %arg14[%c1_180, %c0_181, %c0_182] : memref<2x64x32xf32, #tpu.memory_space<vmem>>, vector<1x64x32xf32>
    %373 = vector.shape_cast %372 : vector<1x64x32xf32> to vector<64x32xf32>
    %cst_183 = arith.constant dense<0.000000e+00> : vector<8x32xf32>
    %374 = tpu.matmul %371, %373, %cst_183 {dimension_numbers = #tpu.dot_dimension_numbers<[1], [0], [0], [1], [0, 0, 1, 1], [], []>} : vector<8x64xf32>, vector<64x32xf32>, vector<8x32xf32> -> vector<8x32xf32>
    %c1_184 = arith.constant 1 : index
    %c0_185 = arith.constant 0 : index
    %c0_186 = arith.constant 0 : index
    %375 = vector.load %arg15[%c1_184, %c0_185, %c0_186] : memref<2x1x32xf32, #tpu.memory_space<vmem>>, vector<1x1x32xf32>
    %376 = vector.shape_cast %375 : vector<1x1x32xf32> to vector<1x32xf32>
    %377 = vector.broadcast %376 : vector<1x32xf32> to vector<8x32xf32>
    %378 = arith.addf %374, %377 : vector<8x32xf32>
    %379 = arith.addf %362, %378 : vector<8x32xf32>
    %380 = arith.addf %379, %362 : vector<8x32xf32>
    %c1_187 = arith.constant 1 : index
    %c0_188 = arith.constant 0 : index
    %c0_189 = arith.constant 0 : index
    %381 = vector.load %arg16[%c1_187, %c0_188, %c0_189] : memref<2x1x32xf32, #tpu.memory_space<vmem>>, vector<1x1x32xf32>
    %382 = vector.shape_cast %381 : vector<1x1x32xf32> to vector<1x32xf32>
    %c1_190 = arith.constant 1 : index
    %c0_191 = arith.constant 0 : index
    %c0_192 = arith.constant 0 : index
    %383 = vector.load %arg17[%c1_190, %c0_191, %c0_192] : memref<2x1x32xf32, #tpu.memory_space<vmem>>, vector<1x1x32xf32>
    %384 = vector.shape_cast %383 : vector<1x1x32xf32> to vector<1x32xf32>
    %cst_193 = arith.constant dense<0.000000e+00> : vector<8xf32>
    %385 = vector.multi_reduction <add>, %380, %cst_193 [1] : vector<8x32xf32> to vector<8xf32>
    %386 = vector.shape_cast %385 : vector<8xf32> to vector<8x1xf32>
    %cst_194 = arith.constant 3.200000e+01 : f32
    %387 = vector.broadcast %cst_194 : f32 to vector<8x1xf32>
    %388 = arith.divf %386, %387 : vector<8x1xf32>
    %389 = vector.broadcast %388 : vector<8x1xf32> to vector<8x32xf32>
    %390 = arith.subf %380, %389 : vector<8x32xf32>
    %391 = arith.mulf %390, %390 : vector<8x32xf32>
    %cst_195 = arith.constant dense<0.000000e+00> : vector<8xf32>
    %392 = vector.multi_reduction <add>, %391, %cst_195 [1] : vector<8x32xf32> to vector<8xf32>
    %393 = vector.shape_cast %392 : vector<8xf32> to vector<8x1xf32>
    %cst_196 = arith.constant 3.200000e+01 : f32
    %394 = vector.broadcast %cst_196 : f32 to vector<8x1xf32>
    %395 = arith.divf %393, %394 : vector<8x1xf32>
    %396 = vector.broadcast %388 : vector<8x1xf32> to vector<8x32xf32>
    %397 = arith.subf %380, %396 : vector<8x32xf32>
    %cst_197 = arith.constant 9.99999997E-7 : f32
    %398 = vector.broadcast %cst_197 : f32 to vector<8x1xf32>
    %399 = arith.addf %395, %398 : vector<8x1xf32>
    %400 = math.sqrt %399 : vector<8x1xf32>
    %401 = vector.broadcast %400 : vector<8x1xf32> to vector<8x32xf32>
    %402 = arith.divf %397, %401 : vector<8x32xf32>
    %403 = vector.broadcast %382 : vector<1x32xf32> to vector<8x32xf32>
    %404 = arith.mulf %403, %402 : vector<8x32xf32>
    %405 = vector.broadcast %384 : vector<1x32xf32> to vector<8x32xf32>
    %406 = arith.addf %404, %405 : vector<8x32xf32>
    %c0_198 = arith.constant 0 : index
    %c0_199 = arith.constant 0 : index
    %407 = vector.load %arg18[%c0_198, %c0_199] : memref<16x32xf32, #tpu.memory_space<vmem>>, vector<8x32xf32>
    tpu.vector_store %arg18[%c0_198, %c0_199], %406 {strides = array<i32>} : memref<16x32xf32, #tpu.memory_space<vmem>>, vector<8x32xf32>,
    %c1_200 = arith.constant 1 : index
    %c0_201 = arith.constant 0 : index
    %408 = memref.load %arg0[%c1_200, %c0_201] : memref<2x8xi32, #tpu.memory_space<smem>>
    %409 = arith.index_cast %408 : i32 to index
    %c0_202 = arith.constant 0 : index
    %410 = vector.load %arg1[%409, %c0_202] : memref<64x32xf32, #tpu.memory_space<vmem>>, vector<1x32xf32>
    %c1_203 = arith.constant 1 : index
    %c1_204 = arith.constant 1 : index
    %411 = memref.load %arg0[%c1_203, %c1_204] : memref<2x8xi32, #tpu.memory_space<smem>>
    %412 = arith.index_cast %411 : i32 to index
    %c0_205 = arith.constant 0 : index
    %413 = vector.load %arg1[%412, %c0_205] : memref<64x32xf32, #tpu.memory_space<vmem>>, vector<1x32xf32>
    %c1_206 = arith.constant 1 : index
    %c2_207 = arith.constant 2 : index
    %414 = memref.load %arg0[%c1_206, %c2_207] : memref<2x8xi32, #tpu.memory_space<smem>>
    %415 = arith.index_cast %414 : i32 to index
    %c0_208 = arith.constant 0 : index
    %416 = vector.load %arg1[%415, %c0_208] : memref<64x32xf32, #tpu.memory_space<vmem>>, vector<1x32xf32>
    %c1_209 = arith.constant 1 : index
    %c3_210 = arith.constant 3 : index
    %417 = memref.load %arg0[%c1_209, %c3_210] : memref<2x8xi32, #tpu.memory_space<smem>>
    %418 = arith.index_cast %417 : i32 to index
    %c0_211 = arith.constant 0 : index
    %419 = vector.load %arg1[%418, %c0_211] : memref<64x32xf32, #tpu.memory_space<vmem>>, vector<1x32xf32>
    %c1_212 = arith.constant 1 : index
    %c4_213 = arith.constant 4 : index
    %420 = memref.load %arg0[%c1_212, %c4_213] : memref<2x8xi32, #tpu.memory_space<smem>>
    %421 = arith.index_cast %420 : i32 to index
    %c0_214 = arith.constant 0 : index
    %422 = vector.load %arg1[%421, %c0_214] : memref<64x32xf32, #tpu.memory_space<vmem>>, vector<1x32xf32>
    %c1_215 = arith.constant 1 : index
    %c5_216 = arith.constant 5 : index
    %423 = memref.load %arg0[%c1_215, %c5_216] : memref<2x8xi32, #tpu.memory_space<smem>>
    %424 = arith.index_cast %423 : i32 to index
    %c0_217 = arith.constant 0 : index
    %425 = vector.load %arg1[%424, %c0_217] : memref<64x32xf32, #tpu.memory_space<vmem>>, vector<1x32xf32>
    %c1_218 = arith.constant 1 : index
    %c6_219 = arith.constant 6 : index
    %426 = memref.load %arg0[%c1_218, %c6_219] : memref<2x8xi32, #tpu.memory_space<smem>>
    %427 = arith.index_cast %426 : i32 to index
    %c0_220 = arith.constant 0 : index
    %428 = vector.load %arg1[%427, %c0_220] : memref<64x32xf32, #tpu.memory_space<vmem>>, vector<1x32xf32>
    %c1_221 = arith.constant 1 : index
    %c7_222 = arith.constant 7 : index
    %429 = memref.load %arg0[%c1_221, %c7_222] : memref<2x8xi32, #tpu.memory_space<smem>>
    %430 = arith.index_cast %429 : i32 to index
    %c0_223 = arith.constant 0 : index
    %431 = vector.load %arg1[%430, %c0_223] : memref<64x32xf32, #tpu.memory_space<vmem>>, vector<1x32xf32>
    %432 = tpu.concatenate %410, %413, %416, %419, %422, %425, %428, %431 in 0 : vector<1x32xf32>, vector<1x32xf32>, vector<1x32xf32>, vector<1x32xf32>, vector<1x32xf32>, vector<1x32xf32>, vector<1x32xf32>, vector<1x32xf32> -> vector<8x32xf32>
    %433 = arith.addf %432, %50 : vector<8x32xf32>
    %c0_224 = arith.constant 0 : index
    %c0_225 = arith.constant 0 : index
    %c0_226 = arith.constant 0 : index
    %434 = vector.load %arg2[%c0_224, %c0_225, %c0_226] : memref<2x32x32xf32, #tpu.memory_space<vmem>>, vector<1x32x32xf32>
    %435 = vector.shape_cast %434 : vector<1x32x32xf32> to vector<32x32xf32>
    %cst_227 = arith.constant dense<0.000000e+00> : vector<8x32xf32>
    %436 = tpu.matmul %433, %435, %cst_227 {dimension_numbers = #tpu.dot_dimension_numbers<[1], [0], [0], [1], [0, 0, 1, 1], [], []>} : vector<8x32xf32>, vector<32x32xf32>, vector<8x32xf32> -> vector<8x32xf32>
    %c0_228 = arith.constant 0 : index
    %c0_229 = arith.constant 0 : index
    %c0_230 = arith.constant 0 : index
    %437 = vector.load %arg3[%c0_228, %c0_229, %c0_230] : memref<2x1x32xf32, #tpu.memory_space<vmem>>, vector<1x1x32xf32>
    %438 = vector.shape_cast %437 : vector<1x1x32xf32> to vector<1x32xf32>
    %439 = vector.broadcast %438 : vector<1x32xf32> to vector<8x32xf32>
    %440 = arith.addf %436, %439 : vector<8x32xf32>
    %c0_231 = arith.constant 0 : index
    %c0_232 = arith.constant 0 : index
    %c0_233 = arith.constant 0 : index
    %441 = vector.load %arg4[%c0_231, %c0_232, %c0_233] : memref<2x32x32xf32, #tpu.memory_space<vmem>>, vector<1x32x32xf32>
    %442 = vector.shape_cast %441 : vector<1x32x32xf32> to vector<32x32xf32>
    %cst_234 = arith.constant dense<0.000000e+00> : vector<8x32xf32>
    %443 = tpu.matmul %433, %442, %cst_234 {dimension_numbers = #tpu.dot_dimension_numbers<[1], [0], [0], [1], [0, 0, 1, 1], [], []>} : vector<8x32xf32>, vector<32x32xf32>, vector<8x32xf32> -> vector<8x32xf32>
    %c0_235 = arith.constant 0 : index
    %c0_236 = arith.constant 0 : index
    %c0_237 = arith.constant 0 : index
    %444 = vector.load %arg5[%c0_235, %c0_236, %c0_237] : memref<2x1x32xf32, #tpu.memory_space<vmem>>, vector<1x1x32xf32>
    %445 = vector.shape_cast %444 : vector<1x1x32xf32> to vector<1x32xf32>
    %446 = vector.broadcast %445 : vector<1x32xf32> to vector<8x32xf32>
    %447 = arith.addf %443, %446 : vector<8x32xf32>
    %c0_238 = arith.constant 0 : index
    %c0_239 = arith.constant 0 : index
    %c0_240 = arith.constant 0 : index
    %448 = vector.load %arg6[%c0_238, %c0_239, %c0_240] : memref<2x32x32xf32, #tpu.memory_space<vmem>>, vector<1x32x32xf32>
    %449 = vector.shape_cast %448 : vector<1x32x32xf32> to vector<32x32xf32>
    %cst_241 = arith.constant dense<0.000000e+00> : vector<8x32xf32>
    %450 = tpu.matmul %433, %449, %cst_241 {dimension_numbers = #tpu.dot_dimension_numbers<[1], [0], [0], [1], [0, 0, 1, 1], [], []>} : vector<8x32xf32>, vector<32x32xf32>, vector<8x32xf32> -> vector<8x32xf32>
    %c0_242 = arith.constant 0 : index
    %c0_243 = arith.constant 0 : index
    %c0_244 = arith.constant 0 : index
    %451 = vector.load %arg7[%c0_242, %c0_243, %c0_244] : memref<2x1x32xf32, #tpu.memory_space<vmem>>, vector<1x1x32xf32>
    %452 = vector.shape_cast %451 : vector<1x1x32xf32> to vector<1x32xf32>
    %453 = vector.broadcast %452 : vector<1x32xf32> to vector<8x32xf32>
    %454 = arith.addf %450, %453 : vector<8x32xf32>
    %455 = vector.extract_strided_slice %440 {offsets = [0, 0], sizes = [8, 8], strides = [1, 1]} : vector<8x32xf32> to vector<8x8xf32>
    %456 = vector.extract_strided_slice %447 {offsets = [0, 0], sizes = [8, 8], strides = [1, 1]} : vector<8x32xf32> to vector<8x8xf32>
    %457 = vector.extract_strided_slice %454 {offsets = [0, 0], sizes = [8, 8], strides = [1, 1]} : vector<8x32xf32> to vector<8x8xf32>
    "tpu.trace_start"() <{level = 10 : i32, message = "qd,kd->qk"}> : () -> ()
    %cst_245 = arith.constant dense<0.000000e+00> : vector<8x8xf32>
    %458 = tpu.matmul %455, %456, %cst_245 {dimension_numbers = #tpu.dot_dimension_numbers<[1], [1], [0], [0], [0, 0, 1, 0], [], []>} : vector<8x8xf32>, vector<8x8xf32>, vector<8x8xf32> -> vector<8x8xf32>
    "tpu.trace_stop"() : () -> ()
    %cst_246 = arith.constant 0.353553385 : f32
    %459 = vector.broadcast %cst_246 : f32 to vector<8x8xf32>
    %460 = arith.mulf %458, %459 : vector<8x8xf32>
    %cst_247 = arith.constant dense<0xFF800000> : vector<8xf32>
    %461 = vector.multi_reduction <maximumf>, %460, %cst_247 [1] : vector<8x8xf32> to vector<8xf32>
    %462 = vector.shape_cast %461 : vector<8xf32> to vector<8x1xf32>
    %463 = vector.broadcast %462 : vector<8x1xf32> to vector<8x8xf32>
    %464 = arith.subf %460, %463 : vector<8x8xf32>
    %465 = math.exp %464 : vector<8x8xf32>
    %cst_248 = arith.constant dense<0.000000e+00> : vector<8xf32>
    %466 = vector.multi_reduction <add>, %465, %cst_248 [1] : vector<8x8xf32> to vector<8xf32>
    %467 = vector.shape_cast %466 : vector<8xf32> to vector<8x1xf32>
    %468 = vector.broadcast %467 : vector<8x1xf32> to vector<8x8xf32>
    %469 = arith.divf %465, %468 : vector<8x8xf32>
    %cst_249 = arith.constant dense<0.000000e+00> : vector<8x8xf32>
    %470 = tpu.matmul %469, %457, %cst_249 {dimension_numbers = #tpu.dot_dimension_numbers<[1], [0], [0], [1], [0, 0, 1, 1], [], []>} : vector<8x8xf32>, vector<8x8xf32>, vector<8x8xf32> -> vector<8x8xf32>
    %471 = vector.extract_strided_slice %440 {offsets = [0, 8], sizes = [8, 8], strides = [1, 1]} : vector<8x32xf32> to vector<8x8xf32>
    %472 = vector.extract_strided_slice %447 {offsets = [0, 8], sizes = [8, 8], strides = [1, 1]} : vector<8x32xf32> to vector<8x8xf32>
    %473 = vector.extract_strided_slice %454 {offsets = [0, 8], sizes = [8, 8], strides = [1, 1]} : vector<8x32xf32> to vector<8x8xf32>
    "tpu.trace_start"() <{level = 10 : i32, message = "qd,kd->qk"}> : () -> ()
    %cst_250 = arith.constant dense<0.000000e+00> : vector<8x8xf32>
    %474 = tpu.matmul %471, %472, %cst_250 {dimension_numbers = #tpu.dot_dimension_numbers<[1], [1], [0], [0], [0, 0, 1, 0], [], []>} : vector<8x8xf32>, vector<8x8xf32>, vector<8x8xf32> -> vector<8x8xf32>
    "tpu.trace_stop"() : () -> ()
    %cst_251 = arith.constant 0.353553385 : f32
    %475 = vector.broadcast %cst_251 : f32 to vector<8x8xf32>
    %476 = arith.mulf %474, %475 : vector<8x8xf32>
    %cst_252 = arith.constant dense<0xFF800000> : vector<8xf32>
    %477 = vector.multi_reduction <maximumf>, %476, %cst_252 [1] : vector<8x8xf32> to vector<8xf32>
    %478 = vector.shape_cast %477 : vector<8xf32> to vector<8x1xf32>
    %479 = vector.broadcast %478 : vector<8x1xf32> to vector<8x8xf32>
    %480 = arith.subf %476, %479 : vector<8x8xf32>
    %481 = math.exp %480 : vector<8x8xf32>
    %cst_253 = arith.constant dense<0.000000e+00> : vector<8xf32>
    %482 = vector.multi_reduction <add>, %481, %cst_253 [1] : vector<8x8xf32> to vector<8xf32>
    %483 = vector.shape_cast %482 : vector<8xf32> to vector<8x1xf32>
    %484 = vector.broadcast %483 : vector<8x1xf32> to vector<8x8xf32>
    %485 = arith.divf %481, %484 : vector<8x8xf32>
    %cst_254 = arith.constant dense<0.000000e+00> : vector<8x8xf32>
    %486 = tpu.matmul %485, %473, %cst_254 {dimension_numbers = #tpu.dot_dimension_numbers<[1], [0], [0], [1], [0, 0, 1, 1], [], []>} : vector<8x8xf32>, vector<8x8xf32>, vector<8x8xf32> -> vector<8x8xf32>
    %487 = vector.extract_strided_slice %440 {offsets = [0, 16], sizes = [8, 8], strides = [1, 1]} : vector<8x32xf32> to vector<8x8xf32>
    %488 = vector.extract_strided_slice %447 {offsets = [0, 16], sizes = [8, 8], strides = [1, 1]} : vector<8x32xf32> to vector<8x8xf32>
    %489 = vector.extract_strided_slice %454 {offsets = [0, 16], sizes = [8, 8], strides = [1, 1]} : vector<8x32xf32> to vector<8x8xf32>
    "tpu.trace_start"() <{level = 10 : i32, message = "qd,kd->qk"}> : () -> ()
    %cst_255 = arith.constant dense<0.000000e+00> : vector<8x8xf32>
    %490 = tpu.matmul %487, %488, %cst_255 {dimension_numbers = #tpu.dot_dimension_numbers<[1], [1], [0], [0], [0, 0, 1, 0], [], []>} : vector<8x8xf32>, vector<8x8xf32>, vector<8x8xf32> -> vector<8x8xf32>
    "tpu.trace_stop"() : () -> ()
    %cst_256 = arith.constant 0.353553385 : f32
    %491 = vector.broadcast %cst_256 : f32 to vector<8x8xf32>
    %492 = arith.mulf %490, %491 : vector<8x8xf32>
    %cst_257 = arith.constant dense<0xFF800000> : vector<8xf32>
    %493 = vector.multi_reduction <maximumf>, %492, %cst_257 [1] : vector<8x8xf32> to vector<8xf32>
    %494 = vector.shape_cast %493 : vector<8xf32> to vector<8x1xf32>
    %495 = vector.broadcast %494 : vector<8x1xf32> to vector<8x8xf32>
    %496 = arith.subf %492, %495 : vector<8x8xf32>
    %497 = math.exp %496 : vector<8x8xf32>
    %cst_258 = arith.constant dense<0.000000e+00> : vector<8xf32>
    %498 = vector.multi_reduction <add>, %497, %cst_258 [1] : vector<8x8xf32> to vector<8xf32>
    %499 = vector.shape_cast %498 : vector<8xf32> to vector<8x1xf32>
    %500 = vector.broadcast %499 : vector<8x1xf32> to vector<8x8xf32>
    %501 = arith.divf %497, %500 : vector<8x8xf32>
    %cst_259 = arith.constant dense<0.000000e+00> : vector<8x8xf32>
    %502 = tpu.matmul %501, %489, %cst_259 {dimension_numbers = #tpu.dot_dimension_numbers<[1], [0], [0], [1], [0, 0, 1, 1], [], []>} : vector<8x8xf32>, vector<8x8xf32>, vector<8x8xf32> -> vector<8x8xf32>
    %503 = vector.extract_strided_slice %440 {offsets = [0, 24], sizes = [8, 8], strides = [1, 1]} : vector<8x32xf32> to vector<8x8xf32>
    %504 = vector.extract_strided_slice %447 {offsets = [0, 24], sizes = [8, 8], strides = [1, 1]} : vector<8x32xf32> to vector<8x8xf32>
    %505 = vector.extract_strided_slice %454 {offsets = [0, 24], sizes = [8, 8], strides = [1, 1]} : vector<8x32xf32> to vector<8x8xf32>
    "tpu.trace_start"() <{level = 10 : i32, message = "qd,kd->qk"}> : () -> ()
    %cst_260 = arith.constant dense<0.000000e+00> : vector<8x8xf32>
    %506 = tpu.matmul %503, %504, %cst_260 {dimension_numbers = #tpu.dot_dimension_numbers<[1], [1], [0], [0], [0, 0, 1, 0], [], []>} : vector<8x8xf32>, vector<8x8xf32>, vector<8x8xf32> -> vector<8x8xf32>
    "tpu.trace_stop"() : () -> ()
    %cst_261 = arith.constant 0.353553385 : f32
    %507 = vector.broadcast %cst_261 : f32 to vector<8x8xf32>
    %508 = arith.mulf %506, %507 : vector<8x8xf32>
    %cst_262 = arith.constant dense<0xFF800000> : vector<8xf32>
    %509 = vector.multi_reduction <maximumf>, %508, %cst_262 [1] : vector<8x8xf32> to vector<8xf32>
    %510 = vector.shape_cast %509 : vector<8xf32> to vector<8x1xf32>
    %511 = vector.broadcast %510 : vector<8x1xf32> to vector<8x8xf32>
    %512 = arith.subf %508, %511 : vector<8x8xf32>
    %513 = math.exp %512 : vector<8x8xf32>
    %cst_263 = arith.constant dense<0.000000e+00> : vector<8xf32>
    %514 = vector.multi_reduction <add>, %513, %cst_263 [1] : vector<8x8xf32> to vector<8xf32>
    %515 = vector.shape_cast %514 : vector<8xf32> to vector<8x1xf32>
    %516 = vector.broadcast %515 : vector<8x1xf32> to vector<8x8xf32>
    %517 = arith.divf %513, %516 : vector<8x8xf32>
    %cst_264 = arith.constant dense<0.000000e+00> : vector<8x8xf32>
    %518 = tpu.matmul %517, %505, %cst_264 {dimension_numbers = #tpu.dot_dimension_numbers<[1], [0], [0], [1], [0, 0, 1, 1], [], []>} : vector<8x8xf32>, vector<8x8xf32>, vector<8x8xf32> -> vector<8x8xf32>
    %519 = tpu.concatenate %470, %486, %502, %518 in 1 : vector<8x8xf32>, vector<8x8xf32>, vector<8x8xf32>, vector<8x8xf32> -> vector<8x32xf32>
    %c0_265 = arith.constant 0 : index
    %c0_266 = arith.constant 0 : index
    %c0_267 = arith.constant 0 : index
    %520 = vector.load %arg8[%c0_265, %c0_266, %c0_267] : memref<2x32x32xf32, #tpu.memory_space<vmem>>, vector<1x32x32xf32>
    %521 = vector.shape_cast %520 : vector<1x32x32xf32> to vector<32x32xf32>
    %cst_268 = arith.constant dense<0.000000e+00> : vector<8x32xf32>
    %522 = tpu.matmul %519, %521, %cst_268 {dimension_numbers = #tpu.dot_dimension_numbers<[1], [0], [0], [1], [0, 0, 1, 1], [], []>} : vector<8x32xf32>, vector<32x32xf32>, vector<8x32xf32> -> vector<8x32xf32>
    %c0_269 = arith.constant 0 : index
    %c0_270 = arith.constant 0 : index
    %c0_271 = arith.constant 0 : index
    %523 = vector.load %arg9[%c0_269, %c0_270, %c0_271] : memref<2x1x32xf32, #tpu.memory_space<vmem>>, vector<1x1x32xf32>
    %524 = vector.shape_cast %523 : vector<1x1x32xf32> to vector<1x32xf32>
    %525 = vector.broadcast %524 : vector<1x32xf32> to vector<8x32xf32>
    %526 = arith.addf %522, %525 : vector<8x32xf32>
    %527 = arith.addf %433, %526 : vector<8x32xf32>
    %528 = arith.addf %527, %433 : vector<8x32xf32>
    %c0_272 = arith.constant 0 : index
    %c0_273 = arith.constant 0 : index
    %c0_274 = arith.constant 0 : index
    %529 = vector.load %arg10[%c0_272, %c0_273, %c0_274] : memref<2x1x32xf32, #tpu.memory_space<vmem>>, vector<1x1x32xf32>
    %530 = vector.shape_cast %529 : vector<1x1x32xf32> to vector<1x32xf32>
    %c0_275 = arith.constant 0 : index
    %c0_276 = arith.constant 0 : index
    %c0_277 = arith.constant 0 : index
    %531 = vector.load %arg11[%c0_275, %c0_276, %c0_277] : memref<2x1x32xf32, #tpu.memory_space<vmem>>, vector<1x1x32xf32>
    %532 = vector.shape_cast %531 : vector<1x1x32xf32> to vector<1x32xf32>
    %cst_278 = arith.constant dense<0.000000e+00> : vector<8xf32>
    %533 = vector.multi_reduction <add>, %528, %cst_278 [1] : vector<8x32xf32> to vector<8xf32>
    %534 = vector.shape_cast %533 : vector<8xf32> to vector<8x1xf32>
    %cst_279 = arith.constant 3.200000e+01 : f32
    %535 = vector.broadcast %cst_279 : f32 to vector<8x1xf32>
    %536 = arith.divf %534, %535 : vector<8x1xf32>
    %537 = vector.broadcast %536 : vector<8x1xf32> to vector<8x32xf32>
    %538 = arith.subf %528, %537 : vector<8x32xf32>
    %539 = arith.mulf %538, %538 : vector<8x32xf32>
    %cst_280 = arith.constant dense<0.000000e+00> : vector<8xf32>
    %540 = vector.multi_reduction <add>, %539, %cst_280 [1] : vector<8x32xf32> to vector<8xf32>
    %541 = vector.shape_cast %540 : vector<8xf32> to vector<8x1xf32>
    %cst_281 = arith.constant 3.200000e+01 : f32
    %542 = vector.broadcast %cst_281 : f32 to vector<8x1xf32>
    %543 = arith.divf %541, %542 : vector<8x1xf32>
    %544 = vector.broadcast %536 : vector<8x1xf32> to vector<8x32xf32>
    %545 = arith.subf %528, %544 : vector<8x32xf32>
    %cst_282 = arith.constant 9.99999997E-7 : f32
    %546 = vector.broadcast %cst_282 : f32 to vector<8x1xf32>
    %547 = arith.addf %543, %546 : vector<8x1xf32>
    %548 = math.sqrt %547 : vector<8x1xf32>
    %549 = vector.broadcast %548 : vector<8x1xf32> to vector<8x32xf32>
    %550 = arith.divf %545, %549 : vector<8x32xf32>
    %551 = vector.broadcast %530 : vector<1x32xf32> to vector<8x32xf32>
    %552 = arith.mulf %551, %550 : vector<8x32xf32>
    %553 = vector.broadcast %532 : vector<1x32xf32> to vector<8x32xf32>
    %554 = arith.addf %552, %553 : vector<8x32xf32>
    %c0_283 = arith.constant 0 : index
    %c0_284 = arith.constant 0 : index
    %c0_285 = arith.constant 0 : index
    %555 = vector.load %arg12[%c0_283, %c0_284, %c0_285] : memref<2x32x64xf32, #tpu.memory_space<vmem>>, vector<1x32x64xf32>
    %556 = vector.shape_cast %555 : vector<1x32x64xf32> to vector<32x64xf32>
    %cst_286 = arith.constant dense<0.000000e+00> : vector<8x64xf32>
    %557 = tpu.matmul %554, %556, %cst_286 {dimension_numbers = #tpu.dot_dimension_numbers<[1], [0], [0], [1], [0, 0, 1, 1], [], []>} : vector<8x32xf32>, vector<32x64xf32>, vector<8x64xf32> -> vector<8x64xf32>
    %c0_287 = arith.constant 0 : index
    %c0_288 = arith.constant 0 : index
    %c0_289 = arith.constant 0 : index
    %558 = vector.load %arg13[%c0_287, %c0_288, %c0_289] : memref<2x1x64xf32, #tpu.memory_space<vmem>>, vector<1x1x64xf32>
    %559 = vector.shape_cast %558 : vector<1x1x64xf32> to vector<1x64xf32>
    %560 = vector.broadcast %559 : vector<1x64xf32> to vector<8x64xf32>
    %561 = arith.addf %557, %560 : vector<8x64xf32>
    %cst_290 = arith.constant 0.000000e+00 : f32
    %562 = vector.broadcast %cst_290 : f32 to vector<8x64xf32>
    %563 = arith.maximumf %561, %562 : vector<8x64xf32>
    %c0_291 = arith.constant 0 : index
    %c0_292 = arith.constant 0 : index
    %c0_293 = arith.constant 0 : index
    %564 = vector.load %arg14[%c0_291, %c0_292, %c0_293] : memref<2x64x32xf32, #tpu.memory_space<vmem>>, vector<1x64x32xf32>
    %565 = vector.shape_cast %564 : vector<1x64x32xf32> to vector<64x32xf32>
    %cst_294 = arith.constant dense<0.000000e+00> : vector<8x32xf32>
    %566 = tpu.matmul %563, %565, %cst_294 {dimension_numbers = #tpu.dot_dimension_numbers<[1], [0], [0], [1], [0, 0, 1, 1], [], []>} : vector<8x64xf32>, vector<64x32xf32>, vector<8x32xf32> -> vector<8x32xf32>
    %c0_295 = arith.constant 0 : index
    %c0_296 = arith.constant 0 : index
    %c0_297 = arith.constant 0 : index
    %567 = vector.load %arg15[%c0_295, %c0_296, %c0_297] : memref<2x1x32xf32, #tpu.memory_space<vmem>>, vector<1x1x32xf32>
    %568 = vector.shape_cast %567 : vector<1x1x32xf32> to vector<1x32xf32>
    %569 = vector.broadcast %568 : vector<1x32xf32> to vector<8x32xf32>
    %570 = arith.addf %566, %569 : vector<8x32xf32>
    %571 = arith.addf %554, %570 : vector<8x32xf32>
    %572 = arith.addf %571, %554 : vector<8x32xf32>
    %c0_298 = arith.constant 0 : index
    %c0_299 = arith.constant 0 : index
    %c0_300 = arith.constant 0 : index
    %573 = vector.load %arg16[%c0_298, %c0_299, %c0_300] : memref<2x1x32xf32, #tpu.memory_space<vmem>>, vector<1x1x32xf32>
    %574 = vector.shape_cast %573 : vector<1x1x32xf32> to vector<1x32xf32>
    %c0_301 = arith.constant 0 : index
    %c0_302 = arith.constant 0 : index
    %c0_303 = arith.constant 0 : index
    %575 = vector.load %arg17[%c0_301, %c0_302, %c0_303] : memref<2x1x32xf32, #tpu.memory_space<vmem>>, vector<1x1x32xf32>
    %576 = vector.shape_cast %575 : vector<1x1x32xf32> to vector<1x32xf32>
    %cst_304 = arith.constant dense<0.000000e+00> : vector<8xf32>
    %577 = vector.multi_reduction <add>, %572, %cst_304 [1] : vector<8x32xf32> to vector<8xf32>
    %578 = vector.shape_cast %577 : vector<8xf32> to vector<8x1xf32>
    %cst_305 = arith.constant 3.200000e+01 : f32
    %579 = vector.broadcast %cst_305 : f32 to vector<8x1xf32>
    %580 = arith.divf %578, %579 : vector<8x1xf32>
    %581 = vector.broadcast %580 : vector<8x1xf32> to vector<8x32xf32>
    %582 = arith.subf %572, %581 : vector<8x32xf32>
    %583 = arith.mulf %582, %582 : vector<8x32xf32>
    %cst_306 = arith.constant dense<0.000000e+00> : vector<8xf32>
    %584 = vector.multi_reduction <add>, %583, %cst_306 [1] : vector<8x32xf32> to vector<8xf32>
    %585 = vector.shape_cast %584 : vector<8xf32> to vector<8x1xf32>
    %cst_307 = arith.constant 3.200000e+01 : f32
    %586 = vector.broadcast %cst_307 : f32 to vector<8x1xf32>
    %587 = arith.divf %585, %586 : vector<8x1xf32>
    %588 = vector.broadcast %580 : vector<8x1xf32> to vector<8x32xf32>
    %589 = arith.subf %572, %588 : vector<8x32xf32>
    %cst_308 = arith.constant 9.99999997E-7 : f32
    %590 = vector.broadcast %cst_308 : f32 to vector<8x1xf32>
    %591 = arith.addf %587, %590 : vector<8x1xf32>
    %592 = math.sqrt %591 : vector<8x1xf32>
    %593 = vector.broadcast %592 : vector<8x1xf32> to vector<8x32xf32>
    %594 = arith.divf %589, %593 : vector<8x32xf32>
    %595 = vector.broadcast %574 : vector<1x32xf32> to vector<8x32xf32>
    %596 = arith.mulf %595, %594 : vector<8x32xf32>
    %597 = vector.broadcast %576 : vector<1x32xf32> to vector<8x32xf32>
    %598 = arith.addf %596, %597 : vector<8x32xf32>
    %c1_309 = arith.constant 1 : index
    %c0_310 = arith.constant 0 : index
    %c0_311 = arith.constant 0 : index
    %599 = vector.load %arg2[%c1_309, %c0_310, %c0_311] : memref<2x32x32xf32, #tpu.memory_space<vmem>>, vector<1x32x32xf32>
    %600 = vector.shape_cast %599 : vector<1x32x32xf32> to vector<32x32xf32>
    %cst_312 = arith.constant dense<0.000000e+00> : vector<8x32xf32>
    %601 = tpu.matmul %598, %600, %cst_312 {dimension_numbers = #tpu.dot_dimension_numbers<[1], [0], [0], [1], [0, 0, 1, 1], [], []>} : vector<8x32xf32>, vector<32x32xf32>, vector<8x32xf32> -> vector<8x32xf32>
    %c1_313 = arith.constant 1 : index
    %c0_314 = arith.constant 0 : index
    %c0_315 = arith.constant 0 : index
    %602 = vector.load %arg3[%c1_313, %c0_314, %c0_315] : memref<2x1x32xf32, #tpu.memory_space<vmem>>, vector<1x1x32xf32>
    %603 = vector.shape_cast %602 : vector<1x1x32xf32> to vector<1x32xf32>
    %604 = vector.broadcast %603 : vector<1x32xf32> to vector<8x32xf32>
    %605 = arith.addf %601, %604 : vector<8x32xf32>
    %c1_316 = arith.constant 1 : index
    %c0_317 = arith.constant 0 : index
    %c0_318 = arith.constant 0 : index
    %606 = vector.load %arg4[%c1_316, %c0_317, %c0_318] : memref<2x32x32xf32, #tpu.memory_space<vmem>>, vector<1x32x32xf32>
    %607 = vector.shape_cast %606 : vector<1x32x32xf32> to vector<32x32xf32>
    %cst_319 = arith.constant dense<0.000000e+00> : vector<8x32xf32>
    %608 = tpu.matmul %598, %607, %cst_319 {dimension_numbers = #tpu.dot_dimension_numbers<[1], [0], [0], [1], [0, 0, 1, 1], [], []>} : vector<8x32xf32>, vector<32x32xf32>, vector<8x32xf32> -> vector<8x32xf32>
    %c1_320 = arith.constant 1 : index
    %c0_321 = arith.constant 0 : index
    %c0_322 = arith.constant 0 : index
    %609 = vector.load %arg5[%c1_320, %c0_321, %c0_322] : memref<2x1x32xf32, #tpu.memory_space<vmem>>, vector<1x1x32xf32>
    %610 = vector.shape_cast %609 : vector<1x1x32xf32> to vector<1x32xf32>
    %611 = vector.broadcast %610 : vector<1x32xf32> to vector<8x32xf32>
    %612 = arith.addf %608, %611 : vector<8x32xf32>
    %c1_323 = arith.constant 1 : index
    %c0_324 = arith.constant 0 : index
    %c0_325 = arith.constant 0 : index
    %613 = vector.load %arg6[%c1_323, %c0_324, %c0_325] : memref<2x32x32xf32, #tpu.memory_space<vmem>>, vector<1x32x32xf32>
    %614 = vector.shape_cast %613 : vector<1x32x32xf32> to vector<32x32xf32>
    %cst_326 = arith.constant dense<0.000000e+00> : vector<8x32xf32>
    %615 = tpu.matmul %598, %614, %cst_326 {dimension_numbers = #tpu.dot_dimension_numbers<[1], [0], [0], [1], [0, 0, 1, 1], [], []>} : vector<8x32xf32>, vector<32x32xf32>, vector<8x32xf32> -> vector<8x32xf32>
    %c1_327 = arith.constant 1 : index
    %c0_328 = arith.constant 0 : index
    %c0_329 = arith.constant 0 : index
    %616 = vector.load %arg7[%c1_327, %c0_328, %c0_329] : memref<2x1x32xf32, #tpu.memory_space<vmem>>, vector<1x1x32xf32>
    %617 = vector.shape_cast %616 : vector<1x1x32xf32> to vector<1x32xf32>
    %618 = vector.broadcast %617 : vector<1x32xf32> to vector<8x32xf32>
    %619 = arith.addf %615, %618 : vector<8x32xf32>
    %620 = vector.extract_strided_slice %605 {offsets = [0, 0], sizes = [8, 8], strides = [1, 1]} : vector<8x32xf32> to vector<8x8xf32>
    %621 = vector.extract_strided_slice %612 {offsets = [0, 0], sizes = [8, 8], strides = [1, 1]} : vector<8x32xf32> to vector<8x8xf32>
    %622 = vector.extract_strided_slice %619 {offsets = [0, 0], sizes = [8, 8], strides = [1, 1]} : vector<8x32xf32> to vector<8x8xf32>
    "tpu.trace_start"() <{level = 10 : i32, message = "qd,kd->qk"}> : () -> ()
    %cst_330 = arith.constant dense<0.000000e+00> : vector<8x8xf32>
    %623 = tpu.matmul %620, %621, %cst_330 {dimension_numbers = #tpu.dot_dimension_numbers<[1], [1], [0], [0], [0, 0, 1, 0], [], []>} : vector<8x8xf32>, vector<8x8xf32>, vector<8x8xf32> -> vector<8x8xf32>
    "tpu.trace_stop"() : () -> ()
    %cst_331 = arith.constant 0.353553385 : f32
    %624 = vector.broadcast %cst_331 : f32 to vector<8x8xf32>
    %625 = arith.mulf %623, %624 : vector<8x8xf32>
    %cst_332 = arith.constant dense<0xFF800000> : vector<8xf32>
    %626 = vector.multi_reduction <maximumf>, %625, %cst_332 [1] : vector<8x8xf32> to vector<8xf32>
    %627 = vector.shape_cast %626 : vector<8xf32> to vector<8x1xf32>
    %628 = vector.broadcast %627 : vector<8x1xf32> to vector<8x8xf32>
    %629 = arith.subf %625, %628 : vector<8x8xf32>
    %630 = math.exp %629 : vector<8x8xf32>
    %cst_333 = arith.constant dense<0.000000e+00> : vector<8xf32>
    %631 = vector.multi_reduction <add>, %630, %cst_333 [1] : vector<8x8xf32> to vector<8xf32>
    %632 = vector.shape_cast %631 : vector<8xf32> to vector<8x1xf32>
    %633 = vector.broadcast %632 : vector<8x1xf32> to vector<8x8xf32>
    %634 = arith.divf %630, %633 : vector<8x8xf32>
    %cst_334 = arith.constant dense<0.000000e+00> : vector<8x8xf32>
    %635 = tpu.matmul %634, %622, %cst_334 {dimension_numbers = #tpu.dot_dimension_numbers<[1], [0], [0], [1], [0, 0, 1, 1], [], []>} : vector<8x8xf32>, vector<8x8xf32>, vector<8x8xf32> -> vector<8x8xf32>
    %636 = vector.extract_strided_slice %605 {offsets = [0, 8], sizes = [8, 8], strides = [1, 1]} : vector<8x32xf32> to vector<8x8xf32>
    %637 = vector.extract_strided_slice %612 {offsets = [0, 8], sizes = [8, 8], strides = [1, 1]} : vector<8x32xf32> to vector<8x8xf32>
    %638 = vector.extract_strided_slice %619 {offsets = [0, 8], sizes = [8, 8], strides = [1, 1]} : vector<8x32xf32> to vector<8x8xf32>
    "tpu.trace_start"() <{level = 10 : i32, message = "qd,kd->qk"}> : () -> ()
    %cst_335 = arith.constant dense<0.000000e+00> : vector<8x8xf32>
    %639 = tpu.matmul %636, %637, %cst_335 {dimension_numbers = #tpu.dot_dimension_numbers<[1], [1], [0], [0], [0, 0, 1, 0], [], []>} : vector<8x8xf32>, vector<8x8xf32>, vector<8x8xf32> -> vector<8x8xf32>
    "tpu.trace_stop"() : () -> ()
    %cst_336 = arith.constant 0.353553385 : f32
    %640 = vector.broadcast %cst_336 : f32 to vector<8x8xf32>
    %641 = arith.mulf %639, %640 : vector<8x8xf32>
    %cst_337 = arith.constant dense<0xFF800000> : vector<8xf32>
    %642 = vector.multi_reduction <maximumf>, %641, %cst_337 [1] : vector<8x8xf32> to vector<8xf32>
    %643 = vector.shape_cast %642 : vector<8xf32> to vector<8x1xf32>
    %644 = vector.broadcast %643 : vector<8x1xf32> to vector<8x8xf32>
    %645 = arith.subf %641, %644 : vector<8x8xf32>
    %646 = math.exp %645 : vector<8x8xf32>
    %cst_338 = arith.constant dense<0.000000e+00> : vector<8xf32>
    %647 = vector.multi_reduction <add>, %646, %cst_338 [1] : vector<8x8xf32> to vector<8xf32>
    %648 = vector.shape_cast %647 : vector<8xf32> to vector<8x1xf32>
    %649 = vector.broadcast %648 : vector<8x1xf32> to vector<8x8xf32>
    %650 = arith.divf %646, %649 : vector<8x8xf32>
    %cst_339 = arith.constant dense<0.000000e+00> : vector<8x8xf32>
    %651 = tpu.matmul %650, %638, %cst_339 {dimension_numbers = #tpu.dot_dimension_numbers<[1], [0], [0], [1], [0, 0, 1, 1], [], []>} : vector<8x8xf32>, vector<8x8xf32>, vector<8x8xf32> -> vector<8x8xf32>
    %652 = vector.extract_strided_slice %605 {offsets = [0, 16], sizes = [8, 8], strides = [1, 1]} : vector<8x32xf32> to vector<8x8xf32>
    %653 = vector.extract_strided_slice %612 {offsets = [0, 16], sizes = [8, 8], strides = [1, 1]} : vector<8x32xf32> to vector<8x8xf32>
    %654 = vector.extract_strided_slice %619 {offsets = [0, 16], sizes = [8, 8], strides = [1, 1]} : vector<8x32xf32> to vector<8x8xf32>
    "tpu.trace_start"() <{level = 10 : i32, message = "qd,kd->qk"}> : () -> ()
    %cst_340 = arith.constant dense<0.000000e+00> : vector<8x8xf32>
    %655 = tpu.matmul %652, %653, %cst_340 {dimension_numbers = #tpu.dot_dimension_numbers<[1], [1], [0], [0], [0, 0, 1, 0], [], []>} : vector<8x8xf32>, vector<8x8xf32>, vector<8x8xf32> -> vector<8x8xf32>
    "tpu.trace_stop"() : () -> ()
    %cst_341 = arith.constant 0.353553385 : f32
    %656 = vector.broadcast %cst_341 : f32 to vector<8x8xf32>
    %657 = arith.mulf %655, %656 : vector<8x8xf32>
    %cst_342 = arith.constant dense<0xFF800000> : vector<8xf32>
    %658 = vector.multi_reduction <maximumf>, %657, %cst_342 [1] : vector<8x8xf32> to vector<8xf32>
    %659 = vector.shape_cast %658 : vector<8xf32> to vector<8x1xf32>
    %660 = vector.broadcast %659 : vector<8x1xf32> to vector<8x8xf32>
    %661 = arith.subf %657, %660 : vector<8x8xf32>
    %662 = math.exp %661 : vector<8x8xf32>
    %cst_343 = arith.constant dense<0.000000e+00> : vector<8xf32>
    %663 = vector.multi_reduction <add>, %662, %cst_343 [1] : vector<8x8xf32> to vector<8xf32>
    %664 = vector.shape_cast %663 : vector<8xf32> to vector<8x1xf32>
    %665 = vector.broadcast %664 : vector<8x1xf32> to vector<8x8xf32>
    %666 = arith.divf %662, %665 : vector<8x8xf32>
    %cst_344 = arith.constant dense<0.000000e+00> : vector<8x8xf32>
    %667 = tpu.matmul %666, %654, %cst_344 {dimension_numbers = #tpu.dot_dimension_numbers<[1], [0], [0], [1], [0, 0, 1, 1], [], []>} : vector<8x8xf32>, vector<8x8xf32>, vector<8x8xf32> -> vector<8x8xf32>
    %668 = vector.extract_strided_slice %605 {offsets = [0, 24], sizes = [8, 8], strides = [1, 1]} : vector<8x32xf32> to vector<8x8xf32>
    %669 = vector.extract_strided_slice %612 {offsets = [0, 24], sizes = [8, 8], strides = [1, 1]} : vector<8x32xf32> to vector<8x8xf32>
    %670 = vector.extract_strided_slice %619 {offsets = [0, 24], sizes = [8, 8], strides = [1, 1]} : vector<8x32xf32> to vector<8x8xf32>
    "tpu.trace_start"() <{level = 10 : i32, message = "qd,kd->qk"}> : () -> ()
    %cst_345 = arith.constant dense<0.000000e+00> : vector<8x8xf32>
    %671 = tpu.matmul %668, %669, %cst_345 {dimension_numbers = #tpu.dot_dimension_numbers<[1], [1], [0], [0], [0, 0, 1, 0], [], []>} : vector<8x8xf32>, vector<8x8xf32>, vector<8x8xf32> -> vector<8x8xf32>
    "tpu.trace_stop"() : () -> ()
    %cst_346 = arith.constant 0.353553385 : f32
    %672 = vector.broadcast %cst_346 : f32 to vector<8x8xf32>
    %673 = arith.mulf %671, %672 : vector<8x8xf32>
    %cst_347 = arith.constant dense<0xFF800000> : vector<8xf32>
    %674 = vector.multi_reduction <maximumf>, %673, %cst_347 [1] : vector<8x8xf32> to vector<8xf32>
    %675 = vector.shape_cast %674 : vector<8xf32> to vector<8x1xf32>
    %676 = vector.broadcast %675 : vector<8x1xf32> to vector<8x8xf32>
    %677 = arith.subf %673, %676 : vector<8x8xf32>
    %678 = math.exp %677 : vector<8x8xf32>
    %cst_348 = arith.constant dense<0.000000e+00> : vector<8xf32>
    %679 = vector.multi_reduction <add>, %678, %cst_348 [1] : vector<8x8xf32> to vector<8xf32>
    %680 = vector.shape_cast %679 : vector<8xf32> to vector<8x1xf32>
    %681 = vector.broadcast %680 : vector<8x1xf32> to vector<8x8xf32>
    %682 = arith.divf %678, %681 : vector<8x8xf32>
    %cst_349 = arith.constant dense<0.000000e+00> : vector<8x8xf32>
    %683 = tpu.matmul %682, %670, %cst_349 {dimension_numbers = #tpu.dot_dimension_numbers<[1], [0], [0], [1], [0, 0, 1, 1], [], []>} : vector<8x8xf32>, vector<8x8xf32>, vector<8x8xf32> -> vector<8x8xf32>
    %684 = tpu.concatenate %635, %651, %667, %683 in 1 : vector<8x8xf32>, vector<8x8xf32>, vector<8x8xf32>, vector<8x8xf32> -> vector<8x32xf32>
    %c1_350 = arith.constant 1 : index
    %c0_351 = arith.constant 0 : index
    %c0_352 = arith.constant 0 : index
    %685 = vector.load %arg8[%c1_350, %c0_351, %c0_352] : memref<2x32x32xf32, #tpu.memory_space<vmem>>, vector<1x32x32xf32>
    %686 = vector.shape_cast %685 : vector<1x32x32xf32> to vector<32x32xf32>
    %cst_353 = arith.constant dense<0.000000e+00> : vector<8x32xf32>
    %687 = tpu.matmul %684, %686, %cst_353 {dimension_numbers = #tpu.dot_dimension_numbers<[1], [0], [0], [1], [0, 0, 1, 1], [], []>} : vector<8x32xf32>, vector<32x32xf32>, vector<8x32xf32> -> vector<8x32xf32>
    %c1_354 = arith.constant 1 : index
    %c0_355 = arith.constant 0 : index
    %c0_356 = arith.constant 0 : index
    %688 = vector.load %arg9[%c1_354, %c0_355, %c0_356] : memref<2x1x32xf32, #tpu.memory_space<vmem>>, vector<1x1x32xf32>
    %689 = vector.shape_cast %688 : vector<1x1x32xf32> to vector<1x32xf32>
    %690 = vector.broadcast %689 : vector<1x32xf32> to vector<8x32xf32>
    %691 = arith.addf %687, %690 : vector<8x32xf32>
    %692 = arith.addf %598, %691 : vector<8x32xf32>
    %693 = arith.addf %692, %598 : vector<8x32xf32>
    %c1_357 = arith.constant 1 : index
    %c0_358 = arith.constant 0 : index
    %c0_359 = arith.constant 0 : index
    %694 = vector.load %arg10[%c1_357, %c0_358, %c0_359] : memref<2x1x32xf32, #tpu.memory_space<vmem>>, vector<1x1x32xf32>
    %695 = vector.shape_cast %694 : vector<1x1x32xf32> to vector<1x32xf32>
    %c1_360 = arith.constant 1 : index
    %c0_361 = arith.constant 0 : index
    %c0_362 = arith.constant 0 : index
    %696 = vector.load %arg11[%c1_360, %c0_361, %c0_362] : memref<2x1x32xf32, #tpu.memory_space<vmem>>, vector<1x1x32xf32>
    %697 = vector.shape_cast %696 : vector<1x1x32xf32> to vector<1x32xf32>
    %cst_363 = arith.constant dense<0.000000e+00> : vector<8xf32>
    %698 = vector.multi_reduction <add>, %693, %cst_363 [1] : vector<8x32xf32> to vector<8xf32>
    %699 = vector.shape_cast %698 : vector<8xf32> to vector<8x1xf32>
    %cst_364 = arith.constant 3.200000e+01 : f32
    %700 = vector.broadcast %cst_364 : f32 to vector<8x1xf32>
    %701 = arith.divf %699, %700 : vector<8x1xf32>
    %702 = vector.broadcast %701 : vector<8x1xf32> to vector<8x32xf32>
    %703 = arith.subf %693, %702 : vector<8x32xf32>
    %704 = arith.mulf %703, %703 : vector<8x32xf32>
    %cst_365 = arith.constant dense<0.000000e+00> : vector<8xf32>
    %705 = vector.multi_reduction <add>, %704, %cst_365 [1] : vector<8x32xf32> to vector<8xf32>
    %706 = vector.shape_cast %705 : vector<8xf32> to vector<8x1xf32>
    %cst_366 = arith.constant 3.200000e+01 : f32
    %707 = vector.broadcast %cst_366 : f32 to vector<8x1xf32>
    %708 = arith.divf %706, %707 : vector<8x1xf32>
    %709 = vector.broadcast %701 : vector<8x1xf32> to vector<8x32xf32>
    %710 = arith.subf %693, %709 : vector<8x32xf32>
    %cst_367 = arith.constant 9.99999997E-7 : f32
    %711 = vector.broadcast %cst_367 : f32 to vector<8x1xf32>
    %712 = arith.addf %708, %711 : vector<8x1xf32>
    %713 = math.sqrt %712 : vector<8x1xf32>
    %714 = vector.broadcast %713 : vector<8x1xf32> to vector<8x32xf32>
    %715 = arith.divf %710, %714 : vector<8x32xf32>
    %716 = vector.broadcast %695 : vector<1x32xf32> to vector<8x32xf32>
    %717 = arith.mulf %716, %715 : vector<8x32xf32>
    %718 = vector.broadcast %697 : vector<1x32xf32> to vector<8x32xf32>
    %719 = arith.addf %717, %718 : vector<8x32xf32>
    %c1_368 = arith.constant 1 : index
    %c0_369 = arith.constant 0 : index
    %c0_370 = arith.constant 0 : index
    %720 = vector.load %arg12[%c1_368, %c0_369, %c0_370] : memref<2x32x64xf32, #tpu.memory_space<vmem>>, vector<1x32x64xf32>
    %721 = vector.shape_cast %720 : vector<1x32x64xf32> to vector<32x64xf32>
    %cst_371 = arith.constant dense<0.000000e+00> : vector<8x64xf32>
    %722 = tpu.matmul %719, %721, %cst_371 {dimension_numbers = #tpu.dot_dimension_numbers<[1], [0], [0], [1], [0, 0, 1, 1], [], []>} : vector<8x32xf32>, vector<32x64xf32>, vector<8x64xf32> -> vector<8x64xf32>
    %c1_372 = arith.constant 1 : index
    %c0_373 = arith.constant 0 : index
    %c0_374 = arith.constant 0 : index
    %723 = vector.load %arg13[%c1_372, %c0_373, %c0_374] : memref<2x1x64xf32, #tpu.memory_space<vmem>>, vector<1x1x64xf32>
    %724 = vector.shape_cast %723 : vector<1x1x64xf32> to vector<1x64xf32>
    %725 = vector.broadcast %724 : vector<1x64xf32> to vector<8x64xf32>
    %726 = arith.addf %722, %725 : vector<8x64xf32>
    %cst_375 = arith.constant 0.000000e+00 : f32
    %727 = vector.broadcast %cst_375 : f32 to vector<8x64xf32>
    %728 = arith.maximumf %726, %727 : vector<8x64xf32>
    %c1_376 = arith.constant 1 : index
    %c0_377 = arith.constant 0 : index
    %c0_378 = arith.constant 0 : index
    %729 = vector.load %arg14[%c1_376, %c0_377, %c0_378] : memref<2x64x32xf32, #tpu.memory_space<vmem>>, vector<1x64x32xf32>
    %730 = vector.shape_cast %729 : vector<1x64x32xf32> to vector<64x32xf32>
    %cst_379 = arith.constant dense<0.000000e+00> : vector<8x32xf32>
    %731 = tpu.matmul %728, %730, %cst_379 {dimension_numbers = #tpu.dot_dimension_numbers<[1], [0], [0], [1], [0, 0, 1, 1], [], []>} : vector<8x64xf32>, vector<64x32xf32>, vector<8x32xf32> -> vector<8x32xf32>
    %c1_380 = arith.constant 1 : index
    %c0_381 = arith.constant 0 : index
    %c0_382 = arith.constant 0 : index
    %732 = vector.load %arg15[%c1_380, %c0_381, %c0_382] : memref<2x1x32xf32, #tpu.memory_space<vmem>>, vector<1x1x32xf32>
    %733 = vector.shape_cast %732 : vector<1x1x32xf32> to vector<1x32xf32>
    %734 = vector.broadcast %733 : vector<1x32xf32> to vector<8x32xf32>
    %735 = arith.addf %731, %734 : vector<8x32xf32>
    %736 = arith.addf %719, %735 : vector<8x32xf32>
    %737 = arith.addf %736, %719 : vector<8x32xf32>
    %c1_383 = arith.constant 1 : index
    %c0_384 = arith.constant 0 : index
    %c0_385 = arith.constant 0 : index
    %738 = vector.load %arg16[%c1_383, %c0_384, %c0_385] : memref<2x1x32xf32, #tpu.memory_space<vmem>>, vector<1x1x32xf32>
    %739 = vector.shape_cast %738 : vector<1x1x32xf32> to vector<1x32xf32>
    %c1_386 = arith.constant 1 : index
    %c0_387 = arith.constant 0 : index
    %c0_388 = arith.constant 0 : index
    %740 = vector.load %arg17[%c1_386, %c0_387, %c0_388] : memref<2x1x32xf32, #tpu.memory_space<vmem>>, vector<1x1x32xf32>
    %741 = vector.shape_cast %740 : vector<1x1x32xf32> to vector<1x32xf32>
    %cst_389 = arith.constant dense<0.000000e+00> : vector<8xf32>
    %742 = vector.multi_reduction <add>, %737, %cst_389 [1] : vector<8x32xf32> to vector<8xf32>
    %743 = vector.shape_cast %742 : vector<8xf32> to vector<8x1xf32>
    %cst_390 = arith.constant 3.200000e+01 : f32
    %744 = vector.broadcast %cst_390 : f32 to vector<8x1xf32>
    %745 = arith.divf %743, %744 : vector<8x1xf32>
    %746 = vector.broadcast %745 : vector<8x1xf32> to vector<8x32xf32>
    %747 = arith.subf %737, %746 : vector<8x32xf32>
    %748 = arith.mulf %747, %747 : vector<8x32xf32>
    %cst_391 = arith.constant dense<0.000000e+00> : vector<8xf32>
    %749 = vector.multi_reduction <add>, %748, %cst_391 [1] : vector<8x32xf32> to vector<8xf32>
    %750 = vector.shape_cast %749 : vector<8xf32> to vector<8x1xf32>
    %cst_392 = arith.constant 3.200000e+01 : f32
    %751 = vector.broadcast %cst_392 : f32 to vector<8x1xf32>
    %752 = arith.divf %750, %751 : vector<8x1xf32>
    %753 = vector.broadcast %745 : vector<8x1xf32> to vector<8x32xf32>
    %754 = arith.subf %737, %753 : vector<8x32xf32>
    %cst_393 = arith.constant 9.99999997E-7 : f32
    %755 = vector.broadcast %cst_393 : f32 to vector<8x1xf32>
    %756 = arith.addf %752, %755 : vector<8x1xf32>
    %757 = math.sqrt %756 : vector<8x1xf32>
    %758 = vector.broadcast %757 : vector<8x1xf32> to vector<8x32xf32>
    %759 = arith.divf %754, %758 : vector<8x32xf32>
    %760 = vector.broadcast %739 : vector<1x32xf32> to vector<8x32xf32>
    %761 = arith.mulf %760, %759 : vector<8x32xf32>
    %762 = vector.broadcast %741 : vector<1x32xf32> to vector<8x32xf32>
    %763 = arith.addf %761, %762 : vector<8x32xf32>
    %c8 = arith.constant 8 : index
    %c0_394 = arith.constant 0 : index
    %764 = vector.load %arg18[%c8, %c0_394] : memref<16x32xf32, #tpu.memory_space<vmem>>, vector<8x32xf32>
    tpu.vector_store %arg18[%c8, %c0_394], %763 {strides = array<i32>} : memref<16x32xf32, #tpu.memory_space<vmem>>, vector<8x32xf32>,
    return
  }
}

</mosaic_0001>

<llo_original>
// kernel: tpu_custom_call.1
$region0: #{tpu_custom_call.1}
  #allocation0 [shape = 'u32[]', space=smem, size = 0x4, offset = 0x4, fixed_abs, tag = 'smem constant byte address 0x4 - core index']
  #allocation1 [shape = 'u32[72,128]{1,0:T(1,128)}', space=vmem, size = 0x9000, scoped, tag = 'internal scratch']
  %s0 = inlined_call_operand.vmem [shape: s32[2,8], index: 0, kind: input, shape index: {}]
  %s1 = inlined_call_operand.vmem [shape: f32[64,32], index: 1, kind: input, shape index: {}]
  %s2 = inlined_call_operand.vmem [shape: f32[2,32,32], index: 2, kind: input, shape index: {}]
  %s3 = inlined_call_operand.vmem [shape: f32[2,1,32], index: 3, kind: input, shape index: {}]
  %s4 = inlined_call_operand.vmem [shape: f32[2,32,32], index: 4, kind: input, shape index: {}]
  %s5 = inlined_call_operand.vmem [shape: f32[2,1,32], index: 5, kind: input, shape index: {}]
  %s6 = inlined_call_operand.vmem [shape: f32[2,32,32], index: 6, kind: input, shape index: {}]
  %s7 = inlined_call_operand.vmem [shape: f32[2,1,32], index: 7, kind: input, shape index: {}]
  %s8 = inlined_call_operand.hbm [shape: f32[2,32,32], index: 8, kind: input, shape index: {}]
  %s9 = inlined_call_operand.vmem [shape: f32[2,1,32], index: 9, kind: input, shape index: {}]
  %s10 = inlined_call_operand.vmem [shape: f32[2,1,32], index: 10, kind: input, shape index: {}]
  %s11 = inlined_call_operand.vmem [shape: f32[2,1,32], index: 11, kind: input, shape index: {}]
  %s12 = inlined_call_operand.hbm [shape: f32[2,32,64], index: 12, kind: input, shape index: {}]
  %s13 = inlined_call_operand.vmem [shape: f32[2,1,64], index: 13, kind: input, shape index: {}]
  %s14 = inlined_call_operand.vmem [shape: f32[2,64,32], index: 14, kind: input, shape index: {}]
  %s15 = inlined_call_operand.vmem [shape: f32[2,1,32], index: 15, kind: input, shape index: {}]
  %s16 = inlined_call_operand.vmem [shape: f32[2,1,32], index: 16, kind: input, shape index: {}]
  %s17 = inlined_call_operand.vmem [shape: f32[2,1,32], index: 17, kind: input, shape index: {}]
  %s18 = inlined_call_operand.hbm [shape: f32[16,32], index: 18, kind: output, shape index: {}]
  %s19 = sld [smem:[#allocation0]]
  $region94: #{tpu_custom_call.1} parent=0
    _
  %s21 = ssub.s32 1, %s19
  %s22 = scalar_select 0, %s21, %s19
  $region1: #{tpu_custom_call.1} parent=0
    #allocation2 [shape = 'u8[1024]{0}', space=smem, size = 0x400, scoped, tag = 'input window, operand 0, single buffered']
    #allocation3 [shape = 's32[1]{0}', space=sflag, size = 0x4, scoped, tag = 'scoped memory for tpu_custom_call.1']
    #allocation4 [shape = 's32[1]{0}', space=sflag, size = 0x4, scoped, tag = 'scoped memory for tpu_custom_call.1']
    #allocation5 [shape = 's32[1]{0}', space=sflag, size = 0x4, scoped, tag = 'scoped memory for tpu_custom_call.1']
    #allocation6 [shape = 'u8[32768]{0}', space=vmem, size = 0x8000, scoped, tag = 'input window, operand 8, single buffered']
    #allocation7 [shape = 'u8[32768]{0}', space=vmem, size = 0x8000, scoped, tag = 'input window, operand 12, single buffered']
    #allocation8 [shape = 's32[1]{0}', space=sflag, size = 0x4, scoped, tag = 'scoped memory for tpu_custom_call.1']
    #allocation9 [shape = 'u8[8192]{0}', space=vmem, size = 0x2000, scoped, tag = 'output window, operand 0, single buffered']
    %23 = vsyncpa [#allocation5], 0
    %24 = vsyncpa [#allocation3], 0
    %25 = vsyncpa [#allocation8], 0
    %26 = vsyncpa [#allocation4], 0
    // Predicated region
    $region2: #{tpu_custom_call.1} parent=1 // pred_check
      _
    $region3: #{tpu_custom_call.1} parent=1 // pred_check_branch
      %28 = sbr.rel (0) target = $region5
    $region4: #{tpu_custom_call.1} parent=1 // pred_region
      %30 = vsyncadd [#allocation5], 0
      %s32 = sshll.u32 %s0, 4
      %s33 = int_to_ptr.vmem [resolvable:$true] %s32
      %35 = dma.vmem_to_smem %s33, 32, [#allocation2], [#allocation5]
    $region5: #{tpu_custom_call.1} parent=1 // pred_fallthru
      _
    // Predicated region
    $region6: #{tpu_custom_call.1} parent=1 // pred_check
      _
    $region7: #{tpu_custom_call.1} parent=1 // pred_check_branch
      %37 = sbr.rel (0) target = $region9
    $region8: #{tpu_custom_call.1} parent=1 // pred_region
      _
    $region9: #{tpu_custom_call.1} parent=1 // pred_fallthru
      _
    // Predicated region
    $region10: #{tpu_custom_call.1} parent=1 // pred_check
      _
    $region11: #{tpu_custom_call.1} parent=1 // pred_check_branch
      %39 = sbr.rel (0) target = $region13
    $region12: #{tpu_custom_call.1} parent=1 // pred_region
      _
    $region13: #{tpu_custom_call.1} parent=1 // pred_fallthru
      _
    // Predicated region
    $region14: #{tpu_custom_call.1} parent=1 // pred_check
      _
    $region15: #{tpu_custom_call.1} parent=1 // pred_check_branch
      %41 = sbr.rel (0) target = $region17
    $region16: #{tpu_custom_call.1} parent=1 // pred_region
      _
    $region17: #{tpu_custom_call.1} parent=1 // pred_fallthru
      _
    // Predicated region
    $region18: #{tpu_custom_call.1} parent=1 // pred_check
      _
    $region19: #{tpu_custom_call.1} parent=1 // pred_check_branch
      %43 = sbr.rel (0) target = $region21
    $region20: #{tpu_custom_call.1} parent=1 // pred_region
      _
    $region21: #{tpu_custom_call.1} parent=1 // pred_fallthru
      _
    // Predicated region
    $region22: #{tpu_custom_call.1} parent=1 // pred_check
      _
    $region23: #{tpu_custom_call.1} parent=1 // pred_check_branch
      %45 = sbr.rel (0) target = $region25
    $region24: #{tpu_custom_call.1} parent=1 // pred_region
      _
    $region25: #{tpu_custom_call.1} parent=1 // pred_fallthru
      _
    // Predicated region
    $region26: #{tpu_custom_call.1} parent=1 // pred_check
      _
    $region27: #{tpu_custom_call.1} parent=1 // pred_check_branch
      %47 = sbr.rel (0) target = $region29
    $region28: #{tpu_custom_call.1} parent=1 // pred_region
      _
    $region29: #{tpu_custom_call.1} parent=1 // pred_fallthru
      _
    // Predicated region
    $region30: #{tpu_custom_call.1} parent=1 // pred_check
      _
    $region31: #{tpu_custom_call.1} parent=1 // pred_check_branch
      %49 = sbr.rel (0) target = $region33
    $region32: #{tpu_custom_call.1} parent=1 // pred_region
      _
    $region33: #{tpu_custom_call.1} parent=1 // pred_fallthru
      _
    // Predicated region
    $region34: #{tpu_custom_call.1} parent=1 // pred_check
      _
    $region35: #{tpu_custom_call.1} parent=1 // pred_check_branch
      %51 = sbr.rel (0) target = $region37
    $region36: #{tpu_custom_call.1} parent=1 // pred_region
      %53 = vsyncadd [#allocation3], 0
      %s54 = sshll.u32 %s8, 4
      %s55 = int_to_ptr.hbm [resolvable:$true] %s54
      %s56 = sshll.u32 [#allocation6], 4
      %s57 = int_to_ptr.vmem [resolvable:$true] %s56
      %62 = dma.hbm_to_vmem [thread:$0]  %s55, 1024, %s57, [#allocation3], 128, 128, 8
    $region37: #{tpu_custom_call.1} parent=1 // pred_fallthru
      _
    // Predicated region
    $region38: #{tpu_custom_call.1} parent=1 // pred_check
      _
    $region39: #{tpu_custom_call.1} parent=1 // pred_check_branch
      %64 = sbr.rel (0) target = $region41
    $region40: #{tpu_custom_call.1} parent=1 // pred_region
      _
    $region41: #{tpu_custom_call.1} parent=1 // pred_fallthru
      _
    // Predicated region
    $region42: #{tpu_custom_call.1} parent=1 // pred_check
      _
    $region43: #{tpu_custom_call.1} parent=1 // pred_check_branch
      %66 = sbr.rel (0) target = $region45
    $region44: #{tpu_custom_call.1} parent=1 // pred_region
      _
    $region45: #{tpu_custom_call.1} parent=1 // pred_fallthru
      _
    // Predicated region
    $region46: #{tpu_custom_call.1} parent=1 // pred_check
      _
    $region47: #{tpu_custom_call.1} parent=1 // pred_check_branch
      %68 = sbr.rel (0) target = $region49
    $region48: #{tpu_custom_call.1} parent=1 // pred_region
      _
    $region49: #{tpu_custom_call.1} parent=1 // pred_fallthru
      _
    // Predicated region
    $region50: #{tpu_custom_call.1} parent=1 // pred_check
      _
    $region51: #{tpu_custom_call.1} parent=1 // pred_check_branch
      %70 = sbr.rel (0) target = $region53
    $region52: #{tpu_custom_call.1} parent=1 // pred_region
      %72 = vsyncadd [#allocation8], 0
      %s73 = sshll.u32 %s12, 4
      %s74 = int_to_ptr.hbm [resolvable:$true] %s73
      %s75 = sshll.u32 [#allocation7], 4
      %s76 = int_to_ptr.vmem [resolvable:$true] %s75
      %81 = dma.hbm_to_vmem [thread:$0]  %s74, 1024, %s76, [#allocation8], 128, 128, 8
    $region53: #{tpu_custom_call.1} parent=1 // pred_fallthru
      _
    // Predicated region
    $region54: #{tpu_custom_call.1} parent=1 // pred_check
      _
    $region55: #{tpu_custom_call.1} parent=1 // pred_check_branch
      %83 = sbr.rel (0) target = $region57
    $region56: #{tpu_custom_call.1} parent=1 // pred_region
      _
    $region57: #{tpu_custom_call.1} parent=1 // pred_fallthru
      _
    // Predicated region
    $region58: #{tpu_custom_call.1} parent=1 // pred_check
      _
    $region59: #{tpu_custom_call.1} parent=1 // pred_check_branch
      %85 = sbr.rel (0) target = $region61
    $region60: #{tpu_custom_call.1} parent=1 // pred_region
      _
    $region61: #{tpu_custom_call.1} parent=1 // pred_fallthru
      _
    // Predicated region
    $region62: #{tpu_custom_call.1} parent=1 // pred_check
      _
    $region63: #{tpu_custom_call.1} parent=1 // pred_check_branch
      %87 = sbr.rel (0) target = $region65
    $region64: #{tpu_custom_call.1} parent=1 // pred_region
      _
    $region65: #{tpu_custom_call.1} parent=1 // pred_fallthru
      _
    // Predicated region
    $region66: #{tpu_custom_call.1} parent=1 // pred_check
      _
    $region67: #{tpu_custom_call.1} parent=1 // pred_check_branch
      %89 = sbr.rel (0) target = $region69
    $region68: #{tpu_custom_call.1} parent=1 // pred_region
      _
    $region69: #{tpu_custom_call.1} parent=1 // pred_fallthru
      _
    // Predicated region
    $region70: #{tpu_custom_call.1} parent=1 // pred_check
      _
    $region71: #{tpu_custom_call.1} parent=1 // pred_check_branch
      %91 = sbr.rel (0) target = $region73
    $region72: #{tpu_custom_call.1} parent=1 // pred_region
      _
    $region73: #{tpu_custom_call.1} parent=1 // pred_fallthru
      _
    // Predicated region
    $region74: #{tpu_custom_call.1} parent=1 // pred_check
      _
    $region75: #{tpu_custom_call.1} parent=1 // pred_check_branch
      %93 = sbr.rel (0) target = $region77
    $region76: #{tpu_custom_call.1} parent=1 // pred_region
      %95 = dma.done [#allocation5], 32
    $region77: #{tpu_custom_call.1} parent=1 // pred_fallthru
      _
    // Predicated region
    $region78: #{tpu_custom_call.1} parent=1 // pred_check
      _
    $region79: #{tpu_custom_call.1} parent=1 // pred_check_branch
      %97 = sbr.rel (0) target = $region81
    $region80: #{tpu_custom_call.1} parent=1 // pred_region
      %99 = dma.done [#allocation3], 1024
    $region81: #{tpu_custom_call.1} parent=1 // pred_fallthru
      _
    // Predicated region
    $region82: #{tpu_custom_call.1} parent=1 // pred_check
      _
    $region83: #{tpu_custom_call.1} parent=1 // pred_check_branch
      %101 = sbr.rel (0) target = $region85
    $region84: #{tpu_custom_call.1} parent=1 // pred_region
      %103 = dma.done [#allocation8], 1024
    $region85: #{tpu_custom_call.1} parent=1 // pred_fallthru
      _
    %104 = sfence
    %v105 = vlaneseq
    %v106 = vshrl.u32 %v105, 7
    %v107 = vcvt.s32.f32 %v106
    %v108 = vlaneseq
    %v109 = vand.u32 %v108, 127
    %vm110 = vcmp.lt.s32.totalorder %v109, 0
    %v111 = vsub.s32 0, %v109
    %v112 = vsel %vm110, %v111, %v109
    %v113 = vshrl.u32 %v112, 1
    %v114 = vand.u32 %v112, 1
    %v115 = vsub.s32 0, %v114
    %v116 = vsel %vm110, %v115, %v114
    %vm117 = vcmp.ne.s32.totalorder %v116, 0
    %vm118 = vcmp.lt.s32.totalorder %v116, 0
    %vm119 = vmand %vm118, %vm117
    %v120 = vadd.s32 %v116, 2
    %v121 = vsel %vm119, %v120, %v116
    %v122 = vsub.s32 %v109, %v121
    %v123 = vcvt.s32.f32 %v122
    %v124 = vrcp.pop 32.0
    %v125 = vmul.f32 32.0, %v124
    %v126 = vsub.f32 1.0, %v125
    %v127 = vmul.f32 %v124, %v126
    %v128 = vadd.f32 %v124, %v127
    %vm129 = vweird.f32 %v124
    %v130 = vsel %vm129, %v124, %v128
    %v131 = vmul.f32 %v123, %v130
    %v132 = vsub.f32 0.0, %v131
    %v133 = vmul.f32 %v132, 9.2103405
    %v134 = vmul.f32 %v133, 1.442695
    %v135 = vpow.pop %v134
    %v136 = vmul.f32 %v107, %v135
    %vm137 = vcmp.eq.s32.totalorder %v121, 0
    %v138 = vand.u32 2147483647, %v136
    %vm139 = vcmp.le.f32.partialorder %v138, 0.7853982
    %vm140 = vcmp.lt.s32.totalorder %v136, 0
    %v141 = vand.u32 %v136, 2139095040
    %v142 = vshrl.u32 %v141, 23
    %v143 = vsub.s32 %v142, 127
    %v144 = vand.u32 2147483647, %v136
    %v145 = vand.u32 %v144, 8388607
    %v146 = vor.u32 %v145, 8388608
    %v147 = vsub.s32 0, %v146
    %v148 = vadd.s32 %v143, 1
    %vm149 = vcmp.gt.s32.totalorder %v148, 0
    %v150 = vsel %vm149, %v148, 0
    %v151 = vshrl.u32 %v150, 5
    %v152 = vand.u32 %v150, 31
    %v153 = vsub.s32 32, %v152
    %v154 = vshrl.u32 683565275, %v153
    %v155 = vshll.u32 683565275, %v152
    %v156 = vshrl.u32 2475754826, %v153
    %v157 = vor.u32 %v155, %v156
    %v158 = vshll.u32 2475754826, %v152
    %v159 = vshrl.u32 2131351028, %v153
    %v160 = vor.u32 %v158, %v159
    %v161 = vshll.u32 2131351028, %v152
    %v162 = vshrl.u32 2102212464, %v153
    %v163 = vor.u32 %v161, %v162
    %v164 = vshll.u32 2102212464, %v152
    %v165 = vshrl.u32 920167782, %v153
    %v166 = vor.u32 %v164, %v165
    %v167 = vshll.u32 920167782, %v152
    %v168 = vshrl.u32 1326507024, %v153
    %v169 = vor.u32 %v167, %v168
    %vm170 = vcmp.lt.s32.totalorder %v151, 1
    %vm171 = vcmp.lt.s32.totalorder %v151, 2
    %vm172 = vcmp.lt.s32.totalorder %v151, 3
    %vm173 = vcmp.lt.s32.totalorder %v151, 4
    %v174 = vsel %vm170, %v154, %v157
    %v175 = vsel %vm173, %v163, 2102212464
    %v176 = vsel %vm172, %v160, %v175
    %v177 = vsel %vm171, %v174, %v176
    %v178 = vsel %vm170, %v157, %v160
    %v179 = vsel %vm173, %v166, 920167782
    %v180 = vsel %vm172, %v163, %v179
    %v181 = vsel %vm171, %v178, %v180
    %v182 = vsel %vm170, %v160, %v163
    %v183 = vsel %vm173, %v169, 1326507024
    %v184 = vsel %vm172, %v166, %v183
    %v185 = vsel %vm171, %v182, %v184
    %v186 = vshll.u32 %v146, 8
    %v187 = vand.u32 %v186, 65535
    %v188 = vshrl.u32 %v186, 16
    %v189 = vand.u32 %v185, 65535
    %v190 = vshrl.u32 %v185, 16
    %v191 = vmul.u32 %v187, %v189
    %v192 = vmul.u32 %v187, %v190
    %v193 = vmul.u32 %v188, %v189
    %v194 = vmul.u32 %v188, %v190
    %v195 = vshll.u32 %v192, 16
    %v196 = vshrl.u32 %v192, 16
    %v197 = vshll.u32 %v193, 16
    %v198 = vshrl.u32 %v193, 16
    %vm199 = vc.u32 %v191, %v195
    %v200 = vsel %vm199, 1, 0
    %v201 = vadd.s32 %v191, %v195
    %v202 = vadd.s32 %v194, %v200
    %vm203 = vc.u32 %v201, %v197
    %v204 = vsel %vm203, 1, 0
    %v205 = vadd.s32 %v201, %v197
    %v206 = vadd.s32 %v202, %v204
    %v207 = vadd.s32 %v206, %v196
    %v208 = vadd.s32 %v207, %v198
    %v209 = vand.u32 %v186, 65535
    %v210 = vshrl.u32 %v186, 16
    %v211 = vand.u32 %v181, 65535
    %v212 = vshrl.u32 %v181, 16
    %v213 = vmul.u32 %v209, %v211
    %v214 = vmul.u32 %v209, %v212
    %v215 = vmul.u32 %v210, %v211
    %v216 = vmul.u32 %v210, %v212
    %v217 = vshll.u32 %v214, 16
    %v218 = vshrl.u32 %v214, 16
    %v219 = vshll.u32 %v215, 16
    %v220 = vshrl.u32 %v215, 16
    %vm221 = vc.u32 %v213, %v217
    %v222 = vsel %vm221, 1, 0
    %v223 = vadd.s32 %v213, %v217
    %v224 = vadd.s32 %v216, %v222
    %vm225 = vc.u32 %v223, %v219
    %v226 = vsel %vm225, 1, 0
    %v227 = vadd.s32 %v223, %v219
    %v228 = vadd.s32 %v224, %v226
    %v229 = vadd.s32 %v228, %v218
    %v230 = vadd.s32 %v229, %v220
    %v231 = vmul.u32 %v186, %v177
    %v232 = vadd.s32 %v208, %v227
    %vm233 = vc.u32 %v208, %v227
    %v234 = vadd.s32 %v230, 1
    %v235 = vsel %vm233, %v234, %v230
    %v236 = vadd.s32 %v231, %v235
    %v237 = vadd.s32 %v236, 536870912
    %v238 = vshrl.u32 %v237, 30
    %v239 = vshll.u32 %v238, 30
    %v240 = vsub.s32 %v236, %v239
    %vm241 = vcmp.lt.s32.totalorder %v240, 0
    %v242 = vsub.s32 0, %v240
    %v243 = vsel %vm241, %v242, %v240
    %v244 = vclz %v243
    %v245 = vsub.s32 %v244, 2
    %vm246 = vcmp.gt.s32.totalorder 0, %v245
    %v247 = vsel %vm246, 0, %v245
    %v248 = vsub.s32 32, %v247
    %v249 = vshll.u32 %v240, %v247
    %v250 = vshrl.u32 %v232, %v248
    %v251 = vor.u32 %v249, %v250
    %v252 = vsub.s32 4294967266, %v247
    %v253 = vadd.s32 %v252, 127
    %v254 = vshll.u32 %v253, 23
    %v255 = vor.u32 4788187, %v254
    %v256 = vand.u32 2147483647, %v255
    %v258 = vcvt.s32.f32 %v251
    %v259 = vmul.f32 %v258, %v256
    %v260 = vxor.u32 %v259, 2147483648
    %v261 = vsel %vm140, %v260, %v259
    %v262 = vsub.s32 4, %v238
    %v263 = vsel %vm140, %v262, %v238
    %v264 = vsel %vm139, %v136, %v261
    %v265 = vsel %vm139, 0, %v263
    %v266 = vmul.f32 %v264, %v264
    %v267 = vmul.f32 %v266, -0.001358992
    %v268 = vadd.f32 %v267, 0.041655596
    %v269 = vmul.f32 %v266, %v268
    %v270 = vadd.f32 %v269, -0.4999988
    %v271 = vmul.f32 %v266, %v270
    %v272 = vadd.f32 1.0, %v271
    %v273 = vmul.f32 %v264, %v264
    %v274 = vmul.f32 %v273, -0.00019511016
    %v275 = vadd.f32 %v274, 0.008332121
    %v276 = vmul.f32 %v273, %v275
    %v277 = vadd.f32 %v276, -0.16666654
    %v278 = vmul.f32 %v273, %v277
    %v279 = vadd.f32 %v278, 1.0
    %v280 = vmul.f32 %v279, %v264
    %vm281 = vweird.f32 %v136
    %v282 = vadd.s32 %v265, 3
    %v283 = vand.u32 %v282, 3
    %vm284 = vcmp.lt.s32.totalorder %v283, 2
    %vm285 = vcmp.eq.s32.totalorder %v283, 0
    %v286 = vxor.u32 %v280, 2147483648
    %v287 = vsel %vm285, %v272, %v286
    %vm288 = vcmp.eq.s32.totalorder %v283, 2
    %v289 = vxor.u32 %v272, 2147483648
    %v290 = vsel %vm288, %v289, %v280
    %v291 = vsel %vm284, %v287, %v290
    %v292 = vsel %vm281, nan, %v291
    %v293 = vand.u32 2147483647, %v136
    %vm294 = vcmp.le.f32.partialorder %v293, 0.7853982
    %vm295 = vcmp.lt.s32.totalorder %v136, 0
    %v296 = vand.u32 %v136, 2139095040
    %v297 = vshrl.u32 %v296, 23
    %v298 = vsub.s32 %v297, 127
    %v299 = vand.u32 2147483647, %v136
    %v300 = vand.u32 %v299, 8388607
    %v301 = vor.u32 %v300, 8388608
    %v302 = vsub.s32 0, %v301
    %v303 = vadd.s32 %v298, 1
    %vm304 = vcmp.gt.s32.totalorder %v303, 0
    %v305 = vsel %vm304, %v303, 0
    %v306 = vshrl.u32 %v305, 5
    %v307 = vand.u32 %v305, 31
    %v308 = vsub.s32 32, %v307
    %v309 = vshrl.u32 683565275, %v308
    %v310 = vshll.u32 683565275, %v307
    %v311 = vshrl.u32 2475754826, %v308
    %v312 = vor.u32 %v310, %v311
    %v313 = vshll.u32 2475754826, %v307
    %v314 = vshrl.u32 2131351028, %v308
    %v315 = vor.u32 %v313, %v314
    %v316 = vshll.u32 2131351028, %v307
    %v317 = vshrl.u32 2102212464, %v308
    %v318 = vor.u32 %v316, %v317
    %v319 = vshll.u32 2102212464, %v307
    %v320 = vshrl.u32 920167782, %v308
    %v321 = vor.u32 %v319, %v320
    %v322 = vshll.u32 920167782, %v307
    %v323 = vshrl.u32 1326507024, %v308
    %v324 = vor.u32 %v322, %v323
    %vm325 = vcmp.lt.s32.totalorder %v306, 1
    %vm326 = vcmp.lt.s32.totalorder %v306, 2
    %vm327 = vcmp.lt.s32.totalorder %v306, 3
    %vm328 = vcmp.lt.s32.totalorder %v306, 4
    %v329 = vsel %vm325, %v309, %v312
    %v330 = vsel %vm328, %v318, 2102212464
    %v331 = vsel %vm327, %v315, %v330
    %v332 = vsel %vm326, %v329, %v331
    %v333 = vsel %vm325, %v312, %v315
    %v334 = vsel %vm328, %v321, 920167782
    %v335 = vsel %vm327, %v318, %v334
    %v336 = vsel %vm326, %v333, %v335
    %v337 = vsel %vm325, %v315, %v318
    %v338 = vsel %vm328, %v324, 1326507024
    %v339 = vsel %vm327, %v321, %v338
    %v340 = vsel %vm326, %v337, %v339
    %v341 = vshll.u32 %v301, 8
    %v342 = vand.u32 %v341, 65535
    %v343 = vshrl.u32 %v341, 16
    %v344 = vand.u32 %v340, 65535
    %v345 = vshrl.u32 %v340, 16
    %v346 = vmul.u32 %v342, %v344
    %v347 = vmul.u32 %v342, %v345
    %v348 = vmul.u32 %v343, %v344
    %v349 = vmul.u32 %v343, %v345
    %v350 = vshll.u32 %v347, 16
    %v351 = vshrl.u32 %v347, 16
    %v352 = vshll.u32 %v348, 16
    %v353 = vshrl.u32 %v348, 16
    %vm354 = vc.u32 %v346, %v350
    %v355 = vsel %vm354, 1, 0
    %v356 = vadd.s32 %v346, %v350
    %v357 = vadd.s32 %v349, %v355
    %vm358 = vc.u32 %v356, %v352
    %v359 = vsel %vm358, 1, 0
    %v360 = vadd.s32 %v356, %v352
    %v361 = vadd.s32 %v357, %v359
    %v362 = vadd.s32 %v361, %v351
    %v363 = vadd.s32 %v362, %v353
    %v364 = vand.u32 %v341, 65535
    %v365 = vshrl.u32 %v341, 16
    %v366 = vand.u32 %v336, 65535
    %v367 = vshrl.u32 %v336, 16
    %v368 = vmul.u32 %v364, %v366
    %v369 = vmul.u32 %v364, %v367
    %v370 = vmul.u32 %v365, %v366
    %v371 = vmul.u32 %v365, %v367
    %v372 = vshll.u32 %v369, 16
    %v373 = vshrl.u32 %v369, 16
    %v374 = vshll.u32 %v370, 16
    %v375 = vshrl.u32 %v370, 16
    %vm376 = vc.u32 %v368, %v372
    %v377 = vsel %vm376, 1, 0
    %v378 = vadd.s32 %v368, %v372
    %v379 = vadd.s32 %v371, %v377
    %vm380 = vc.u32 %v378, %v374
    %v381 = vsel %vm380, 1, 0
    %v382 = vadd.s32 %v378, %v374
    %v383 = vadd.s32 %v379, %v381
    %v384 = vadd.s32 %v383, %v373
    %v385 = vadd.s32 %v384, %v375
    %v386 = vmul.u32 %v341, %v332
    %v387 = vadd.s32 %v363, %v382
    %vm388 = vc.u32 %v363, %v382
    %v389 = vadd.s32 %v385, 1
    %v390 = vsel %vm388, %v389, %v385
    %v391 = vadd.s32 %v386, %v390
    %v392 = vadd.s32 %v391, 536870912
    %v393 = vshrl.u32 %v392, 30
    %v394 = vshll.u32 %v393, 30
    %v395 = vsub.s32 %v391, %v394
    %vm396 = vcmp.lt.s32.totalorder %v395, 0
    %v397 = vsub.s32 0, %v395
    %v398 = vsel %vm396, %v397, %v395
    %v399 = vclz %v398
    %v400 = vsub.s32 %v399, 2
    %vm401 = vcmp.gt.s32.totalorder 0, %v400
    %v402 = vsel %vm401, 0, %v400
    %v403 = vsub.s32 32, %v402
    %v404 = vshll.u32 %v395, %v402
    %v405 = vshrl.u32 %v387, %v403
    %v406 = vor.u32 %v404, %v405
    %v407 = vsub.s32 4294967266, %v402
    %v408 = vadd.s32 %v407, 127
    %v409 = vshll.u32 %v408, 23
    %v410 = vor.u32 4788187, %v409
    %v411 = vand.u32 2147483647, %v410
    %v413 = vcvt.s32.f32 %v406
    %v414 = vmul.f32 %v413, %v411
    %v415 = vxor.u32 %v414, 2147483648
    %v416 = vsel %vm295, %v415, %v414
    %v417 = vsub.s32 4, %v393
    %v418 = vsel %vm295, %v417, %v393
    %v419 = vsel %vm294, %v136, %v416
    %v420 = vsel %vm294, 0, %v418
    %v421 = vmul.f32 %v419, %v419
    %v422 = vmul.f32 %v421, -0.001358992
    %v423 = vadd.f32 %v422, 0.041655596
    %v424 = vmul.f32 %v421, %v423
    %v425 = vadd.f32 %v424, -0.4999988
    %v426 = vmul.f32 %v421, %v425
    %v427 = vadd.f32 1.0, %v426
    %v428 = vmul.f32 %v419, %v419
    %v429 = vmul.f32 %v428, -0.00019511016
    %v430 = vadd.f32 %v429, 0.008332121
    %v431 = vmul.f32 %v428, %v430
    %v432 = vadd.f32 %v431, -0.16666654
    %v433 = vmul.f32 %v428, %v432
    %v434 = vadd.f32 %v433, 1.0
    %v435 = vmul.f32 %v434, %v419
    %vm436 = vweird.f32 %v136
    %v437 = vand.u32 %v420, 3
    %vm438 = vcmp.lt.s32.totalorder %v437, 2
    %vm439 = vcmp.eq.s32.totalorder %v437, 0
    %v440 = vxor.u32 %v435, 2147483648
    %v441 = vsel %vm439, %v427, %v440
    %vm442 = vcmp.eq.s32.totalorder %v437, 2
    %v443 = vxor.u32 %v427, 2147483648
    %v444 = vsel %vm442, %v443, %v435
    %v445 = vsel %vm438, %v441, %v444
    %v446 = vsel %vm436, nan, %v445
    %v447 = vsel %vm137, %v292, %v446
    %s448 = sld [smem:[#allocation2]]
    %s449 = scalar_lea.vmem %s1, %s448
    %v450 = vld [vmem:[%s449] sm:$0x1]
    %s451 = sld [smem:[#allocation2 + $0x1]]
    %s452 = scalar_lea.vmem %s1, %s451
    %v453 = vld [vmem:[%s452] sm:$0x1]
    %s454 = sld [smem:[#allocation2 + $0x2]]
    %s455 = scalar_lea.vmem %s1, %s454
    %v456 = vld [vmem:[%s455] sm:$0x1]
    %s457 = sld [smem:[#allocation2 + $0x3]]
    %s458 = scalar_lea.vmem %s1, %s457
    %v459 = vld [vmem:[%s458] sm:$0x1]
    %s460 = sld [smem:[#allocation2 + $0x4]]
    %s461 = scalar_lea.vmem %s1, %s460
    %v462 = vld [vmem:[%s461] sm:$0x1]
    %s463 = sld [smem:[#allocation2 + $0x5]]
    %s464 = scalar_lea.vmem %s1, %s463
    %v465 = vld [vmem:[%s464] sm:$0x1]
    %s466 = sld [smem:[#allocation2 + $0x6]]
    %s467 = scalar_lea.vmem %s1, %s466
    %v468 = vld [vmem:[%s467] sm:$0x1]
    %s469 = sld [smem:[#allocation2 + $0x7]]
    %s470 = scalar_lea.vmem %s1, %s469
    %v471 = vld [vmem:[%s470] sm:$0x1]
    %v473 = vrot.slane %v453, 7
    %v476 = vrot.slane %v456, 6
    %v479 = vrot.slane %v459, 5
    %v482 = vrot.slane %v462, 4
    %v485 = vrot.slane %v465, 3
    %v488 = vrot.slane %v468, 2
    %v491 = vrot.slane %v471, 1
    %vm493 = vcmask 1040384
    %v494 = vsel %vm493, %v450, %v473
    %vm495 = vcmask 1041408
    %v496 = vsel %vm495, %v494, %v476
    %vm497 = vcmask 1042432
    %v498 = vsel %vm497, %v496, %v479
    %vm499 = vcmask 1043456
    %v500 = vsel %vm499, %v498, %v482
    %vm501 = vcmask 1044480
    %v502 = vsel %vm501, %v500, %v485
    %vm503 = vcmask 1045504
    %v504 = vsel %vm503, %v502, %v488
    %vm505 = vcmask 1046528
    %v506 = vsel %vm505, %v504, %v491
    %v507 = vadd.f32 %v506, %v447
    %v508 = vld [vmem:[%s2] sm:$0xff]
    %v509 = vld [vmem:[%s2 + $0x8] sm:$0xff]
    %v510 = vld [vmem:[%s2 + $0x10] sm:$0xff]
    %v511 = vld [vmem:[%s2 + $0x18] sm:$0xff]
    %v512 = vld [vmem:[%s3] sm:$0x1]
    %v514 = vperm.slane %v512, 0
    %vm516 = vcmask 261120
    %v518 = vsel %vm516, %v507, 0
    %520 = vmatpush.msra.mxu0 0.0
    %521 = vmatpush.msra.mxu0 0.0
    %522 = vmatpush.msra.mxu0 0.0
    %523 = vmatpush.msra.mxu0 0.0
    %524 = vmatpush.msra.mxu0 0.0
    %525 = vmatpush.msra.mxu0 0.0
    %526 = vmatpush.msra.mxu0 0.0
    %527 = vmatpush.msra.mxu0 0.0
    %528 = vmatpush.msra.mxu0 0.0
    %529 = vmatpush.msra.mxu0 0.0
    %530 = vmatpush.msra.mxu0 0.0
    %531 = vmatpush.msra.mxu0 0.0
    %532 = vmatpush.msra.mxu0 %v511
    %533 = vmatpush.msra.mxu0 %v510
    %534 = vmatpush.msra.mxu0 %v509
    %535 = vmatpush.msra.mxu0 %v508
    %536 = vmatmul.f32.gmra.mxu0 %v518
    %v537 = vpop.f32.mrf.mxu0
    %v538 = vadd.f32 %v514, %v537
    %539 = vdwg.mxu0
    %v540 = vld [vmem:[%s4] sm:$0xff]
    %v541 = vld [vmem:[%s4 + $0x8] sm:$0xff]
    %v542 = vld [vmem:[%s4 + $0x10] sm:$0xff]
    %v543 = vld [vmem:[%s4 + $0x18] sm:$0xff]
    %v544 = vld [vmem:[%s5] sm:$0x1]
    %v546 = vperm.slane %v544, 0
    %548 = vmatpush.msra.mxu0 0.0
    %549 = vmatpush.msra.mxu0 0.0
    %550 = vmatpush.msra.mxu0 0.0
    %551 = vmatpush.msra.mxu0 0.0
    %552 = vmatpush.msra.mxu0 0.0
    %553 = vmatpush.msra.mxu0 0.0
    %554 = vmatpush.msra.mxu0 0.0
    %555 = vmatpush.msra.mxu0 0.0
    %556 = vmatpush.msra.mxu0 0.0
    %557 = vmatpush.msra.mxu0 0.0
    %558 = vmatpush.msra.mxu0 0.0
    %559 = vmatpush.msra.mxu0 0.0
    %560 = vmatpush.msra.mxu0 %v543
    %561 = vmatpush.msra.mxu0 %v542
    %562 = vmatpush.msra.mxu0 %v541
    %563 = vmatpush.msra.mxu0 %v540
    %564 = vmatmul.f32.gmra.mxu0 %v518
    %v565 = vpop.f32.mrf.mxu0
    %v566 = vadd.f32 %v546, %v565
    %567 = vdwg.mxu0
    %v568 = vld [vmem:[%s6] sm:$0xff]
    %v569 = vld [vmem:[%s6 + $0x8] sm:$0xff]
    %v570 = vld [vmem:[%s6 + $0x10] sm:$0xff]
    %v571 = vld [vmem:[%s6 + $0x18] sm:$0xff]
    %v572 = vld [vmem:[%s7] sm:$0x1]
    %v574 = vperm.slane %v572, 0
    %576 = vmatpush.msra.mxu0 0.0
    %577 = vmatpush.msra.mxu0 0.0
    %578 = vmatpush.msra.mxu0 0.0
    %579 = vmatpush.msra.mxu0 0.0
    %580 = vmatpush.msra.mxu0 0.0
    %581 = vmatpush.msra.mxu0 0.0
    %582 = vmatpush.msra.mxu0 0.0
    %583 = vmatpush.msra.mxu0 0.0
    %584 = vmatpush.msra.mxu0 0.0
    %585 = vmatpush.msra.mxu0 0.0
    %586 = vmatpush.msra.mxu0 0.0
    %587 = vmatpush.msra.mxu0 0.0
    %588 = vmatpush.msra.mxu0 %v571
    %589 = vmatpush.msra.mxu0 %v570
    %590 = vmatpush.msra.mxu0 %v569
    %591 = vmatpush.msra.mxu0 %v568
    %592 = vmatmul.f32.gmra.mxu0 %v518
    %v593 = vpop.f32.mrf.mxu0
    %v594 = vadd.f32 %v574, %v593
    %595 = vdwg.mxu0
    %vm596 = vcmask 64512
    %v598 = vsel %vm596, %v538, 0
    %v601 = vsel %vm596, %v566, 0
    %603 = vmatpush.xpose.msra.mxu0 0.0
    %604 = vmatpush.xpose.msra.mxu0 0.0
    %605 = vmatpush.xpose.msra.mxu0 0.0
    %606 = vmatpush.xpose.msra.mxu0 0.0
    %607 = vmatpush.xpose.msra.mxu0 0.0
    %608 = vmatpush.xpose.msra.mxu0 0.0
    %609 = vmatpush.xpose.msra.mxu0 0.0
    %610 = vmatpush.xpose.msra.mxu0 0.0
    %611 = vmatpush.xpose.msra.mxu0 0.0
    %612 = vmatpush.xpose.msra.mxu0 0.0
    %613 = vmatpush.xpose.msra.mxu0 0.0
    %614 = vmatpush.xpose.msra.mxu0 0.0
    %615 = vmatpush.xpose.msra.mxu0 0.0
    %616 = vmatpush.xpose.msra.mxu0 0.0
    %617 = vmatpush.xpose.msra.mxu0 0.0
    %618 = vmatpush.xpose.msra.mxu0 %v601
    %619 = vmatmul.f32.gmra.mxu0 %v598
    %v620 = vpop.f32.mrf.mxu0
    %v621 = vadd.f32 0.0, %v620
    %622 = vdwg.mxu0
    %v623 = vmul.f32 %v621, 0.35355338
    %v624 = vsel %vm596, %v623, -inf
    %625 = vmax.xlane.f32.xlu0 %v624
    %v626 = vpop.xlane.xlu0 %625
    %v627 = vsub.f32 %v623, %v626
    %v628 = vmul.f32 %v627, 1.442695
    %v629 = vpow.pop %v628
    %v630 = vsel %vm596, %v629, 0.0
    %631 = vadd.xlane.f32.xlu0 %v630
    %v632 = vpop.xlane.xlu0 %631
    %v633 = vrcp.pop %v632
    %v634 = vmul.f32 %v632, %v633
    %v635 = vsub.f32 1.0, %v634
    %v636 = vmul.f32 %v633, %v635
    %v637 = vadd.f32 %v633, %v636
    %vm638 = vweird.f32 %v632
    %vm639 = vweird.f32 %v633
    %vm640 = vmor %vm638, %vm639
    %v641 = vsel %vm640, %v633, %v637
    %v642 = vand.u32 2147483647, %v632
    %vm643 = vcmp.eq.f32.partialorder %v642, 8.507059e+37
    %v644 = vand.u32 %v632, 2147483648
    %v645 = vor.u32 1.1754944e-38, %v644
    %v646 = vsel %vm643, %v645, %v641
    %v647 = vmul.f32 %v629, %v646
    %v649 = vsel %vm596, %v647, 0
    %651 = vmatpush.msra.mxu0 0.0
    %652 = vmatpush.msra.mxu0 0.0
    %653 = vmatpush.msra.mxu0 0.0
    %654 = vmatpush.msra.mxu0 0.0
    %655 = vmatpush.msra.mxu0 0.0
    %656 = vmatpush.msra.mxu0 0.0
    %657 = vmatpush.msra.mxu0 0.0
    %658 = vmatpush.msra.mxu0 0.0
    %659 = vmatpush.msra.mxu0 0.0
    %660 = vmatpush.msra.mxu0 0.0
    %661 = vmatpush.msra.mxu0 0.0
    %662 = vmatpush.msra.mxu0 0.0
    %663 = vmatpush.msra.mxu0 0.0
    %664 = vmatpush.msra.mxu0 0.0
    %665 = vmatpush.msra.mxu0 0.0
    %666 = vmatpush.msra.mxu0 %v594
    %667 = vmatmul.f32.gmra.mxu0 %v649
    %v668 = vpop.f32.mrf.mxu0
    %v669 = vadd.f32 0.0, %v668
    %670 = vdwg.mxu0
    %671 = vrot.lane.b32.xlu0 %v538, 120
    %v672 = vpop.permute.xlu0 %671
    %673 = vrot.lane.b32.xlu0 %v566, 120
    %v674 = vpop.permute.xlu0 %673
    %v675 = vsel %vm596, %v672, 0
    %v677 = vsel %vm596, %v674, 0
    %679 = vmatpush.xpose.msra.mxu0 0.0
    %680 = vmatpush.xpose.msra.mxu0 0.0
    %681 = vmatpush.xpose.msra.mxu0 0.0
    %682 = vmatpush.xpose.msra.mxu0 0.0
    %683 = vmatpush.xpose.msra.mxu0 0.0
    %684 = vmatpush.xpose.msra.mxu0 0.0
    %685 = vmatpush.xpose.msra.mxu0 0.0
    %686 = vmatpush.xpose.msra.mxu0 0.0
    %687 = vmatpush.xpose.msra.mxu0 0.0
    %688 = vmatpush.xpose.msra.mxu0 0.0
    %689 = vmatpush.xpose.msra.mxu0 0.0
    %690 = vmatpush.xpose.msra.mxu0 0.0
    %691 = vmatpush.xpose.msra.mxu0 0.0
    %692 = vmatpush.xpose.msra.mxu0 0.0
    %693 = vmatpush.xpose.msra.mxu0 0.0
    %694 = vmatpush.xpose.msra.mxu0 %v677
    %695 = vmatmul.f32.gmra.mxu0 %v675
    %v696 = vpop.f32.mrf.mxu0
    %v697 = vadd.f32 0.0, %v696
    %698 = vdwg.mxu0
    %v699 = vmul.f32 %v697, 0.35355338
    %v700 = vsel %vm596, %v699, -inf
    %701 = vmax.xlane.f32.xlu0 %v700
    %v702 = vpop.xlane.xlu0 %701
    %v703 = vsub.f32 %v699, %v702
    %v704 = vmul.f32 %v703, 1.442695
    %v705 = vpow.pop %v704
    %v706 = vsel %vm596, %v705, 0.0
    %707 = vadd.xlane.f32.xlu0 %v706
    %v708 = vpop.xlane.xlu0 %707
    %v709 = vrcp.pop %v708
    %v710 = vmul.f32 %v708, %v709
    %v711 = vsub.f32 1.0, %v710
    %v712 = vmul.f32 %v709, %v711
    %v713 = vadd.f32 %v709, %v712
    %vm714 = vweird.f32 %v708
    %vm715 = vweird.f32 %v709
    %vm716 = vmor %vm714, %vm715
    %v717 = vsel %vm716, %v709, %v713
    %v718 = vand.u32 2147483647, %v708
    %vm719 = vcmp.eq.f32.partialorder %v718, 8.507059e+37
    %v720 = vand.u32 %v708, 2147483648
    %v721 = vor.u32 1.1754944e-38, %v720
    %v722 = vsel %vm719, %v721, %v717
    %v723 = vmul.f32 %v705, %v722
    %725 = vrot.lane.b32.xlu0 %v594, 120
    %v726 = vpop.permute.xlu0 %725
    %v729 = vsel %vm596, %v723, 0
    %731 = vmatpush.msra.mxu0 0.0
    %732 = vmatpush.msra.mxu0 0.0
    %733 = vmatpush.msra.mxu0 0.0
    %734 = vmatpush.msra.mxu0 0.0
    %735 = vmatpush.msra.mxu0 0.0
    %736 = vmatpush.msra.mxu0 0.0
    %737 = vmatpush.msra.mxu0 0.0
    %738 = vmatpush.msra.mxu0 0.0
    %739 = vmatpush.msra.mxu0 0.0
    %740 = vmatpush.msra.mxu0 0.0
    %741 = vmatpush.msra.mxu0 0.0
    %742 = vmatpush.msra.mxu0 0.0
    %743 = vmatpush.msra.mxu0 0.0
    %744 = vmatpush.msra.mxu0 0.0
    %745 = vmatpush.msra.mxu0 0.0
    %746 = vmatpush.msra.mxu0 %v726
    %747 = vmatmul.f32.gmra.mxu0 %v729
    %v748 = vpop.f32.mrf.mxu0
    %v749 = vadd.f32 0.0, %v748
    %750 = vdwg.mxu0
    %751 = vrot.lane.b32.xlu0 %v538, 112
    %v752 = vpop.permute.xlu0 %751
    %753 = vrot.lane.b32.xlu0 %v566, 112
    %v754 = vpop.permute.xlu0 %753
    %v755 = vsel %vm596, %v752, 0
    %v757 = vsel %vm596, %v754, 0
    %759 = vmatpush.xpose.msra.mxu0 0.0
    %760 = vmatpush.xpose.msra.mxu0 0.0
    %761 = vmatpush.xpose.msra.mxu0 0.0
    %762 = vmatpush.xpose.msra.mxu0 0.0
    %763 = vmatpush.xpose.msra.mxu0 0.0
    %764 = vmatpush.xpose.msra.mxu0 0.0
    %765 = vmatpush.xpose.msra.mxu0 0.0
    %766 = vmatpush.xpose.msra.mxu0 0.0
    %767 = vmatpush.xpose.msra.mxu0 0.0
    %768 = vmatpush.xpose.msra.mxu0 0.0
    %769 = vmatpush.xpose.msra.mxu0 0.0
    %770 = vmatpush.xpose.msra.mxu0 0.0
    %771 = vmatpush.xpose.msra.mxu0 0.0
    %772 = vmatpush.xpose.msra.mxu0 0.0
    %773 = vmatpush.xpose.msra.mxu0 0.0
    %774 = vmatpush.xpose.msra.mxu0 %v757
    %775 = vmatmul.f32.gmra.mxu0 %v755
    %v776 = vpop.f32.mrf.mxu0
    %v777 = vadd.f32 0.0, %v776
    %778 = vdwg.mxu0
    %v779 = vmul.f32 %v777, 0.35355338
    %v780 = vsel %vm596, %v779, -inf
    %781 = vmax.xlane.f32.xlu0 %v780
    %v782 = vpop.xlane.xlu0 %781
    %v783 = vsub.f32 %v779, %v782
    %v784 = vmul.f32 %v783, 1.442695
    %v785 = vpow.pop %v784
    %v786 = vsel %vm596, %v785, 0.0
    %787 = vadd.xlane.f32.xlu0 %v786
    %v788 = vpop.xlane.xlu0 %787
    %v789 = vrcp.pop %v788
    %v790 = vmul.f32 %v788, %v789
    %v791 = vsub.f32 1.0, %v790
    %v792 = vmul.f32 %v789, %v791
    %v793 = vadd.f32 %v789, %v792
    %vm794 = vweird.f32 %v788
    %vm795 = vweird.f32 %v789
    %vm796 = vmor %vm794, %vm795
    %v797 = vsel %vm796, %v789, %v793
    %v798 = vand.u32 2147483647, %v788
    %vm799 = vcmp.eq.f32.partialorder %v798, 8.507059e+37
    %v800 = vand.u32 %v788, 2147483648
    %v801 = vor.u32 1.1754944e-38, %v800
    %v802 = vsel %vm799, %v801, %v797
    %v803 = vmul.f32 %v785, %v802
    %804 = vrot.lane.b32.xlu0 %v594, 112
    %v805 = vpop.permute.xlu0 %804
    %v808 = vsel %vm596, %v803, 0
    %810 = vmatpush.msra.mxu0 0.0
    %811 = vmatpush.msra.mxu0 0.0
    %812 = vmatpush.msra.mxu0 0.0
    %813 = vmatpush.msra.mxu0 0.0
    %814 = vmatpush.msra.mxu0 0.0
    %815 = vmatpush.msra.mxu0 0.0
    %816 = vmatpush.msra.mxu0 0.0
    %817 = vmatpush.msra.mxu0 0.0
    %818 = vmatpush.msra.mxu0 0.0
    %819 = vmatpush.msra.mxu0 0.0
    %820 = vmatpush.msra.mxu0 0.0
    %821 = vmatpush.msra.mxu0 0.0
    %822 = vmatpush.msra.mxu0 0.0
    %823 = vmatpush.msra.mxu0 0.0
    %824 = vmatpush.msra.mxu0 0.0
    %825 = vmatpush.msra.mxu0 %v805
    %826 = vmatmul.f32.gmra.mxu0 %v808
    %v827 = vpop.f32.mrf.mxu0
    %v828 = vadd.f32 0.0, %v827
    %829 = vdwg.mxu0
    %830 = vrot.lane.b32.xlu0 %v538, 104
    %v831 = vpop.permute.xlu0 %830
    %832 = vrot.lane.b32.xlu0 %v566, 104
    %v833 = vpop.permute.xlu0 %832
    %v834 = vsel %vm596, %v831, 0
    %v836 = vsel %vm596, %v833, 0
    %838 = vmatpush.xpose.msra.mxu0 0.0
    %839 = vmatpush.xpose.msra.mxu0 0.0
    %840 = vmatpush.xpose.msra.mxu0 0.0
    %841 = vmatpush.xpose.msra.mxu0 0.0
    %842 = vmatpush.xpose.msra.mxu0 0.0
    %843 = vmatpush.xpose.msra.mxu0 0.0
    %844 = vmatpush.xpose.msra.mxu0 0.0
    %845 = vmatpush.xpose.msra.mxu0 0.0
    %846 = vmatpush.xpose.msra.mxu0 0.0
    %847 = vmatpush.xpose.msra.mxu0 0.0
    %848 = vmatpush.xpose.msra.mxu0 0.0
    %849 = vmatpush.xpose.msra.mxu0 0.0
    %850 = vmatpush.xpose.msra.mxu0 0.0
    %851 = vmatpush.xpose.msra.mxu0 0.0
    %852 = vmatpush.xpose.msra.mxu0 0.0
    %853 = vmatpush.xpose.msra.mxu0 %v836
    %854 = vmatmul.f32.gmra.mxu0 %v834
    %v855 = vpop.f32.mrf.mxu0
    %v856 = vadd.f32 0.0, %v855
    %857 = vdwg.mxu0
    %v858 = vmul.f32 %v856, 0.35355338
    %v859 = vsel %vm596, %v858, -inf
    %860 = vmax.xlane.f32.xlu0 %v859
    %v861 = vpop.xlane.xlu0 %860
    %v862 = vsub.f32 %v858, %v861
    %v863 = vmul.f32 %v862, 1.442695
    %v864 = vpow.pop %v863
    %v865 = vsel %vm596, %v864, 0.0
    %866 = vadd.xlane.f32.xlu0 %v865
    %v867 = vpop.xlane.xlu0 %866
    %v868 = vrcp.pop %v867
    %v869 = vmul.f32 %v867, %v868
    %v870 = vsub.f32 1.0, %v869
    %v871 = vmul.f32 %v868, %v870
    %v872 = vadd.f32 %v868, %v871
    %vm873 = vweird.f32 %v867
    %vm874 = vweird.f32 %v868
    %vm875 = vmor %vm873, %vm874
    %v876 = vsel %vm875, %v868, %v872
    %v877 = vand.u32 2147483647, %v867
    %vm878 = vcmp.eq.f32.partialorder %v877, 8.507059e+37
    %v879 = vand.u32 %v867, 2147483648
    %v880 = vor.u32 1.1754944e-38, %v879
    %v881 = vsel %vm878, %v880, %v876
    %v882 = vmul.f32 %v864, %v881
    %883 = vrot.lane.b32.xlu0 %v594, 104
    %v884 = vpop.permute.xlu0 %883
    %v887 = vsel %vm596, %v882, 0
    %889 = vmatpush.msra.mxu0 0.0
    %890 = vmatpush.msra.mxu0 0.0
    %891 = vmatpush.msra.mxu0 0.0
    %892 = vmatpush.msra.mxu0 0.0
    %893 = vmatpush.msra.mxu0 0.0
    %894 = vmatpush.msra.mxu0 0.0
    %895 = vmatpush.msra.mxu0 0.0
    %896 = vmatpush.msra.mxu0 0.0
    %897 = vmatpush.msra.mxu0 0.0
    %898 = vmatpush.msra.mxu0 0.0
    %899 = vmatpush.msra.mxu0 0.0
    %900 = vmatpush.msra.mxu0 0.0
    %901 = vmatpush.msra.mxu0 0.0
    %902 = vmatpush.msra.mxu0 0.0
    %903 = vmatpush.msra.mxu0 0.0
    %904 = vmatpush.msra.mxu0 %v884
    %905 = vmatmul.f32.gmra.mxu0 %v887
    %v906 = vpop.f32.mrf.mxu0
    %v907 = vadd.f32 0.0, %v906
    %908 = vdwg.mxu0
    %910 = vrot.lane.b32.xlu0 %v749, 8
    %v911 = vpop.permute.xlu0 %910
    %914 = vrot.lane.b32.xlu0 %v828, 16
    %v915 = vpop.permute.xlu0 %914
    %918 = vrot.lane.b32.xlu0 %v907, 24
    %v919 = vpop.permute.xlu0 %918
    %v921 = vsel %vm596, %v669, %v911
    %vm922 = vcmask 130048
    %v923 = vsel %vm922, %v921, %v915
    %vm924 = vcmask 195584
    %v925 = vsel %vm924, %v923, %v919
    %v926 = vld [vmem:[#allocation6] sm:$0xff]
    %v927 = vld [vmem:[#allocation6 + $0x8] sm:$0xff]
    %v928 = vld [vmem:[#allocation6 + $0x10] sm:$0xff]
    %v929 = vld [vmem:[#allocation6 + $0x18] sm:$0xff]
    %v930 = vld [vmem:[%s9] sm:$0x1]
    %v932 = vperm.slane %v930, 0
    %v935 = vsel %vm516, %v925, 0
    %937 = vmatpush.msra.mxu0 0.0
    %938 = vmatpush.msra.mxu0 0.0
    %939 = vmatpush.msra.mxu0 0.0
    %940 = vmatpush.msra.mxu0 0.0
    %941 = vmatpush.msra.mxu0 0.0
    %942 = vmatpush.msra.mxu0 0.0
    %943 = vmatpush.msra.mxu0 0.0
    %944 = vmatpush.msra.mxu0 0.0
    %945 = vmatpush.msra.mxu0 0.0
    %946 = vmatpush.msra.mxu0 0.0
    %947 = vmatpush.msra.mxu0 0.0
    %948 = vmatpush.msra.mxu0 0.0
    %949 = vmatpush.msra.mxu0 %v929
    %950 = vmatpush.msra.mxu0 %v928
    %951 = vmatpush.msra.mxu0 %v927
    %952 = vmatpush.msra.mxu0 %v926
    %953 = vmatmul.f32.gmra.mxu0 %v935
    %v954 = vpop.f32.mrf.mxu0
    %v955 = vadd.f32 %v932, %v954
    %956 = vdwg.mxu0
    %v957 = vadd.f32 %v507, %v955
    %v958 = vadd.f32 %v957, %v507
    %v959 = vld [vmem:[%s10] sm:$0x1]
    %v960 = vld [vmem:[%s11] sm:$0x1]
    %v961 = vsel %vm516, %v958, 0.0
    %962 = vadd.xlane.f32.xlu0 %v961
    %v963 = vpop.xlane.xlu0 %962
    %v964 = vmul.f32 %v963, %v130
    %v965 = vsub.f32 %v958, %v964
    %v966 = vmul.f32 %v965, %v965
    %v967 = vsel %vm516, %v966, 0.0
    %968 = vadd.xlane.f32.xlu0 %v967
    %v969 = vpop.xlane.xlu0 %968
    %v970 = vmul.f32 %v969, %v130
    %v971 = vadd.f32 %v970, 1e-06
    %v972 = vrsqrt.pop %v971
    %v973 = vmul.f32 %v972, %v971
    %v974 = vmul.f32 %v973, %v972
    %v975 = vmul.f32 0.5, %v974
    %v976 = vsub.f32 1.5, %v975
    %v977 = vmul.f32 %v972, %v976
    %v978 = vmul.f32 %v971, %v977
    %vm979 = vcmp.eq.f32.partialorder %v971, inf
    %v980 = vsel %vm979, %v971, %v978
    %vm981 = vcmp.eq.f32.partialorder %v971, 0.0
    %v982 = vand.u32 %v971, 2147483648
    %v983 = vsel %vm981, %v982, %v980
    %v984 = vrcp.pop %v983
    %v985 = vmul.f32 %v983, %v984
    %v986 = vsub.f32 1.0, %v985
    %v987 = vmul.f32 %v984, %v986
    %v988 = vadd.f32 %v984, %v987
    %vm989 = vweird.f32 %v983
    %vm990 = vweird.f32 %v984
    %vm991 = vmor %vm989, %vm990
    %v992 = vsel %vm991, %v984, %v988
    %v993 = vand.u32 2147483647, %v983
    %vm994 = vcmp.eq.f32.partialorder %v993, 8.507059e+37
    %v995 = vand.u32 %v983, 2147483648
    %v996 = vor.u32 1.1754944e-38, %v995
    %v997 = vsel %vm994, %v996, %v992
    %v998 = vmul.f32 %v965, %v997
    %v1000 = vperm.slane %v959, 0
    %v1002 = vmul.f32 %v1000, %v998
    %v1004 = vperm.slane %v960, 0
    %v1006 = vadd.f32 %v1002, %v1004
    %v1007 = vld [vmem:[#allocation7] sm:$0xff]
    %v1008 = vld [vmem:[#allocation7 + $0x8] sm:$0xff]
    %v1009 = vld [vmem:[#allocation7 + $0x10] sm:$0xff]
    %v1010 = vld [vmem:[#allocation7 + $0x18] sm:$0xff]
    %v1011 = vld [vmem:[%s13] sm:$0x1]
    %v1013 = vperm.slane %v1011, 0
    %v1016 = vsel %vm516, %v1006, 0
    %1018 = vmatpush.msra.mxu0 0.0
    %1019 = vmatpush.msra.mxu0 0.0
    %1020 = vmatpush.msra.mxu0 0.0
    %1021 = vmatpush.msra.mxu0 0.0
    %1022 = vmatpush.msra.mxu0 0.0
    %1023 = vmatpush.msra.mxu0 0.0
    %1024 = vmatpush.msra.mxu0 0.0
    %1025 = vmatpush.msra.mxu0 0.0
    %1026 = vmatpush.msra.mxu0 0.0
    %1027 = vmatpush.msra.mxu0 0.0
    %1028 = vmatpush.msra.mxu0 0.0
    %1029 = vmatpush.msra.mxu0 0.0
    %1030 = vmatpush.msra.mxu0 %v1010
    %1031 = vmatpush.msra.mxu0 %v1009
    %1032 = vmatpush.msra.mxu0 %v1008
    %1033 = vmatpush.msra.mxu0 %v1007
    %1034 = vmatmul.f32.gmra.mxu0 %v1016
    %v1035 = vpop.f32.mrf.mxu0
    %v1036 = vadd.f32 %v1013, %v1035
    %1037 = vdwg.mxu0
    %v1038 = vmax.f32 %v1036, 0.0
    %v1039 = vld [vmem:[%s14] sm:$0xff]
    %v1040 = vld [vmem:[%s14 + $0x8] sm:$0xff]
    %v1041 = vld [vmem:[%s14 + $0x10] sm:$0xff]
    %v1042 = vld [vmem:[%s14 + $0x18] sm:$0xff]
    %v1043 = vld [vmem:[%s14 + $0x20] sm:$0xff]
    %v1044 = vld [vmem:[%s14 + $0x28] sm:$0xff]
    %v1045 = vld [vmem:[%s14 + $0x30] sm:$0xff]
    %v1046 = vld [vmem:[%s14 + $0x38] sm:$0xff]
    %v1047 = vld [vmem:[%s15] sm:$0x1]
    %v1049 = vperm.slane %v1047, 0
    %vm1051 = vcmask 523264
    %v1053 = vsel %vm1051, %v1038, 0
    %1055 = vmatpush.msra.mxu0 0.0
    %1056 = vmatpush.msra.mxu0 0.0
    %1057 = vmatpush.msra.mxu0 0.0
    %1058 = vmatpush.msra.mxu0 0.0
    %1059 = vmatpush.msra.mxu0 0.0
    %1060 = vmatpush.msra.mxu0 0.0
    %1061 = vmatpush.msra.mxu0 0.0
    %1062 = vmatpush.msra.mxu0 0.0
    %1063 = vmatpush.msra.mxu0 %v1046
    %1064 = vmatpush.msra.mxu0 %v1045
    %1065 = vmatpush.msra.mxu0 %v1044
    %1066 = vmatpush.msra.mxu0 %v1043
    %1067 = vmatpush.msra.mxu0 %v1042
    %1068 = vmatpush.msra.mxu0 %v1041
    %1069 = vmatpush.msra.mxu0 %v1040
    %1070 = vmatpush.msra.mxu0 %v1039
    %1071 = vmatmul.f32.gmra.mxu0 %v1053
    %v1072 = vpop.f32.mrf.mxu0
    %v1073 = vadd.f32 %v1049, %v1072
    %1074 = vdwg.mxu0
    %v1075 = vadd.f32 %v1006, %v1073
    %v1076 = vadd.f32 %v1075, %v1006
    %v1077 = vld [vmem:[%s16] sm:$0x1]
    %v1078 = vld [vmem:[%s17] sm:$0x1]
    %v1079 = vsel %vm516, %v1076, 0.0
    %1080 = vadd.xlane.f32.xlu0 %v1079
    %v1081 = vpop.xlane.xlu0 %1080
    %v1082 = vmul.f32 %v1081, %v130
    %v1083 = vsub.f32 %v1076, %v1082
    %v1084 = vmul.f32 %v1083, %v1083
    %v1085 = vsel %vm516, %v1084, 0.0
    %1086 = vadd.xlane.f32.xlu0 %v1085
    %v1087 = vpop.xlane.xlu0 %1086
    %v1088 = vmul.f32 %v1087, %v130
    %v1089 = vadd.f32 %v1088, 1e-06
    %v1090 = vrsqrt.pop %v1089
    %v1091 = vmul.f32 %v1090, %v1089
    %v1092 = vmul.f32 %v1091, %v1090
    %v1093 = vmul.f32 0.5, %v1092
    %v1094 = vsub.f32 1.5, %v1093
    %v1095 = vmul.f32 %v1090, %v1094
    %v1096 = vmul.f32 %v1089, %v1095
    %vm1097 = vcmp.eq.f32.partialorder %v1089, inf
    %v1098 = vsel %vm1097, %v1089, %v1096
    %vm1099 = vcmp.eq.f32.partialorder %v1089, 0.0
    %v1100 = vand.u32 %v1089, 2147483648
    %v1101 = vsel %vm1099, %v1100, %v1098
    %v1102 = vrcp.pop %v1101
    %v1103 = vmul.f32 %v1101, %v1102
    %v1104 = vsub.f32 1.0, %v1103
    %v1105 = vmul.f32 %v1102, %v1104
    %v1106 = vadd.f32 %v1102, %v1105
    %vm1107 = vweird.f32 %v1101
    %vm1108 = vweird.f32 %v1102
    %vm1109 = vmor %vm1107, %vm1108
    %v1110 = vsel %vm1109, %v1102, %v1106
    %v1111 = vand.u32 2147483647, %v1101
    %vm1112 = vcmp.eq.f32.partialorder %v1111, 8.507059e+37
    %v1113 = vand.u32 %v1101, 2147483648
    %v1114 = vor.u32 1.1754944e-38, %v1113
    %v1115 = vsel %vm1112, %v1114, %v1110
    %v1116 = vmul.f32 %v1083, %v1115
    %v1118 = vperm.slane %v1077, 0
    %v1120 = vmul.f32 %v1118, %v1116
    %v1122 = vperm.slane %v1078, 0
    %v1124 = vadd.f32 %v1120, %v1122
    %s1125 = scalar_lea.vmem %s2, 32
    %v1126 = vld [vmem:[%s1125] sm:$0xff]
    %v1127 = vld [vmem:[%s1125 + $0x8] sm:$0xff]
    %v1128 = vld [vmem:[%s1125 + $0x10] sm:$0xff]
    %v1129 = vld [vmem:[%s1125 + $0x18] sm:$0xff]
    %s1130 = scalar_lea.vmem %s3, 1
    %v1131 = vld [vmem:[%s1130] sm:$0x1]
    %v1133 = vperm.slane %v1131, 0
    %v1136 = vsel %vm516, %v1124, 0
    %1138 = vmatpush.msra.mxu0 0.0
    %1139 = vmatpush.msra.mxu0 0.0
    %1140 = vmatpush.msra.mxu0 0.0
    %1141 = vmatpush.msra.mxu0 0.0
    %1142 = vmatpush.msra.mxu0 0.0
    %1143 = vmatpush.msra.mxu0 0.0
    %1144 = vmatpush.msra.mxu0 0.0
    %1145 = vmatpush.msra.mxu0 0.0
    %1146 = vmatpush.msra.mxu0 0.0
    %1147 = vmatpush.msra.mxu0 0.0
    %1148 = vmatpush.msra.mxu0 0.0
    %1149 = vmatpush.msra.mxu0 0.0
    %1150 = vmatpush.msra.mxu0 %v1129
    %1151 = vmatpush.msra.mxu0 %v1128
    %1152 = vmatpush.msra.mxu0 %v1127
    %1153 = vmatpush.msra.mxu0 %v1126
    %1154 = vmatmul.f32.gmra.mxu0 %v1136
    %v1155 = vpop.f32.mrf.mxu0
    %v1156 = vadd.f32 %v1133, %v1155
    %1157 = vdwg.mxu0
    %s1158 = scalar_lea.vmem %s4, 32
    %v1159 = vld [vmem:[%s1158] sm:$0xff]
    %v1160 = vld [vmem:[%s1158 + $0x8] sm:$0xff]
    %v1161 = vld [vmem:[%s1158 + $0x10] sm:$0xff]
    %v1162 = vld [vmem:[%s1158 + $0x18] sm:$0xff]
    %s1163 = scalar_lea.vmem %s5, 1
    %v1164 = vld [vmem:[%s1163] sm:$0x1]
    %v1166 = vperm.slane %v1164, 0
    %1168 = vmatpush.msra.mxu0 0.0
    %1169 = vmatpush.msra.mxu0 0.0
    %1170 = vmatpush.msra.mxu0 0.0
    %1171 = vmatpush.msra.mxu0 0.0
    %1172 = vmatpush.msra.mxu0 0.0
    %1173 = vmatpush.msra.mxu0 0.0
    %1174 = vmatpush.msra.mxu0 0.0
    %1175 = vmatpush.msra.mxu0 0.0
    %1176 = vmatpush.msra.mxu0 0.0
    %1177 = vmatpush.msra.mxu0 0.0
    %1178 = vmatpush.msra.mxu0 0.0
    %1179 = vmatpush.msra.mxu0 0.0
    %1180 = vmatpush.msra.mxu0 %v1162
    %1181 = vmatpush.msra.mxu0 %v1161
    %1182 = vmatpush.msra.mxu0 %v1160
    %1183 = vmatpush.msra.mxu0 %v1159
    %1184 = vmatmul.f32.gmra.mxu0 %v1136
    %v1185 = vpop.f32.mrf.mxu0
    %v1186 = vadd.f32 %v1166, %v1185
    %1187 = vdwg.mxu0
    %s1188 = scalar_lea.vmem %s6, 32
    %v1189 = vld [vmem:[%s1188] sm:$0xff]
    %v1190 = vld [vmem:[%s1188 + $0x8] sm:$0xff]
    %v1191 = vld [vmem:[%s1188 + $0x10] sm:$0xff]
    %v1192 = vld [vmem:[%s1188 + $0x18] sm:$0xff]
    %s1193 = scalar_lea.vmem %s7, 1
    %v1194 = vld [vmem:[%s1193] sm:$0x1]
    %v1196 = vperm.slane %v1194, 0
    %1198 = vmatpush.msra.mxu0 0.0
    %1199 = vmatpush.msra.mxu0 0.0
    %1200 = vmatpush.msra.mxu0 0.0
    %1201 = vmatpush.msra.mxu0 0.0
    %1202 = vmatpush.msra.mxu0 0.0
    %1203 = vmatpush.msra.mxu0 0.0
    %1204 = vmatpush.msra.mxu0 0.0
    %1205 = vmatpush.msra.mxu0 0.0
    %1206 = vmatpush.msra.mxu0 0.0
    %1207 = vmatpush.msra.mxu0 0.0
    %1208 = vmatpush.msra.mxu0 0.0
    %1209 = vmatpush.msra.mxu0 0.0
    %1210 = vmatpush.msra.mxu0 %v1192
    %1211 = vmatpush.msra.mxu0 %v1191
    %1212 = vmatpush.msra.mxu0 %v1190
    %1213 = vmatpush.msra.mxu0 %v1189
    %1214 = vmatmul.f32.gmra.mxu0 %v1136
    %v1215 = vpop.f32.mrf.mxu0
    %v1216 = vadd.f32 %v1196, %v1215
    %1217 = vdwg.mxu0
    %v1219 = vsel %vm596, %v1156, 0
    %v1222 = vsel %vm596, %v1186, 0
    %1224 = vmatpush.xpose.msra.mxu0 0.0
    %1225 = vmatpush.xpose.msra.mxu0 0.0
    %1226 = vmatpush.xpose.msra.mxu0 0.0
    %1227 = vmatpush.xpose.msra.mxu0 0.0
    %1228 = vmatpush.xpose.msra.mxu0 0.0
    %1229 = vmatpush.xpose.msra.mxu0 0.0
    %1230 = vmatpush.xpose.msra.mxu0 0.0
    %1231 = vmatpush.xpose.msra.mxu0 0.0
    %1232 = vmatpush.xpose.msra.mxu0 0.0
    %1233 = vmatpush.xpose.msra.mxu0 0.0
    %1234 = vmatpush.xpose.msra.mxu0 0.0
    %1235 = vmatpush.xpose.msra.mxu0 0.0
    %1236 = vmatpush.xpose.msra.mxu0 0.0
    %1237 = vmatpush.xpose.msra.mxu0 0.0
    %1238 = vmatpush.xpose.msra.mxu0 0.0
    %1239 = vmatpush.xpose.msra.mxu0 %v1222
    %1240 = vmatmul.f32.gmra.mxu0 %v1219
    %v1241 = vpop.f32.mrf.mxu0
    %v1242 = vadd.f32 0.0, %v1241
    %1243 = vdwg.mxu0
    %v1244 = vmul.f32 %v1242, 0.35355338
    %v1245 = vsel %vm596, %v1244, -inf
    %1246 = vmax.xlane.f32.xlu0 %v1245
    %v1247 = vpop.xlane.xlu0 %1246
    %v1248 = vsub.f32 %v1244, %v1247
    %v1249 = vmul.f32 %v1248, 1.442695
    %v1250 = vpow.pop %v1249
    %v1251 = vsel %vm596, %v1250, 0.0
    %1252 = vadd.xlane.f32.xlu0 %v1251
    %v1253 = vpop.xlane.xlu0 %1252
    %v1254 = vrcp.pop %v1253
    %v1255 = vmul.f32 %v1253, %v1254
    %v1256 = vsub.f32 1.0, %v1255
    %v1257 = vmul.f32 %v1254, %v1256
    %v1258 = vadd.f32 %v1254, %v1257
    %vm1259 = vweird.f32 %v1253
    %vm1260 = vweird.f32 %v1254
    %vm1261 = vmor %vm1259, %vm1260
    %v1262 = vsel %vm1261, %v1254, %v1258
    %v1263 = vand.u32 2147483647, %v1253
    %vm1264 = vcmp.eq.f32.partialorder %v1263, 8.507059e+37
    %v1265 = vand.u32 %v1253, 2147483648
    %v1266 = vor.u32 1.1754944e-38, %v1265
    %v1267 = vsel %vm1264, %v1266, %v1262
    %v1268 = vmul.f32 %v1250, %v1267
    %v1270 = vsel %vm596, %v1268, 0
    %1272 = vmatpush.msra.mxu0 0.0
    %1273 = vmatpush.msra.mxu0 0.0
    %1274 = vmatpush.msra.mxu0 0.0
    %1275 = vmatpush.msra.mxu0 0.0
    %1276 = vmatpush.msra.mxu0 0.0
    %1277 = vmatpush.msra.mxu0 0.0
    %1278 = vmatpush.msra.mxu0 0.0
    %1279 = vmatpush.msra.mxu0 0.0
    %1280 = vmatpush.msra.mxu0 0.0
    %1281 = vmatpush.msra.mxu0 0.0
    %1282 = vmatpush.msra.mxu0 0.0
    %1283 = vmatpush.msra.mxu0 0.0
    %1284 = vmatpush.msra.mxu0 0.0
    %1285 = vmatpush.msra.mxu0 0.0
    %1286 = vmatpush.msra.mxu0 0.0
    %1287 = vmatpush.msra.mxu0 %v1216
    %1288 = vmatmul.f32.gmra.mxu0 %v1270
    %v1289 = vpop.f32.mrf.mxu0
    %v1290 = vadd.f32 0.0, %v1289
    %1291 = vdwg.mxu0
    %1292 = vrot.lane.b32.xlu0 %v1156, 120
    %v1293 = vpop.permute.xlu0 %1292
    %1294 = vrot.lane.b32.xlu0 %v1186, 120
    %v1295 = vpop.permute.xlu0 %1294
    %v1296 = vsel %vm596, %v1293, 0
    %v1298 = vsel %vm596, %v1295, 0
    %1300 = vmatpush.xpose.msra.mxu0 0.0
    %1301 = vmatpush.xpose.msra.mxu0 0.0
    %1302 = vmatpush.xpose.msra.mxu0 0.0
    %1303 = vmatpush.xpose.msra.mxu0 0.0
    %1304 = vmatpush.xpose.msra.mxu0 0.0
    %1305 = vmatpush.xpose.msra.mxu0 0.0
    %1306 = vmatpush.xpose.msra.mxu0 0.0
    %1307 = vmatpush.xpose.msra.mxu0 0.0
    %1308 = vmatpush.xpose.msra.mxu0 0.0
    %1309 = vmatpush.xpose.msra.mxu0 0.0
    %1310 = vmatpush.xpose.msra.mxu0 0.0
    %1311 = vmatpush.xpose.msra.mxu0 0.0
    %1312 = vmatpush.xpose.msra.mxu0 0.0
    %1313 = vmatpush.xpose.msra.mxu0 0.0
    %1314 = vmatpush.xpose.msra.mxu0 0.0
    %1315 = vmatpush.xpose.msra.mxu0 %v1298
    %1316 = vmatmul.f32.gmra.mxu0 %v1296
    %v1317 = vpop.f32.mrf.mxu0
    %v1318 = vadd.f32 0.0, %v1317
    %1319 = vdwg.mxu0
    %v1320 = vmul.f32 %v1318, 0.35355338
    %v1321 = vsel %vm596, %v1320, -inf
    %1322 = vmax.xlane.f32.xlu0 %v1321
    %v1323 = vpop.xlane.xlu0 %1322
    %v1324 = vsub.f32 %v1320, %v1323
    %v1325 = vmul.f32 %v1324, 1.442695
    %v1326 = vpow.pop %v1325
    %v1327 = vsel %vm596, %v1326, 0.0
    %1328 = vadd.xlane.f32.xlu0 %v1327
    %v1329 = vpop.xlane.xlu0 %1328
    %v1330 = vrcp.pop %v1329
    %v1331 = vmul.f32 %v1329, %v1330
    %v1332 = vsub.f32 1.0, %v1331
    %v1333 = vmul.f32 %v1330, %v1332
    %v1334 = vadd.f32 %v1330, %v1333
    %vm1335 = vweird.f32 %v1329
    %vm1336 = vweird.f32 %v1330
    %vm1337 = vmor %vm1335, %vm1336
    %v1338 = vsel %vm1337, %v1330, %v1334
    %v1339 = vand.u32 2147483647, %v1329
    %vm1340 = vcmp.eq.f32.partialorder %v1339, 8.507059e+37
    %v1341 = vand.u32 %v1329, 2147483648
    %v1342 = vor.u32 1.1754944e-38, %v1341
    %v1343 = vsel %vm1340, %v1342, %v1338
    %v1344 = vmul.f32 %v1326, %v1343
    %1346 = vrot.lane.b32.xlu0 %v1216, 120
    %v1347 = vpop.permute.xlu0 %1346
    %v1350 = vsel %vm596, %v1344, 0
    %1352 = vmatpush.msra.mxu0 0.0
    %1353 = vmatpush.msra.mxu0 0.0
    %1354 = vmatpush.msra.mxu0 0.0
    %1355 = vmatpush.msra.mxu0 0.0
    %1356 = vmatpush.msra.mxu0 0.0
    %1357 = vmatpush.msra.mxu0 0.0
    %1358 = vmatpush.msra.mxu0 0.0
    %1359 = vmatpush.msra.mxu0 0.0
    %1360 = vmatpush.msra.mxu0 0.0
    %1361 = vmatpush.msra.mxu0 0.0
    %1362 = vmatpush.msra.mxu0 0.0
    %1363 = vmatpush.msra.mxu0 0.0
    %1364 = vmatpush.msra.mxu0 0.0
    %1365 = vmatpush.msra.mxu0 0.0
    %1366 = vmatpush.msra.mxu0 0.0
    %1367 = vmatpush.msra.mxu0 %v1347
    %1368 = vmatmul.f32.gmra.mxu0 %v1350
    %v1369 = vpop.f32.mrf.mxu0
    %v1370 = vadd.f32 0.0, %v1369
    %1371 = vdwg.mxu0
    %1372 = vrot.lane.b32.xlu0 %v1156, 112
    %v1373 = vpop.permute.xlu0 %1372
    %1374 = vrot.lane.b32.xlu0 %v1186, 112
    %v1375 = vpop.permute.xlu0 %1374
    %v1376 = vsel %vm596, %v1373, 0
    %v1378 = vsel %vm596, %v1375, 0
    %1380 = vmatpush.xpose.msra.mxu0 0.0
    %1381 = vmatpush.xpose.msra.mxu0 0.0
    %1382 = vmatpush.xpose.msra.mxu0 0.0
    %1383 = vmatpush.xpose.msra.mxu0 0.0
    %1384 = vmatpush.xpose.msra.mxu0 0.0
    %1385 = vmatpush.xpose.msra.mxu0 0.0
    %1386 = vmatpush.xpose.msra.mxu0 0.0
    %1387 = vmatpush.xpose.msra.mxu0 0.0
    %1388 = vmatpush.xpose.msra.mxu0 0.0
    %1389 = vmatpush.xpose.msra.mxu0 0.0
    %1390 = vmatpush.xpose.msra.mxu0 0.0
    %1391 = vmatpush.xpose.msra.mxu0 0.0
    %1392 = vmatpush.xpose.msra.mxu0 0.0
    %1393 = vmatpush.xpose.msra.mxu0 0.0
    %1394 = vmatpush.xpose.msra.mxu0 0.0
    %1395 = vmatpush.xpose.msra.mxu0 %v1378
    %1396 = vmatmul.f32.gmra.mxu0 %v1376
    %v1397 = vpop.f32.mrf.mxu0
    %v1398 = vadd.f32 0.0, %v1397
    %1399 = vdwg.mxu0
    %v1400 = vmul.f32 %v1398, 0.35355338
    %v1401 = vsel %vm596, %v1400, -inf
    %1402 = vmax.xlane.f32.xlu0 %v1401
    %v1403 = vpop.xlane.xlu0 %1402
    %v1404 = vsub.f32 %v1400, %v1403
    %v1405 = vmul.f32 %v1404, 1.442695
    %v1406 = vpow.pop %v1405
    %v1407 = vsel %vm596, %v1406, 0.0
    %1408 = vadd.xlane.f32.xlu0 %v1407
    %v1409 = vpop.xlane.xlu0 %1408
    %v1410 = vrcp.pop %v1409
    %v1411 = vmul.f32 %v1409, %v1410
    %v1412 = vsub.f32 1.0, %v1411
    %v1413 = vmul.f32 %v1410, %v1412
    %v1414 = vadd.f32 %v1410, %v1413
    %vm1415 = vweird.f32 %v1409
    %vm1416 = vweird.f32 %v1410
    %vm1417 = vmor %vm1415, %vm1416
    %v1418 = vsel %vm1417, %v1410, %v1414
    %v1419 = vand.u32 2147483647, %v1409
    %vm1420 = vcmp.eq.f32.partialorder %v1419, 8.507059e+37
    %v1421 = vand.u32 %v1409, 2147483648
    %v1422 = vor.u32 1.1754944e-38, %v1421
    %v1423 = vsel %vm1420, %v1422, %v1418
    %v1424 = vmul.f32 %v1406, %v1423
    %1425 = vrot.lane.b32.xlu0 %v1216, 112
    %v1426 = vpop.permute.xlu0 %1425
    %v1429 = vsel %vm596, %v1424, 0
    %1431 = vmatpush.msra.mxu0 0.0
    %1432 = vmatpush.msra.mxu0 0.0
    %1433 = vmatpush.msra.mxu0 0.0
    %1434 = vmatpush.msra.mxu0 0.0
    %1435 = vmatpush.msra.mxu0 0.0
    %1436 = vmatpush.msra.mxu0 0.0
    %1437 = vmatpush.msra.mxu0 0.0
    %1438 = vmatpush.msra.mxu0 0.0
    %1439 = vmatpush.msra.mxu0 0.0
    %1440 = vmatpush.msra.mxu0 0.0
    %1441 = vmatpush.msra.mxu0 0.0
    %1442 = vmatpush.msra.mxu0 0.0
    %1443 = vmatpush.msra.mxu0 0.0
    %1444 = vmatpush.msra.mxu0 0.0
    %1445 = vmatpush.msra.mxu0 0.0
    %1446 = vmatpush.msra.mxu0 %v1426
    %1447 = vmatmul.f32.gmra.mxu0 %v1429
    %v1448 = vpop.f32.mrf.mxu0
    %v1449 = vadd.f32 0.0, %v1448
    %1450 = vdwg.mxu0
    %1451 = vrot.lane.b32.xlu0 %v1156, 104
    %v1452 = vpop.permute.xlu0 %1451
    %1453 = vrot.lane.b32.xlu0 %v1186, 104
    %v1454 = vpop.permute.xlu0 %1453
    %v1455 = vsel %vm596, %v1452, 0
    %v1457 = vsel %vm596, %v1454, 0
    %1459 = vmatpush.xpose.msra.mxu0 0.0
    %1460 = vmatpush.xpose.msra.mxu0 0.0
    %1461 = vmatpush.xpose.msra.mxu0 0.0
    %1462 = vmatpush.xpose.msra.mxu0 0.0
    %1463 = vmatpush.xpose.msra.mxu0 0.0
    %1464 = vmatpush.xpose.msra.mxu0 0.0
    %1465 = vmatpush.xpose.msra.mxu0 0.0
    %1466 = vmatpush.xpose.msra.mxu0 0.0
    %1467 = vmatpush.xpose.msra.mxu0 0.0
    %1468 = vmatpush.xpose.msra.mxu0 0.0
    %1469 = vmatpush.xpose.msra.mxu0 0.0
    %1470 = vmatpush.xpose.msra.mxu0 0.0
    %1471 = vmatpush.xpose.msra.mxu0 0.0
    %1472 = vmatpush.xpose.msra.mxu0 0.0
    %1473 = vmatpush.xpose.msra.mxu0 0.0
    %1474 = vmatpush.xpose.msra.mxu0 %v1457
    %1475 = vmatmul.f32.gmra.mxu0 %v1455
    %v1476 = vpop.f32.mrf.mxu0
    %v1477 = vadd.f32 0.0, %v1476
    %1478 = vdwg.mxu0
    %v1479 = vmul.f32 %v1477, 0.35355338
    %v1480 = vsel %vm596, %v1479, -inf
    %1481 = vmax.xlane.f32.xlu0 %v1480
    %v1482 = vpop.xlane.xlu0 %1481
    %v1483 = vsub.f32 %v1479, %v1482
    %v1484 = vmul.f32 %v1483, 1.442695
    %v1485 = vpow.pop %v1484
    %v1486 = vsel %vm596, %v1485, 0.0
    %1487 = vadd.xlane.f32.xlu0 %v1486
    %v1488 = vpop.xlane.xlu0 %1487
    %v1489 = vrcp.pop %v1488
    %v1490 = vmul.f32 %v1488, %v1489
    %v1491 = vsub.f32 1.0, %v1490
    %v1492 = vmul.f32 %v1489, %v1491
    %v1493 = vadd.f32 %v1489, %v1492
    %vm1494 = vweird.f32 %v1488
    %vm1495 = vweird.f32 %v1489
    %vm1496 = vmor %vm1494, %vm1495
    %v1497 = vsel %vm1496, %v1489, %v1493
    %v1498 = vand.u32 2147483647, %v1488
    %vm1499 = vcmp.eq.f32.partialorder %v1498, 8.507059e+37
    %v1500 = vand.u32 %v1488, 2147483648
    %v1501 = vor.u32 1.1754944e-38, %v1500
    %v1502 = vsel %vm1499, %v1501, %v1497
    %v1503 = vmul.f32 %v1485, %v1502
    %1504 = vrot.lane.b32.xlu0 %v1216, 104
    %v1505 = vpop.permute.xlu0 %1504
    %v1508 = vsel %vm596, %v1503, 0
    %1510 = vmatpush.msra.mxu0 0.0
    %1511 = vmatpush.msra.mxu0 0.0
    %1512 = vmatpush.msra.mxu0 0.0
    %1513 = vmatpush.msra.mxu0 0.0
    %1514 = vmatpush.msra.mxu0 0.0
    %1515 = vmatpush.msra.mxu0 0.0
    %1516 = vmatpush.msra.mxu0 0.0
    %1517 = vmatpush.msra.mxu0 0.0
    %1518 = vmatpush.msra.mxu0 0.0
    %1519 = vmatpush.msra.mxu0 0.0
    %1520 = vmatpush.msra.mxu0 0.0
    %1521 = vmatpush.msra.mxu0 0.0
    %1522 = vmatpush.msra.mxu0 0.0
    %1523 = vmatpush.msra.mxu0 0.0
    %1524 = vmatpush.msra.mxu0 0.0
    %1525 = vmatpush.msra.mxu0 %v1505
    %1526 = vmatmul.f32.gmra.mxu0 %v1508
    %v1527 = vpop.f32.mrf.mxu0
    %v1528 = vadd.f32 0.0, %v1527
    %1529 = vdwg.mxu0
    %1531 = vrot.lane.b32.xlu0 %v1370, 8
    %v1532 = vpop.permute.xlu0 %1531
    %1535 = vrot.lane.b32.xlu0 %v1449, 16
    %v1536 = vpop.permute.xlu0 %1535
    %1539 = vrot.lane.b32.xlu0 %v1528, 24
    %v1540 = vpop.permute.xlu0 %1539
    %v1542 = vsel %vm596, %v1290, %v1532
    %v1543 = vsel %vm922, %v1542, %v1536
    %v1544 = vsel %vm924, %v1543, %v1540
    %s1545 = scalar_lea.vmem [#allocation6], 32
    %v1546 = vld [vmem:[%s1545] sm:$0xff]
    %v1547 = vld [vmem:[%s1545 + $0x8] sm:$0xff]
    %v1548 = vld [vmem:[%s1545 + $0x10] sm:$0xff]
    %v1549 = vld [vmem:[%s1545 + $0x18] sm:$0xff]
    %s1550 = scalar_lea.vmem %s9, 1
    %v1551 = vld [vmem:[%s1550] sm:$0x1]
    %v1553 = vperm.slane %v1551, 0
    %v1556 = vsel %vm516, %v1544, 0
    %1558 = vmatpush.msra.mxu0 0.0
    %1559 = vmatpush.msra.mxu0 0.0
    %1560 = vmatpush.msra.mxu0 0.0
    %1561 = vmatpush.msra.mxu0 0.0
    %1562 = vmatpush.msra.mxu0 0.0
    %1563 = vmatpush.msra.mxu0 0.0
    %1564 = vmatpush.msra.mxu0 0.0
    %1565 = vmatpush.msra.mxu0 0.0
    %1566 = vmatpush.msra.mxu0 0.0
    %1567 = vmatpush.msra.mxu0 0.0
    %1568 = vmatpush.msra.mxu0 0.0
    %1569 = vmatpush.msra.mxu0 0.0
    %1570 = vmatpush.msra.mxu0 %v1549
    %1571 = vmatpush.msra.mxu0 %v1548
    %1572 = vmatpush.msra.mxu0 %v1547
    %1573 = vmatpush.msra.mxu0 %v1546
    %1574 = vmatmul.f32.gmra.mxu0 %v1556
    %v1575 = vpop.f32.mrf.mxu0
    %v1576 = vadd.f32 %v1553, %v1575
    %1577 = vdwg.mxu0
    %v1578 = vadd.f32 %v1124, %v1576
    %v1579 = vadd.f32 %v1578, %v1124
    %s1580 = scalar_lea.vmem %s10, 1
    %v1581 = vld [vmem:[%s1580] sm:$0x1]
    %s1582 = scalar_lea.vmem %s11, 1
    %v1583 = vld [vmem:[%s1582] sm:$0x1]
    %v1584 = vsel %vm516, %v1579, 0.0
    %1585 = vadd.xlane.f32.xlu0 %v1584
    %v1586 = vpop.xlane.xlu0 %1585
    %v1587 = vmul.f32 %v1586, %v130
    %v1588 = vsub.f32 %v1579, %v1587
    %v1589 = vmul.f32 %v1588, %v1588
    %v1590 = vsel %vm516, %v1589, 0.0
    %1591 = vadd.xlane.f32.xlu0 %v1590
    %v1592 = vpop.xlane.xlu0 %1591
    %v1593 = vmul.f32 %v1592, %v130
    %v1594 = vadd.f32 %v1593, 1e-06
    %v1595 = vrsqrt.pop %v1594
    %v1596 = vmul.f32 %v1595, %v1594
    %v1597 = vmul.f32 %v1596, %v1595
    %v1598 = vmul.f32 0.5, %v1597
    %v1599 = vsub.f32 1.5, %v1598
    %v1600 = vmul.f32 %v1595, %v1599
    %v1601 = vmul.f32 %v1594, %v1600
    %vm1602 = vcmp.eq.f32.partialorder %v1594, inf
    %v1603 = vsel %vm1602, %v1594, %v1601
    %vm1604 = vcmp.eq.f32.partialorder %v1594, 0.0
    %v1605 = vand.u32 %v1594, 2147483648
    %v1606 = vsel %vm1604, %v1605, %v1603
    %v1607 = vrcp.pop %v1606
    %v1608 = vmul.f32 %v1606, %v1607
    %v1609 = vsub.f32 1.0, %v1608
    %v1610 = vmul.f32 %v1607, %v1609
    %v1611 = vadd.f32 %v1607, %v1610
    %vm1612 = vweird.f32 %v1606
    %vm1613 = vweird.f32 %v1607
    %vm1614 = vmor %vm1612, %vm1613
    %v1615 = vsel %vm1614, %v1607, %v1611
    %v1616 = vand.u32 2147483647, %v1606
    %vm1617 = vcmp.eq.f32.partialorder %v1616, 8.507059e+37
    %v1618 = vand.u32 %v1606, 2147483648
    %v1619 = vor.u32 1.1754944e-38, %v1618
    %v1620 = vsel %vm1617, %v1619, %v1615
    %v1621 = vmul.f32 %v1588, %v1620
    %v1623 = vperm.slane %v1581, 0
    %v1625 = vmul.f32 %v1623, %v1621
    %v1627 = vperm.slane %v1583, 0
    %v1629 = vadd.f32 %v1625, %v1627
    %s1630 = scalar_lea.vmem [#allocation7], 32
    %v1631 = vld [vmem:[%s1630] sm:$0xff]
    %v1632 = vld [vmem:[%s1630 + $0x8] sm:$0xff]
    %v1633 = vld [vmem:[%s1630 + $0x10] sm:$0xff]
    %v1634 = vld [vmem:[%s1630 + $0x18] sm:$0xff]
    %s1635 = scalar_lea.vmem %s13, 1
    %v1636 = vld [vmem:[%s1635] sm:$0x1]
    %v1638 = vperm.slane %v1636, 0
    %v1641 = vsel %vm516, %v1629, 0
    %1643 = vmatpush.msra.mxu0 0.0
    %1644 = vmatpush.msra.mxu0 0.0
    %1645 = vmatpush.msra.mxu0 0.0
    %1646 = vmatpush.msra.mxu0 0.0
    %1647 = vmatpush.msra.mxu0 0.0
    %1648 = vmatpush.msra.mxu0 0.0
    %1649 = vmatpush.msra.mxu0 0.0
    %1650 = vmatpush.msra.mxu0 0.0
    %1651 = vmatpush.msra.mxu0 0.0
    %1652 = vmatpush.msra.mxu0 0.0
    %1653 = vmatpush.msra.mxu0 0.0
    %1654 = vmatpush.msra.mxu0 0.0
    %1655 = vmatpush.msra.mxu0 %v1634
    %1656 = vmatpush.msra.mxu0 %v1633
    %1657 = vmatpush.msra.mxu0 %v1632
    %1658 = vmatpush.msra.mxu0 %v1631
    %1659 = vmatmul.f32.gmra.mxu0 %v1641
    %v1660 = vpop.f32.mrf.mxu0
    %v1661 = vadd.f32 %v1638, %v1660
    %1662 = vdwg.mxu0
    %v1663 = vmax.f32 %v1661, 0.0
    %s1664 = scalar_lea.vmem %s14, 64
    %v1665 = vld [vmem:[%s1664] sm:$0xff]
    %v1666 = vld [vmem:[%s1664 + $0x8] sm:$0xff]
    %v1667 = vld [vmem:[%s1664 + $0x10] sm:$0xff]
    %v1668 = vld [vmem:[%s1664 + $0x18] sm:$0xff]
    %v1669 = vld [vmem:[%s1664 + $0x20] sm:$0xff]
    %v1670 = vld [vmem:[%s1664 + $0x28] sm:$0xff]
    %v1671 = vld [vmem:[%s1664 + $0x30] sm:$0xff]
    %v1672 = vld [vmem:[%s1664 + $0x38] sm:$0xff]
    %s1673 = scalar_lea.vmem %s15, 1
    %v1674 = vld [vmem:[%s1673] sm:$0x1]
    %v1676 = vperm.slane %v1674, 0
    %v1679 = vsel %vm1051, %v1663, 0
    %1681 = vmatpush.msra.mxu0 0.0
    %1682 = vmatpush.msra.mxu0 0.0
    %1683 = vmatpush.msra.mxu0 0.0
    %1684 = vmatpush.msra.mxu0 0.0
    %1685 = vmatpush.msra.mxu0 0.0
    %1686 = vmatpush.msra.mxu0 0.0
    %1687 = vmatpush.msra.mxu0 0.0
    %1688 = vmatpush.msra.mxu0 0.0
    %1689 = vmatpush.msra.mxu0 %v1672
    %1690 = vmatpush.msra.mxu0 %v1671
    %1691 = vmatpush.msra.mxu0 %v1670
    %1692 = vmatpush.msra.mxu0 %v1669
    %1693 = vmatpush.msra.mxu0 %v1668
    %1694 = vmatpush.msra.mxu0 %v1667
    %1695 = vmatpush.msra.mxu0 %v1666
    %1696 = vmatpush.msra.mxu0 %v1665
    %1697 = vmatmul.f32.gmra.mxu0 %v1679
    %v1698 = vpop.f32.mrf.mxu0
    %v1699 = vadd.f32 %v1676, %v1698
    %1700 = vdwg.mxu0
    %v1701 = vadd.f32 %v1629, %v1699
    %v1702 = vadd.f32 %v1701, %v1629
    %s1703 = scalar_lea.vmem %s16, 1
    %v1704 = vld [vmem:[%s1703] sm:$0x1]
    %s1705 = scalar_lea.vmem %s17, 1
    %v1706 = vld [vmem:[%s1705] sm:$0x1]
    %v1707 = vsel %vm516, %v1702, 0.0
    %1708 = vadd.xlane.f32.xlu0 %v1707
    %v1709 = vpop.xlane.xlu0 %1708
    %v1710 = vmul.f32 %v1709, %v130
    %v1711 = vsub.f32 %v1702, %v1710
    %v1712 = vmul.f32 %v1711, %v1711
    %v1713 = vsel %vm516, %v1712, 0.0
    %1714 = vadd.xlane.f32.xlu0 %v1713
    %v1715 = vpop.xlane.xlu0 %1714
    %v1716 = vmul.f32 %v1715, %v130
    %v1717 = vadd.f32 %v1716, 1e-06
    %v1718 = vrsqrt.pop %v1717
    %v1719 = vmul.f32 %v1718, %v1717
    %v1720 = vmul.f32 %v1719, %v1718
    %v1721 = vmul.f32 0.5, %v1720
    %v1722 = vsub.f32 1.5, %v1721
    %v1723 = vmul.f32 %v1718, %v1722
    %v1724 = vmul.f32 %v1717, %v1723
    %vm1725 = vcmp.eq.f32.partialorder %v1717, inf
    %v1726 = vsel %vm1725, %v1717, %v1724
    %vm1727 = vcmp.eq.f32.partialorder %v1717, 0.0
    %v1728 = vand.u32 %v1717, 2147483648
    %v1729 = vsel %vm1727, %v1728, %v1726
    %v1730 = vrcp.pop %v1729
    %v1731 = vmul.f32 %v1729, %v1730
    %v1732 = vsub.f32 1.0, %v1731
    %v1733 = vmul.f32 %v1730, %v1732
    %v1734 = vadd.f32 %v1730, %v1733
    %vm1735 = vweird.f32 %v1729
    %vm1736 = vweird.f32 %v1730
    %vm1737 = vmor %vm1735, %vm1736
    %v1738 = vsel %vm1737, %v1730, %v1734
    %v1739 = vand.u32 2147483647, %v1729
    %vm1740 = vcmp.eq.f32.partialorder %v1739, 8.507059e+37
    %v1741 = vand.u32 %v1729, 2147483648
    %v1742 = vor.u32 1.1754944e-38, %v1741
    %v1743 = vsel %vm1740, %v1742, %v1738
    %v1744 = vmul.f32 %v1711, %v1743
    %v1746 = vperm.slane %v1704, 0
    %v1748 = vmul.f32 %v1746, %v1744
    %v1750 = vperm.slane %v1706, 0
    %v1752 = vadd.f32 %v1748, %v1750
    %1753 = vst.msk [vmem:[#allocation9] sm:$0xff] %vm516, %v1752
    %s1754 = sld [smem:[#allocation2 + $0x80]]
    %s1755 = scalar_lea.vmem %s1, %s1754
    %v1756 = vld [vmem:[%s1755] sm:$0x1]
    %s1757 = sld [smem:[#allocation2 + $0x81]]
    %s1758 = scalar_lea.vmem %s1, %s1757
    %v1759 = vld [vmem:[%s1758] sm:$0x1]
    %s1760 = sld [smem:[#allocation2 + $0x82]]
    %s1761 = scalar_lea.vmem %s1, %s1760
    %v1762 = vld [vmem:[%s1761] sm:$0x1]
    %s1763 = sld [smem:[#allocation2 + $0x83]]
    %s1764 = scalar_lea.vmem %s1, %s1763
    %v1765 = vld [vmem:[%s1764] sm:$0x1]
    %s1766 = sld [smem:[#allocation2 + $0x84]]
    %s1767 = scalar_lea.vmem %s1, %s1766
    %v1768 = vld [vmem:[%s1767] sm:$0x1]
    %s1769 = sld [smem:[#allocation2 + $0x85]]
    %s1770 = scalar_lea.vmem %s1, %s1769
    %v1771 = vld [vmem:[%s1770] sm:$0x1]
    %s1772 = sld [smem:[#allocation2 + $0x86]]
    %s1773 = scalar_lea.vmem %s1, %s1772
    %v1774 = vld [vmem:[%s1773] sm:$0x1]
    %s1775 = sld [smem:[#allocation2 + $0x87]]
    %s1776 = scalar_lea.vmem %s1, %s1775
    %v1777 = vld [vmem:[%s1776] sm:$0x1]
    %v1779 = vrot.slane %v1759, 7
    %v1782 = vrot.slane %v1762, 6
    %v1785 = vrot.slane %v1765, 5
    %v1788 = vrot.slane %v1768, 4
    %v1791 = vrot.slane %v1771, 3
    %v1794 = vrot.slane %v1774, 2
    %v1797 = vrot.slane %v1777, 1
    %v1799 = vsel %vm493, %v1756, %v1779
    %v1800 = vsel %vm495, %v1799, %v1782
    %v1801 = vsel %vm497, %v1800, %v1785
    %v1802 = vsel %vm499, %v1801, %v1788
    %v1803 = vsel %vm501, %v1802, %v1791
    %v1804 = vsel %vm503, %v1803, %v1794
    %v1805 = vsel %vm505, %v1804, %v1797
    %v1806 = vadd.f32 %v1805, %v447
    %v1807 = vld [vmem:[%s2] sm:$0xff]
    %v1808 = vld [vmem:[%s2 + $0x8] sm:$0xff]
    %v1809 = vld [vmem:[%s2 + $0x10] sm:$0xff]
    %v1810 = vld [vmem:[%s2 + $0x18] sm:$0xff]
    %v1811 = vld [vmem:[%s3] sm:$0x1]
    %v1813 = vperm.slane %v1811, 0
    %v1816 = vsel %vm516, %v1806, 0
    %1818 = vmatpush.msra.mxu0 0.0
    %1819 = vmatpush.msra.mxu0 0.0
    %1820 = vmatpush.msra.mxu0 0.0
    %1821 = vmatpush.msra.mxu0 0.0
    %1822 = vmatpush.msra.mxu0 0.0
    %1823 = vmatpush.msra.mxu0 0.0
    %1824 = vmatpush.msra.mxu0 0.0
    %1825 = vmatpush.msra.mxu0 0.0
    %1826 = vmatpush.msra.mxu0 0.0
    %1827 = vmatpush.msra.mxu0 0.0
    %1828 = vmatpush.msra.mxu0 0.0
    %1829 = vmatpush.msra.mxu0 0.0
    %1830 = vmatpush.msra.mxu0 %v1810
    %1831 = vmatpush.msra.mxu0 %v1809
    %1832 = vmatpush.msra.mxu0 %v1808
    %1833 = vmatpush.msra.mxu0 %v1807
    %1834 = vmatmul.f32.gmra.mxu0 %v1816
    %v1835 = vpop.f32.mrf.mxu0
    %v1836 = vadd.f32 %v1813, %v1835
    %1837 = vdwg.mxu0
    %v1838 = vld [vmem:[%s4] sm:$0xff]
    %v1839 = vld [vmem:[%s4 + $0x8] sm:$0xff]
    %v1840 = vld [vmem:[%s4 + $0x10] sm:$0xff]
    %v1841 = vld [vmem:[%s4 + $0x18] sm:$0xff]
    %v1842 = vld [vmem:[%s5] sm:$0x1]
    %v1844 = vperm.slane %v1842, 0
    %1846 = vmatpush.msra.mxu0 0.0
    %1847 = vmatpush.msra.mxu0 0.0
    %1848 = vmatpush.msra.mxu0 0.0
    %1849 = vmatpush.msra.mxu0 0.0
    %1850 = vmatpush.msra.mxu0 0.0
    %1851 = vmatpush.msra.mxu0 0.0
    %1852 = vmatpush.msra.mxu0 0.0
    %1853 = vmatpush.msra.mxu0 0.0
    %1854 = vmatpush.msra.mxu0 0.0
    %1855 = vmatpush.msra.mxu0 0.0
    %1856 = vmatpush.msra.mxu0 0.0
    %1857 = vmatpush.msra.mxu0 0.0
    %1858 = vmatpush.msra.mxu0 %v1841
    %1859 = vmatpush.msra.mxu0 %v1840
    %1860 = vmatpush.msra.mxu0 %v1839
    %1861 = vmatpush.msra.mxu0 %v1838
    %1862 = vmatmul.f32.gmra.mxu0 %v1816
    %v1863 = vpop.f32.mrf.mxu0
    %v1864 = vadd.f32 %v1844, %v1863
    %1865 = vdwg.mxu0
    %v1866 = vld [vmem:[%s6] sm:$0xff]
    %v1867 = vld [vmem:[%s6 + $0x8] sm:$0xff]
    %v1868 = vld [vmem:[%s6 + $0x10] sm:$0xff]
    %v1869 = vld [vmem:[%s6 + $0x18] sm:$0xff]
    %v1870 = vld [vmem:[%s7] sm:$0x1]
    %v1872 = vperm.slane %v1870, 0
    %1874 = vmatpush.msra.mxu0 0.0
    %1875 = vmatpush.msra.mxu0 0.0
    %1876 = vmatpush.msra.mxu0 0.0
    %1877 = vmatpush.msra.mxu0 0.0
    %1878 = vmatpush.msra.mxu0 0.0
    %1879 = vmatpush.msra.mxu0 0.0
    %1880 = vmatpush.msra.mxu0 0.0
    %1881 = vmatpush.msra.mxu0 0.0
    %1882 = vmatpush.msra.mxu0 0.0
    %1883 = vmatpush.msra.mxu0 0.0
    %1884 = vmatpush.msra.mxu0 0.0
    %1885 = vmatpush.msra.mxu0 0.0
    %1886 = vmatpush.msra.mxu0 %v1869
    %1887 = vmatpush.msra.mxu0 %v1868
    %1888 = vmatpush.msra.mxu0 %v1867
    %1889 = vmatpush.msra.mxu0 %v1866
    %1890 = vmatmul.f32.gmra.mxu0 %v1816
    %v1891 = vpop.f32.mrf.mxu0
    %v1892 = vadd.f32 %v1872, %v1891
    %1893 = vdwg.mxu0
    %v1895 = vsel %vm596, %v1836, 0
    %v1898 = vsel %vm596, %v1864, 0
    %1900 = vmatpush.xpose.msra.mxu0 0.0
    %1901 = vmatpush.xpose.msra.mxu0 0.0
    %1902 = vmatpush.xpose.msra.mxu0 0.0
    %1903 = vmatpush.xpose.msra.mxu0 0.0
    %1904 = vmatpush.xpose.msra.mxu0 0.0
    %1905 = vmatpush.xpose.msra.mxu0 0.0
    %1906 = vmatpush.xpose.msra.mxu0 0.0
    %1907 = vmatpush.xpose.msra.mxu0 0.0
    %1908 = vmatpush.xpose.msra.mxu0 0.0
    %1909 = vmatpush.xpose.msra.mxu0 0.0
    %1910 = vmatpush.xpose.msra.mxu0 0.0
    %1911 = vmatpush.xpose.msra.mxu0 0.0
    %1912 = vmatpush.xpose.msra.mxu0 0.0
    %1913 = vmatpush.xpose.msra.mxu0 0.0
    %1914 = vmatpush.xpose.msra.mxu0 0.0
    %1915 = vmatpush.xpose.msra.mxu0 %v1898
    %1916 = vmatmul.f32.gmra.mxu0 %v1895
    %v1917 = vpop.f32.mrf.mxu0
    %v1918 = vadd.f32 0.0, %v1917
    %1919 = vdwg.mxu0
    %v1920 = vmul.f32 %v1918, 0.35355338
    %v1921 = vsel %vm596, %v1920, -inf
    %1922 = vmax.xlane.f32.xlu0 %v1921
    %v1923 = vpop.xlane.xlu0 %1922
    %v1924 = vsub.f32 %v1920, %v1923
    %v1925 = vmul.f32 %v1924, 1.442695
    %v1926 = vpow.pop %v1925
    %v1927 = vsel %vm596, %v1926, 0.0
    %1928 = vadd.xlane.f32.xlu0 %v1927
    %v1929 = vpop.xlane.xlu0 %1928
    %v1930 = vrcp.pop %v1929
    %v1931 = vmul.f32 %v1929, %v1930
    %v1932 = vsub.f32 1.0, %v1931
    %v1933 = vmul.f32 %v1930, %v1932
    %v1934 = vadd.f32 %v1930, %v1933
    %vm1935 = vweird.f32 %v1929
    %vm1936 = vweird.f32 %v1930
    %vm1937 = vmor %vm1935, %vm1936
    %v1938 = vsel %vm1937, %v1930, %v1934
    %v1939 = vand.u32 2147483647, %v1929
    %vm1940 = vcmp.eq.f32.partialorder %v1939, 8.507059e+37
    %v1941 = vand.u32 %v1929, 2147483648
    %v1942 = vor.u32 1.1754944e-38, %v1941
    %v1943 = vsel %vm1940, %v1942, %v1938
    %v1944 = vmul.f32 %v1926, %v1943
    %v1946 = vsel %vm596, %v1944, 0
    %1948 = vmatpush.msra.mxu0 0.0
    %1949 = vmatpush.msra.mxu0 0.0
    %1950 = vmatpush.msra.mxu0 0.0
    %1951 = vmatpush.msra.mxu0 0.0
    %1952 = vmatpush.msra.mxu0 0.0
    %1953 = vmatpush.msra.mxu0 0.0
    %1954 = vmatpush.msra.mxu0 0.0
    %1955 = vmatpush.msra.mxu0 0.0
    %1956 = vmatpush.msra.mxu0 0.0
    %1957 = vmatpush.msra.mxu0 0.0
    %1958 = vmatpush.msra.mxu0 0.0
    %1959 = vmatpush.msra.mxu0 0.0
    %1960 = vmatpush.msra.mxu0 0.0
    %1961 = vmatpush.msra.mxu0 0.0
    %1962 = vmatpush.msra.mxu0 0.0
    %1963 = vmatpush.msra.mxu0 %v1892
    %1964 = vmatmul.f32.gmra.mxu0 %v1946
    %v1965 = vpop.f32.mrf.mxu0
    %v1966 = vadd.f32 0.0, %v1965
    %1967 = vdwg.mxu0
    %1968 = vrot.lane.b32.xlu0 %v1836, 120
    %v1969 = vpop.permute.xlu0 %1968
    %1970 = vrot.lane.b32.xlu0 %v1864, 120
    %v1971 = vpop.permute.xlu0 %1970
    %v1972 = vsel %vm596, %v1969, 0
    %v1974 = vsel %vm596, %v1971, 0
    %1976 = vmatpush.xpose.msra.mxu0 0.0
    %1977 = vmatpush.xpose.msra.mxu0 0.0
    %1978 = vmatpush.xpose.msra.mxu0 0.0
    %1979 = vmatpush.xpose.msra.mxu0 0.0
    %1980 = vmatpush.xpose.msra.mxu0 0.0
    %1981 = vmatpush.xpose.msra.mxu0 0.0
    %1982 = vmatpush.xpose.msra.mxu0 0.0
    %1983 = vmatpush.xpose.msra.mxu0 0.0
    %1984 = vmatpush.xpose.msra.mxu0 0.0
    %1985 = vmatpush.xpose.msra.mxu0 0.0
    %1986 = vmatpush.xpose.msra.mxu0 0.0
    %1987 = vmatpush.xpose.msra.mxu0 0.0
    %1988 = vmatpush.xpose.msra.mxu0 0.0
    %1989 = vmatpush.xpose.msra.mxu0 0.0
    %1990 = vmatpush.xpose.msra.mxu0 0.0
    %1991 = vmatpush.xpose.msra.mxu0 %v1974
    %1992 = vmatmul.f32.gmra.mxu0 %v1972
    %v1993 = vpop.f32.mrf.mxu0
    %v1994 = vadd.f32 0.0, %v1993
    %1995 = vdwg.mxu0
    %v1996 = vmul.f32 %v1994, 0.35355338
    %v1997 = vsel %vm596, %v1996, -inf
    %1998 = vmax.xlane.f32.xlu0 %v1997
    %v1999 = vpop.xlane.xlu0 %1998
    %v2000 = vsub.f32 %v1996, %v1999
    %v2001 = vmul.f32 %v2000, 1.442695
    %v2002 = vpow.pop %v2001
    %v2003 = vsel %vm596, %v2002, 0.0
    %2004 = vadd.xlane.f32.xlu0 %v2003
    %v2005 = vpop.xlane.xlu0 %2004
    %v2006 = vrcp.pop %v2005
    %v2007 = vmul.f32 %v2005, %v2006
    %v2008 = vsub.f32 1.0, %v2007
    %v2009 = vmul.f32 %v2006, %v2008
    %v2010 = vadd.f32 %v2006, %v2009
    %vm2011 = vweird.f32 %v2005
    %vm2012 = vweird.f32 %v2006
    %vm2013 = vmor %vm2011, %vm2012
    %v2014 = vsel %vm2013, %v2006, %v2010
    %v2015 = vand.u32 2147483647, %v2005
    %vm2016 = vcmp.eq.f32.partialorder %v2015, 8.507059e+37
    %v2017 = vand.u32 %v2005, 2147483648
    %v2018 = vor.u32 1.1754944e-38, %v2017
    %v2019 = vsel %vm2016, %v2018, %v2014
    %v2020 = vmul.f32 %v2002, %v2019
    %2022 = vrot.lane.b32.xlu0 %v1892, 120
    %v2023 = vpop.permute.xlu0 %2022
    %v2026 = vsel %vm596, %v2020, 0
    %2028 = vmatpush.msra.mxu0 0.0
    %2029 = vmatpush.msra.mxu0 0.0
    %2030 = vmatpush.msra.mxu0 0.0
    %2031 = vmatpush.msra.mxu0 0.0
    %2032 = vmatpush.msra.mxu0 0.0
    %2033 = vmatpush.msra.mxu0 0.0
    %2034 = vmatpush.msra.mxu0 0.0
    %2035 = vmatpush.msra.mxu0 0.0
    %2036 = vmatpush.msra.mxu0 0.0
    %2037 = vmatpush.msra.mxu0 0.0
    %2038 = vmatpush.msra.mxu0 0.0
    %2039 = vmatpush.msra.mxu0 0.0
    %2040 = vmatpush.msra.mxu0 0.0
    %2041 = vmatpush.msra.mxu0 0.0
    %2042 = vmatpush.msra.mxu0 0.0
    %2043 = vmatpush.msra.mxu0 %v2023
    %2044 = vmatmul.f32.gmra.mxu0 %v2026
    %v2045 = vpop.f32.mrf.mxu0
    %v2046 = vadd.f32 0.0, %v2045
    %2047 = vdwg.mxu0
    %2048 = vrot.lane.b32.xlu0 %v1836, 112
    %v2049 = vpop.permute.xlu0 %2048
    %2050 = vrot.lane.b32.xlu0 %v1864, 112
    %v2051 = vpop.permute.xlu0 %2050
    %v2052 = vsel %vm596, %v2049, 0
    %v2054 = vsel %vm596, %v2051, 0
    %2056 = vmatpush.xpose.msra.mxu0 0.0
    %2057 = vmatpush.xpose.msra.mxu0 0.0
    %2058 = vmatpush.xpose.msra.mxu0 0.0
    %2059 = vmatpush.xpose.msra.mxu0 0.0
    %2060 = vmatpush.xpose.msra.mxu0 0.0
    %2061 = vmatpush.xpose.msra.mxu0 0.0
    %2062 = vmatpush.xpose.msra.mxu0 0.0
    %2063 = vmatpush.xpose.msra.mxu0 0.0
    %2064 = vmatpush.xpose.msra.mxu0 0.0
    %2065 = vmatpush.xpose.msra.mxu0 0.0
    %2066 = vmatpush.xpose.msra.mxu0 0.0
    %2067 = vmatpush.xpose.msra.mxu0 0.0
    %2068 = vmatpush.xpose.msra.mxu0 0.0
    %2069 = vmatpush.xpose.msra.mxu0 0.0
    %2070 = vmatpush.xpose.msra.mxu0 0.0
    %2071 = vmatpush.xpose.msra.mxu0 %v2054
    %2072 = vmatmul.f32.gmra.mxu0 %v2052
    %v2073 = vpop.f32.mrf.mxu0
    %v2074 = vadd.f32 0.0, %v2073
    %2075 = vdwg.mxu0
    %v2076 = vmul.f32 %v2074, 0.35355338
    %v2077 = vsel %vm596, %v2076, -inf
    %2078 = vmax.xlane.f32.xlu0 %v2077
    %v2079 = vpop.xlane.xlu0 %2078
    %v2080 = vsub.f32 %v2076, %v2079
    %v2081 = vmul.f32 %v2080, 1.442695
    %v2082 = vpow.pop %v2081
    %v2083 = vsel %vm596, %v2082, 0.0
    %2084 = vadd.xlane.f32.xlu0 %v2083
    %v2085 = vpop.xlane.xlu0 %2084
    %v2086 = vrcp.pop %v2085
    %v2087 = vmul.f32 %v2085, %v2086
    %v2088 = vsub.f32 1.0, %v2087
    %v2089 = vmul.f32 %v2086, %v2088
    %v2090 = vadd.f32 %v2086, %v2089
    %vm2091 = vweird.f32 %v2085
    %vm2092 = vweird.f32 %v2086
    %vm2093 = vmor %vm2091, %vm2092
    %v2094 = vsel %vm2093, %v2086, %v2090
    %v2095 = vand.u32 2147483647, %v2085
    %vm2096 = vcmp.eq.f32.partialorder %v2095, 8.507059e+37
    %v2097 = vand.u32 %v2085, 2147483648
    %v2098 = vor.u32 1.1754944e-38, %v2097
    %v2099 = vsel %vm2096, %v2098, %v2094
    %v2100 = vmul.f32 %v2082, %v2099
    %2101 = vrot.lane.b32.xlu0 %v1892, 112
    %v2102 = vpop.permute.xlu0 %2101
    %v2105 = vsel %vm596, %v2100, 0
    %2107 = vmatpush.msra.mxu0 0.0
    %2108 = vmatpush.msra.mxu0 0.0
    %2109 = vmatpush.msra.mxu0 0.0
    %2110 = vmatpush.msra.mxu0 0.0
    %2111 = vmatpush.msra.mxu0 0.0
    %2112 = vmatpush.msra.mxu0 0.0
    %2113 = vmatpush.msra.mxu0 0.0
    %2114 = vmatpush.msra.mxu0 0.0
    %2115 = vmatpush.msra.mxu0 0.0
    %2116 = vmatpush.msra.mxu0 0.0
    %2117 = vmatpush.msra.mxu0 0.0
    %2118 = vmatpush.msra.mxu0 0.0
    %2119 = vmatpush.msra.mxu0 0.0
    %2120 = vmatpush.msra.mxu0 0.0
    %2121 = vmatpush.msra.mxu0 0.0
    %2122 = vmatpush.msra.mxu0 %v2102
    %2123 = vmatmul.f32.gmra.mxu0 %v2105
    %v2124 = vpop.f32.mrf.mxu0
    %v2125 = vadd.f32 0.0, %v2124
    %2126 = vdwg.mxu0
    %2127 = vrot.lane.b32.xlu0 %v1836, 104
    %v2128 = vpop.permute.xlu0 %2127
    %2129 = vrot.lane.b32.xlu0 %v1864, 104
    %v2130 = vpop.permute.xlu0 %2129
    %v2131 = vsel %vm596, %v2128, 0
    %v2133 = vsel %vm596, %v2130, 0
    %2135 = vmatpush.xpose.msra.mxu0 0.0
    %2136 = vmatpush.xpose.msra.mxu0 0.0
    %2137 = vmatpush.xpose.msra.mxu0 0.0
    %2138 = vmatpush.xpose.msra.mxu0 0.0
    %2139 = vmatpush.xpose.msra.mxu0 0.0
    %2140 = vmatpush.xpose.msra.mxu0 0.0
    %2141 = vmatpush.xpose.msra.mxu0 0.0
    %2142 = vmatpush.xpose.msra.mxu0 0.0
    %2143 = vmatpush.xpose.msra.mxu0 0.0
    %2144 = vmatpush.xpose.msra.mxu0 0.0
    %2145 = vmatpush.xpose.msra.mxu0 0.0
    %2146 = vmatpush.xpose.msra.mxu0 0.0
    %2147 = vmatpush.xpose.msra.mxu0 0.0
    %2148 = vmatpush.xpose.msra.mxu0 0.0
    %2149 = vmatpush.xpose.msra.mxu0 0.0
    %2150 = vmatpush.xpose.msra.mxu0 %v2133
    %2151 = vmatmul.f32.gmra.mxu0 %v2131
    %v2152 = vpop.f32.mrf.mxu0
    %v2153 = vadd.f32 0.0, %v2152
    %2154 = vdwg.mxu0
    %v2155 = vmul.f32 %v2153, 0.35355338
    %v2156 = vsel %vm596, %v2155, -inf
    %2157 = vmax.xlane.f32.xlu0 %v2156
    %v2158 = vpop.xlane.xlu0 %2157
    %v2159 = vsub.f32 %v2155, %v2158
    %v2160 = vmul.f32 %v2159, 1.442695
    %v2161 = vpow.pop %v2160
    %v2162 = vsel %vm596, %v2161, 0.0
    %2163 = vadd.xlane.f32.xlu0 %v2162
    %v2164 = vpop.xlane.xlu0 %2163
    %v2165 = vrcp.pop %v2164
    %v2166 = vmul.f32 %v2164, %v2165
    %v2167 = vsub.f32 1.0, %v2166
    %v2168 = vmul.f32 %v2165, %v2167
    %v2169 = vadd.f32 %v2165, %v2168
    %vm2170 = vweird.f32 %v2164
    %vm2171 = vweird.f32 %v2165
    %vm2172 = vmor %vm2170, %vm2171
    %v2173 = vsel %vm2172, %v2165, %v2169
    %v2174 = vand.u32 2147483647, %v2164
    %vm2175 = vcmp.eq.f32.partialorder %v2174, 8.507059e+37
    %v2176 = vand.u32 %v2164, 2147483648
    %v2177 = vor.u32 1.1754944e-38, %v2176
    %v2178 = vsel %vm2175, %v2177, %v2173
    %v2179 = vmul.f32 %v2161, %v2178
    %2180 = vrot.lane.b32.xlu0 %v1892, 104
    %v2181 = vpop.permute.xlu0 %2180
    %v2184 = vsel %vm596, %v2179, 0
    %2186 = vmatpush.msra.mxu0 0.0
    %2187 = vmatpush.msra.mxu0 0.0
    %2188 = vmatpush.msra.mxu0 0.0
    %2189 = vmatpush.msra.mxu0 0.0
    %2190 = vmatpush.msra.mxu0 0.0
    %2191 = vmatpush.msra.mxu0 0.0
    %2192 = vmatpush.msra.mxu0 0.0
    %2193 = vmatpush.msra.mxu0 0.0
    %2194 = vmatpush.msra.mxu0 0.0
    %2195 = vmatpush.msra.mxu0 0.0
    %2196 = vmatpush.msra.mxu0 0.0
    %2197 = vmatpush.msra.mxu0 0.0
    %2198 = vmatpush.msra.mxu0 0.0
    %2199 = vmatpush.msra.mxu0 0.0
    %2200 = vmatpush.msra.mxu0 0.0
    %2201 = vmatpush.msra.mxu0 %v2181
    %2202 = vmatmul.f32.gmra.mxu0 %v2184
    %v2203 = vpop.f32.mrf.mxu0
    %v2204 = vadd.f32 0.0, %v2203
    %2205 = vdwg.mxu0
    %2207 = vrot.lane.b32.xlu0 %v2046, 8
    %v2208 = vpop.permute.xlu0 %2207
    %2211 = vrot.lane.b32.xlu0 %v2125, 16
    %v2212 = vpop.permute.xlu0 %2211
    %2215 = vrot.lane.b32.xlu0 %v2204, 24
    %v2216 = vpop.permute.xlu0 %2215
    %v2218 = vsel %vm596, %v1966, %v2208
    %v2219 = vsel %vm922, %v2218, %v2212
    %v2220 = vsel %vm924, %v2219, %v2216
    %v2221 = vld [vmem:[#allocation6] sm:$0xff]
    %v2222 = vld [vmem:[#allocation6 + $0x8] sm:$0xff]
    %v2223 = vld [vmem:[#allocation6 + $0x10] sm:$0xff]
    %v2224 = vld [vmem:[#allocation6 + $0x18] sm:$0xff]
    %v2225 = vld [vmem:[%s9] sm:$0x1]
    %v2227 = vperm.slane %v2225, 0
    %v2230 = vsel %vm516, %v2220, 0
    %2232 = vmatpush.msra.mxu0 0.0
    %2233 = vmatpush.msra.mxu0 0.0
    %2234 = vmatpush.msra.mxu0 0.0
    %2235 = vmatpush.msra.mxu0 0.0
    %2236 = vmatpush.msra.mxu0 0.0
    %2237 = vmatpush.msra.mxu0 0.0
    %2238 = vmatpush.msra.mxu0 0.0
    %2239 = vmatpush.msra.mxu0 0.0
    %2240 = vmatpush.msra.mxu0 0.0
    %2241 = vmatpush.msra.mxu0 0.0
    %2242 = vmatpush.msra.mxu0 0.0
    %2243 = vmatpush.msra.mxu0 0.0
    %2244 = vmatpush.msra.mxu0 %v2224
    %2245 = vmatpush.msra.mxu0 %v2223
    %2246 = vmatpush.msra.mxu0 %v2222
    %2247 = vmatpush.msra.mxu0 %v2221
    %2248 = vmatmul.f32.gmra.mxu0 %v2230
    %v2249 = vpop.f32.mrf.mxu0
    %v2250 = vadd.f32 %v2227, %v2249
    %2251 = vdwg.mxu0
    %v2252 = vadd.f32 %v1806, %v2250
    %v2253 = vadd.f32 %v2252, %v1806
    %v2254 = vld [vmem:[%s10] sm:$0x1]
    %v2255 = vld [vmem:[%s11] sm:$0x1]
    %v2256 = vsel %vm516, %v2253, 0.0
    %2257 = vadd.xlane.f32.xlu0 %v2256
    %v2258 = vpop.xlane.xlu0 %2257
    %v2259 = vmul.f32 %v2258, %v130
    %v2260 = vsub.f32 %v2253, %v2259
    %v2261 = vmul.f32 %v2260, %v2260
    %v2262 = vsel %vm516, %v2261, 0.0
    %2263 = vadd.xlane.f32.xlu0 %v2262
    %v2264 = vpop.xlane.xlu0 %2263
    %v2265 = vmul.f32 %v2264, %v130
    %v2266 = vadd.f32 %v2265, 1e-06
    %v2267 = vrsqrt.pop %v2266
    %v2268 = vmul.f32 %v2267, %v2266
    %v2269 = vmul.f32 %v2268, %v2267
    %v2270 = vmul.f32 0.5, %v2269
    %v2271 = vsub.f32 1.5, %v2270
    %v2272 = vmul.f32 %v2267, %v2271
    %v2273 = vmul.f32 %v2266, %v2272
    %vm2274 = vcmp.eq.f32.partialorder %v2266, inf
    %v2275 = vsel %vm2274, %v2266, %v2273
    %vm2276 = vcmp.eq.f32.partialorder %v2266, 0.0
    %v2277 = vand.u32 %v2266, 2147483648
    %v2278 = vsel %vm2276, %v2277, %v2275
    %v2279 = vrcp.pop %v2278
    %v2280 = vmul.f32 %v2278, %v2279
    %v2281 = vsub.f32 1.0, %v2280
    %v2282 = vmul.f32 %v2279, %v2281
    %v2283 = vadd.f32 %v2279, %v2282
    %vm2284 = vweird.f32 %v2278
    %vm2285 = vweird.f32 %v2279
    %vm2286 = vmor %vm2284, %vm2285
    %v2287 = vsel %vm2286, %v2279, %v2283
    %v2288 = vand.u32 2147483647, %v2278
    %vm2289 = vcmp.eq.f32.partialorder %v2288, 8.507059e+37
    %v2290 = vand.u32 %v2278, 2147483648
    %v2291 = vor.u32 1.1754944e-38, %v2290
    %v2292 = vsel %vm2289, %v2291, %v2287
    %v2293 = vmul.f32 %v2260, %v2292
    %v2295 = vperm.slane %v2254, 0
    %v2297 = vmul.f32 %v2295, %v2293
    %v2299 = vperm.slane %v2255, 0
    %v2301 = vadd.f32 %v2297, %v2299
    %v2302 = vld [vmem:[#allocation7] sm:$0xff]
    %v2303 = vld [vmem:[#allocation7 + $0x8] sm:$0xff]
    %v2304 = vld [vmem:[#allocation7 + $0x10] sm:$0xff]
    %v2305 = vld [vmem:[#allocation7 + $0x18] sm:$0xff]
    %v2306 = vld [vmem:[%s13] sm:$0x1]
    %v2308 = vperm.slane %v2306, 0
    %v2311 = vsel %vm516, %v2301, 0
    %2313 = vmatpush.msra.mxu0 0.0
    %2314 = vmatpush.msra.mxu0 0.0
    %2315 = vmatpush.msra.mxu0 0.0
    %2316 = vmatpush.msra.mxu0 0.0
    %2317 = vmatpush.msra.mxu0 0.0
    %2318 = vmatpush.msra.mxu0 0.0
    %2319 = vmatpush.msra.mxu0 0.0
    %2320 = vmatpush.msra.mxu0 0.0
    %2321 = vmatpush.msra.mxu0 0.0
    %2322 = vmatpush.msra.mxu0 0.0
    %2323 = vmatpush.msra.mxu0 0.0
    %2324 = vmatpush.msra.mxu0 0.0
    %2325 = vmatpush.msra.mxu0 %v2305
    %2326 = vmatpush.msra.mxu0 %v2304
    %2327 = vmatpush.msra.mxu0 %v2303
    %2328 = vmatpush.msra.mxu0 %v2302
    %2329 = vmatmul.f32.gmra.mxu0 %v2311
    %v2330 = vpop.f32.mrf.mxu0
    %v2331 = vadd.f32 %v2308, %v2330
    %2332 = vdwg.mxu0
    %v2333 = vmax.f32 %v2331, 0.0
    %v2334 = vld [vmem:[%s14] sm:$0xff]
    %v2335 = vld [vmem:[%s14 + $0x8] sm:$0xff]
    %v2336 = vld [vmem:[%s14 + $0x10] sm:$0xff]
    %v2337 = vld [vmem:[%s14 + $0x18] sm:$0xff]
    %v2338 = vld [vmem:[%s14 + $0x20] sm:$0xff]
    %v2339 = vld [vmem:[%s14 + $0x28] sm:$0xff]
    %v2340 = vld [vmem:[%s14 + $0x30] sm:$0xff]
    %v2341 = vld [vmem:[%s14 + $0x38] sm:$0xff]
    %v2342 = vld [vmem:[%s15] sm:$0x1]
    %v2344 = vperm.slane %v2342, 0
    %v2347 = vsel %vm1051, %v2333, 0
    %2349 = vmatpush.msra.mxu0 0.0
    %2350 = vmatpush.msra.mxu0 0.0
    %2351 = vmatpush.msra.mxu0 0.0
    %2352 = vmatpush.msra.mxu0 0.0
    %2353 = vmatpush.msra.mxu0 0.0
    %2354 = vmatpush.msra.mxu0 0.0
    %2355 = vmatpush.msra.mxu0 0.0
    %2356 = vmatpush.msra.mxu0 0.0
    %2357 = vmatpush.msra.mxu0 %v2341
    %2358 = vmatpush.msra.mxu0 %v2340
    %2359 = vmatpush.msra.mxu0 %v2339
    %2360 = vmatpush.msra.mxu0 %v2338
    %2361 = vmatpush.msra.mxu0 %v2337
    %2362 = vmatpush.msra.mxu0 %v2336
    %2363 = vmatpush.msra.mxu0 %v2335
    %2364 = vmatpush.msra.mxu0 %v2334
    %2365 = vmatmul.f32.gmra.mxu0 %v2347
    %v2366 = vpop.f32.mrf.mxu0
    %v2367 = vadd.f32 %v2344, %v2366
    %2368 = vdwg.mxu0
    %v2369 = vadd.f32 %v2301, %v2367
    %v2370 = vadd.f32 %v2369, %v2301
    %v2371 = vld [vmem:[%s16] sm:$0x1]
    %v2372 = vld [vmem:[%s17] sm:$0x1]
    %v2373 = vsel %vm516, %v2370, 0.0
    %2374 = vadd.xlane.f32.xlu0 %v2373
    %v2375 = vpop.xlane.xlu0 %2374
    %v2376 = vmul.f32 %v2375, %v130
    %v2377 = vsub.f32 %v2370, %v2376
    %v2378 = vmul.f32 %v2377, %v2377
    %v2379 = vsel %vm516, %v2378, 0.0
    %2380 = vadd.xlane.f32.xlu0 %v2379
    %v2381 = vpop.xlane.xlu0 %2380
    %v2382 = vmul.f32 %v2381, %v130
    %v2383 = vadd.f32 %v2382, 1e-06
    %v2384 = vrsqrt.pop %v2383
    %v2385 = vmul.f32 %v2384, %v2383
    %v2386 = vmul.f32 %v2385, %v2384
    %v2387 = vmul.f32 0.5, %v2386
    %v2388 = vsub.f32 1.5, %v2387
    %v2389 = vmul.f32 %v2384, %v2388
    %v2390 = vmul.f32 %v2383, %v2389
    %vm2391 = vcmp.eq.f32.partialorder %v2383, inf
    %v2392 = vsel %vm2391, %v2383, %v2390
    %vm2393 = vcmp.eq.f32.partialorder %v2383, 0.0
    %v2394 = vand.u32 %v2383, 2147483648
    %v2395 = vsel %vm2393, %v2394, %v2392
    %v2396 = vrcp.pop %v2395
    %v2397 = vmul.f32 %v2395, %v2396
    %v2398 = vsub.f32 1.0, %v2397
    %v2399 = vmul.f32 %v2396, %v2398
    %v2400 = vadd.f32 %v2396, %v2399
    %vm2401 = vweird.f32 %v2395
    %vm2402 = vweird.f32 %v2396
    %vm2403 = vmor %vm2401, %vm2402
    %v2404 = vsel %vm2403, %v2396, %v2400
    %v2405 = vand.u32 2147483647, %v2395
    %vm2406 = vcmp.eq.f32.partialorder %v2405, 8.507059e+37
    %v2407 = vand.u32 %v2395, 2147483648
    %v2408 = vor.u32 1.1754944e-38, %v2407
    %v2409 = vsel %vm2406, %v2408, %v2404
    %v2410 = vmul.f32 %v2377, %v2409
    %v2412 = vperm.slane %v2371, 0
    %v2414 = vmul.f32 %v2412, %v2410
    %v2416 = vperm.slane %v2372, 0
    %v2418 = vadd.f32 %v2414, %v2416
    %v2419 = vld [vmem:[%s1125] sm:$0xff]
    %v2420 = vld [vmem:[%s1125 + $0x8] sm:$0xff]
    %v2421 = vld [vmem:[%s1125 + $0x10] sm:$0xff]
    %v2422 = vld [vmem:[%s1125 + $0x18] sm:$0xff]
    %v2423 = vld [vmem:[%s1130] sm:$0x1]
    %v2425 = vperm.slane %v2423, 0
    %v2428 = vsel %vm516, %v2418, 0
    %2430 = vmatpush.msra.mxu0 0.0
    %2431 = vmatpush.msra.mxu0 0.0
    %2432 = vmatpush.msra.mxu0 0.0
    %2433 = vmatpush.msra.mxu0 0.0
    %2434 = vmatpush.msra.mxu0 0.0
    %2435 = vmatpush.msra.mxu0 0.0
    %2436 = vmatpush.msra.mxu0 0.0
    %2437 = vmatpush.msra.mxu0 0.0
    %2438 = vmatpush.msra.mxu0 0.0
    %2439 = vmatpush.msra.mxu0 0.0
    %2440 = vmatpush.msra.mxu0 0.0
    %2441 = vmatpush.msra.mxu0 0.0
    %2442 = vmatpush.msra.mxu0 %v2422
    %2443 = vmatpush.msra.mxu0 %v2421
    %2444 = vmatpush.msra.mxu0 %v2420
    %2445 = vmatpush.msra.mxu0 %v2419
    %2446 = vmatmul.f32.gmra.mxu0 %v2428
    %v2447 = vpop.f32.mrf.mxu0
    %v2448 = vadd.f32 %v2425, %v2447
    %2449 = vdwg.mxu0
    %v2450 = vld [vmem:[%s1158] sm:$0xff]
    %v2451 = vld [vmem:[%s1158 + $0x8] sm:$0xff]
    %v2452 = vld [vmem:[%s1158 + $0x10] sm:$0xff]
    %v2453 = vld [vmem:[%s1158 + $0x18] sm:$0xff]
    %v2454 = vld [vmem:[%s1163] sm:$0x1]
    %v2456 = vperm.slane %v2454, 0
    %2458 = vmatpush.msra.mxu0 0.0
    %2459 = vmatpush.msra.mxu0 0.0
    %2460 = vmatpush.msra.mxu0 0.0
    %2461 = vmatpush.msra.mxu0 0.0
    %2462 = vmatpush.msra.mxu0 0.0
    %2463 = vmatpush.msra.mxu0 0.0
    %2464 = vmatpush.msra.mxu0 0.0
    %2465 = vmatpush.msra.mxu0 0.0
    %2466 = vmatpush.msra.mxu0 0.0
    %2467 = vmatpush.msra.mxu0 0.0
    %2468 = vmatpush.msra.mxu0 0.0
    %2469 = vmatpush.msra.mxu0 0.0
    %2470 = vmatpush.msra.mxu0 %v2453
    %2471 = vmatpush.msra.mxu0 %v2452
    %2472 = vmatpush.msra.mxu0 %v2451
    %2473 = vmatpush.msra.mxu0 %v2450
    %2474 = vmatmul.f32.gmra.mxu0 %v2428
    %v2475 = vpop.f32.mrf.mxu0
    %v2476 = vadd.f32 %v2456, %v2475
    %2477 = vdwg.mxu0
    %v2478 = vld [vmem:[%s1188] sm:$0xff]
    %v2479 = vld [vmem:[%s1188 + $0x8] sm:$0xff]
    %v2480 = vld [vmem:[%s1188 + $0x10] sm:$0xff]
    %v2481 = vld [vmem:[%s1188 + $0x18] sm:$0xff]
    %v2482 = vld [vmem:[%s1193] sm:$0x1]
    %v2484 = vperm.slane %v2482, 0
    %2486 = vmatpush.msra.mxu0 0.0
    %2487 = vmatpush.msra.mxu0 0.0
    %2488 = vmatpush.msra.mxu0 0.0
    %2489 = vmatpush.msra.mxu0 0.0
    %2490 = vmatpush.msra.mxu0 0.0
    %2491 = vmatpush.msra.mxu0 0.0
    %2492 = vmatpush.msra.mxu0 0.0
    %2493 = vmatpush.msra.mxu0 0.0
    %2494 = vmatpush.msra.mxu0 0.0
    %2495 = vmatpush.msra.mxu0 0.0
    %2496 = vmatpush.msra.mxu0 0.0
    %2497 = vmatpush.msra.mxu0 0.0
    %2498 = vmatpush.msra.mxu0 %v2481
    %2499 = vmatpush.msra.mxu0 %v2480
    %2500 = vmatpush.msra.mxu0 %v2479
    %2501 = vmatpush.msra.mxu0 %v2478
    %2502 = vmatmul.f32.gmra.mxu0 %v2428
    %v2503 = vpop.f32.mrf.mxu0
    %v2504 = vadd.f32 %v2484, %v2503
    %2505 = vdwg.mxu0
    %v2507 = vsel %vm596, %v2448, 0
    %v2510 = vsel %vm596, %v2476, 0
    %2512 = vmatpush.xpose.msra.mxu0 0.0
    %2513 = vmatpush.xpose.msra.mxu0 0.0
    %2514 = vmatpush.xpose.msra.mxu0 0.0
    %2515 = vmatpush.xpose.msra.mxu0 0.0
    %2516 = vmatpush.xpose.msra.mxu0 0.0
    %2517 = vmatpush.xpose.msra.mxu0 0.0
    %2518 = vmatpush.xpose.msra.mxu0 0.0
    %2519 = vmatpush.xpose.msra.mxu0 0.0
    %2520 = vmatpush.xpose.msra.mxu0 0.0
    %2521 = vmatpush.xpose.msra.mxu0 0.0
    %2522 = vmatpush.xpose.msra.mxu0 0.0
    %2523 = vmatpush.xpose.msra.mxu0 0.0
    %2524 = vmatpush.xpose.msra.mxu0 0.0
    %2525 = vmatpush.xpose.msra.mxu0 0.0
    %2526 = vmatpush.xpose.msra.mxu0 0.0
    %2527 = vmatpush.xpose.msra.mxu0 %v2510
    %2528 = vmatmul.f32.gmra.mxu0 %v2507
    %v2529 = vpop.f32.mrf.mxu0
    %v2530 = vadd.f32 0.0, %v2529
    %2531 = vdwg.mxu0
    %v2532 = vmul.f32 %v2530, 0.35355338
    %v2533 = vsel %vm596, %v2532, -inf
    %2534 = vmax.xlane.f32.xlu0 %v2533
    %v2535 = vpop.xlane.xlu0 %2534
    %v2536 = vsub.f32 %v2532, %v2535
    %v2537 = vmul.f32 %v2536, 1.442695
    %v2538 = vpow.pop %v2537
    %v2539 = vsel %vm596, %v2538, 0.0
    %2540 = vadd.xlane.f32.xlu0 %v2539
    %v2541 = vpop.xlane.xlu0 %2540
    %v2542 = vrcp.pop %v2541
    %v2543 = vmul.f32 %v2541, %v2542
    %v2544 = vsub.f32 1.0, %v2543
    %v2545 = vmul.f32 %v2542, %v2544
    %v2546 = vadd.f32 %v2542, %v2545
    %vm2547 = vweird.f32 %v2541
    %vm2548 = vweird.f32 %v2542
    %vm2549 = vmor %vm2547, %vm2548
    %v2550 = vsel %vm2549, %v2542, %v2546
    %v2551 = vand.u32 2147483647, %v2541
    %vm2552 = vcmp.eq.f32.partialorder %v2551, 8.507059e+37
    %v2553 = vand.u32 %v2541, 2147483648
    %v2554 = vor.u32 1.1754944e-38, %v2553
    %v2555 = vsel %vm2552, %v2554, %v2550
    %v2556 = vmul.f32 %v2538, %v2555
    %v2558 = vsel %vm596, %v2556, 0
    %2560 = vmatpush.msra.mxu0 0.0
    %2561 = vmatpush.msra.mxu0 0.0
    %2562 = vmatpush.msra.mxu0 0.0
    %2563 = vmatpush.msra.mxu0 0.0
    %2564 = vmatpush.msra.mxu0 0.0
    %2565 = vmatpush.msra.mxu0 0.0
    %2566 = vmatpush.msra.mxu0 0.0
    %2567 = vmatpush.msra.mxu0 0.0
    %2568 = vmatpush.msra.mxu0 0.0
    %2569 = vmatpush.msra.mxu0 0.0
    %2570 = vmatpush.msra.mxu0 0.0
    %2571 = vmatpush.msra.mxu0 0.0
    %2572 = vmatpush.msra.mxu0 0.0
    %2573 = vmatpush.msra.mxu0 0.0
    %2574 = vmatpush.msra.mxu0 0.0
    %2575 = vmatpush.msra.mxu0 %v2504
    %2576 = vmatmul.f32.gmra.mxu0 %v2558
    %v2577 = vpop.f32.mrf.mxu0
    %v2578 = vadd.f32 0.0, %v2577
    %2579 = vdwg.mxu0
    %2580 = vrot.lane.b32.xlu0 %v2448, 120
    %v2581 = vpop.permute.xlu0 %2580
    %2582 = vrot.lane.b32.xlu0 %v2476, 120
    %v2583 = vpop.permute.xlu0 %2582
    %v2584 = vsel %vm596, %v2581, 0
    %v2586 = vsel %vm596, %v2583, 0
    %2588 = vmatpush.xpose.msra.mxu0 0.0
    %2589 = vmatpush.xpose.msra.mxu0 0.0
    %2590 = vmatpush.xpose.msra.mxu0 0.0
    %2591 = vmatpush.xpose.msra.mxu0 0.0
    %2592 = vmatpush.xpose.msra.mxu0 0.0
    %2593 = vmatpush.xpose.msra.mxu0 0.0
    %2594 = vmatpush.xpose.msra.mxu0 0.0
    %2595 = vmatpush.xpose.msra.mxu0 0.0
    %2596 = vmatpush.xpose.msra.mxu0 0.0
    %2597 = vmatpush.xpose.msra.mxu0 0.0
    %2598 = vmatpush.xpose.msra.mxu0 0.0
    %2599 = vmatpush.xpose.msra.mxu0 0.0
    %2600 = vmatpush.xpose.msra.mxu0 0.0
    %2601 = vmatpush.xpose.msra.mxu0 0.0
    %2602 = vmatpush.xpose.msra.mxu0 0.0
    %2603 = vmatpush.xpose.msra.mxu0 %v2586
    %2604 = vmatmul.f32.gmra.mxu0 %v2584
    %v2605 = vpop.f32.mrf.mxu0
    %v2606 = vadd.f32 0.0, %v2605
    %2607 = vdwg.mxu0
    %v2608 = vmul.f32 %v2606, 0.35355338
    %v2609 = vsel %vm596, %v2608, -inf
    %2610 = vmax.xlane.f32.xlu0 %v2609
    %v2611 = vpop.xlane.xlu0 %2610
    %v2612 = vsub.f32 %v2608, %v2611
    %v2613 = vmul.f32 %v2612, 1.442695
    %v2614 = vpow.pop %v2613
    %v2615 = vsel %vm596, %v2614, 0.0
    %2616 = vadd.xlane.f32.xlu0 %v2615
    %v2617 = vpop.xlane.xlu0 %2616
    %v2618 = vrcp.pop %v2617
    %v2619 = vmul.f32 %v2617, %v2618
    %v2620 = vsub.f32 1.0, %v2619
    %v2621 = vmul.f32 %v2618, %v2620
    %v2622 = vadd.f32 %v2618, %v2621
    %vm2623 = vweird.f32 %v2617
    %vm2624 = vweird.f32 %v2618
    %vm2625 = vmor %vm2623, %vm2624
    %v2626 = vsel %vm2625, %v2618, %v2622
    %v2627 = vand.u32 2147483647, %v2617
    %vm2628 = vcmp.eq.f32.partialorder %v2627, 8.507059e+37
    %v2629 = vand.u32 %v2617, 2147483648
    %v2630 = vor.u32 1.1754944e-38, %v2629
    %v2631 = vsel %vm2628, %v2630, %v2626
    %v2632 = vmul.f32 %v2614, %v2631
    %2634 = vrot.lane.b32.xlu0 %v2504, 120
    %v2635 = vpop.permute.xlu0 %2634
    %v2638 = vsel %vm596, %v2632, 0
    %2640 = vmatpush.msra.mxu0 0.0
    %2641 = vmatpush.msra.mxu0 0.0
    %2642 = vmatpush.msra.mxu0 0.0
    %2643 = vmatpush.msra.mxu0 0.0
    %2644 = vmatpush.msra.mxu0 0.0
    %2645 = vmatpush.msra.mxu0 0.0
    %2646 = vmatpush.msra.mxu0 0.0
    %2647 = vmatpush.msra.mxu0 0.0
    %2648 = vmatpush.msra.mxu0 0.0
    %2649 = vmatpush.msra.mxu0 0.0
    %2650 = vmatpush.msra.mxu0 0.0
    %2651 = vmatpush.msra.mxu0 0.0
    %2652 = vmatpush.msra.mxu0 0.0
    %2653 = vmatpush.msra.mxu0 0.0
    %2654 = vmatpush.msra.mxu0 0.0
    %2655 = vmatpush.msra.mxu0 %v2635
    %2656 = vmatmul.f32.gmra.mxu0 %v2638
    %v2657 = vpop.f32.mrf.mxu0
    %v2658 = vadd.f32 0.0, %v2657
    %2659 = vdwg.mxu0
    %2660 = vrot.lane.b32.xlu0 %v2448, 112
    %v2661 = vpop.permute.xlu0 %2660
    %2662 = vrot.lane.b32.xlu0 %v2476, 112
    %v2663 = vpop.permute.xlu0 %2662
    %v2664 = vsel %vm596, %v2661, 0
    %v2666 = vsel %vm596, %v2663, 0
    %2668 = vmatpush.xpose.msra.mxu0 0.0
    %2669 = vmatpush.xpose.msra.mxu0 0.0
    %2670 = vmatpush.xpose.msra.mxu0 0.0
    %2671 = vmatpush.xpose.msra.mxu0 0.0
    %2672 = vmatpush.xpose.msra.mxu0 0.0
    %2673 = vmatpush.xpose.msra.mxu0 0.0
    %2674 = vmatpush.xpose.msra.mxu0 0.0
    %2675 = vmatpush.xpose.msra.mxu0 0.0
    %2676 = vmatpush.xpose.msra.mxu0 0.0
    %2677 = vmatpush.xpose.msra.mxu0 0.0
    %2678 = vmatpush.xpose.msra.mxu0 0.0
    %2679 = vmatpush.xpose.msra.mxu0 0.0
    %2680 = vmatpush.xpose.msra.mxu0 0.0
    %2681 = vmatpush.xpose.msra.mxu0 0.0
    %2682 = vmatpush.xpose.msra.mxu0 0.0
    %2683 = vmatpush.xpose.msra.mxu0 %v2666
    %2684 = vmatmul.f32.gmra.mxu0 %v2664
    %v2685 = vpop.f32.mrf.mxu0
    %v2686 = vadd.f32 0.0, %v2685
    %2687 = vdwg.mxu0
    %v2688 = vmul.f32 %v2686, 0.35355338
    %v2689 = vsel %vm596, %v2688, -inf
    %2690 = vmax.xlane.f32.xlu0 %v2689
    %v2691 = vpop.xlane.xlu0 %2690
    %v2692 = vsub.f32 %v2688, %v2691
    %v2693 = vmul.f32 %v2692, 1.442695
    %v2694 = vpow.pop %v2693
    %v2695 = vsel %vm596, %v2694, 0.0
    %2696 = vadd.xlane.f32.xlu0 %v2695
    %v2697 = vpop.xlane.xlu0 %2696
    %v2698 = vrcp.pop %v2697
    %v2699 = vmul.f32 %v2697, %v2698
    %v2700 = vsub.f32 1.0, %v2699
    %v2701 = vmul.f32 %v2698, %v2700
    %v2702 = vadd.f32 %v2698, %v2701
    %vm2703 = vweird.f32 %v2697
    %vm2704 = vweird.f32 %v2698
    %vm2705 = vmor %vm2703, %vm2704
    %v2706 = vsel %vm2705, %v2698, %v2702
    %v2707 = vand.u32 2147483647, %v2697
    %vm2708 = vcmp.eq.f32.partialorder %v2707, 8.507059e+37
    %v2709 = vand.u32 %v2697, 2147483648
    %v2710 = vor.u32 1.1754944e-38, %v2709
    %v2711 = vsel %vm2708, %v2710, %v2706
    %v2712 = vmul.f32 %v2694, %v2711
    %2713 = vrot.lane.b32.xlu0 %v2504, 112
    %v2714 = vpop.permute.xlu0 %2713
    %v2717 = vsel %vm596, %v2712, 0
    %2719 = vmatpush.msra.mxu0 0.0
    %2720 = vmatpush.msra.mxu0 0.0
    %2721 = vmatpush.msra.mxu0 0.0
    %2722 = vmatpush.msra.mxu0 0.0
    %2723 = vmatpush.msra.mxu0 0.0
    %2724 = vmatpush.msra.mxu0 0.0
    %2725 = vmatpush.msra.mxu0 0.0
    %2726 = vmatpush.msra.mxu0 0.0
    %2727 = vmatpush.msra.mxu0 0.0
    %2728 = vmatpush.msra.mxu0 0.0
    %2729 = vmatpush.msra.mxu0 0.0
    %2730 = vmatpush.msra.mxu0 0.0
    %2731 = vmatpush.msra.mxu0 0.0
    %2732 = vmatpush.msra.mxu0 0.0
    %2733 = vmatpush.msra.mxu0 0.0
    %2734 = vmatpush.msra.mxu0 %v2714
    %2735 = vmatmul.f32.gmra.mxu0 %v2717
    %v2736 = vpop.f32.mrf.mxu0
    %v2737 = vadd.f32 0.0, %v2736
    %2738 = vdwg.mxu0
    %2739 = vrot.lane.b32.xlu0 %v2448, 104
    %v2740 = vpop.permute.xlu0 %2739
    %2741 = vrot.lane.b32.xlu0 %v2476, 104
    %v2742 = vpop.permute.xlu0 %2741
    %v2743 = vsel %vm596, %v2740, 0
    %v2745 = vsel %vm596, %v2742, 0
    %2747 = vmatpush.xpose.msra.mxu0 0.0
    %2748 = vmatpush.xpose.msra.mxu0 0.0
    %2749 = vmatpush.xpose.msra.mxu0 0.0
    %2750 = vmatpush.xpose.msra.mxu0 0.0
    %2751 = vmatpush.xpose.msra.mxu0 0.0
    %2752 = vmatpush.xpose.msra.mxu0 0.0
    %2753 = vmatpush.xpose.msra.mxu0 0.0
    %2754 = vmatpush.xpose.msra.mxu0 0.0
    %2755 = vmatpush.xpose.msra.mxu0 0.0
    %2756 = vmatpush.xpose.msra.mxu0 0.0
    %2757 = vmatpush.xpose.msra.mxu0 0.0
    %2758 = vmatpush.xpose.msra.mxu0 0.0
    %2759 = vmatpush.xpose.msra.mxu0 0.0
    %2760 = vmatpush.xpose.msra.mxu0 0.0
    %2761 = vmatpush.xpose.msra.mxu0 0.0
    %2762 = vmatpush.xpose.msra.mxu0 %v2745
    %2763 = vmatmul.f32.gmra.mxu0 %v2743
    %v2764 = vpop.f32.mrf.mxu0
    %v2765 = vadd.f32 0.0, %v2764
    %2766 = vdwg.mxu0
    %v2767 = vmul.f32 %v2765, 0.35355338
    %v2768 = vsel %vm596, %v2767, -inf
    %2769 = vmax.xlane.f32.xlu0 %v2768
    %v2770 = vpop.xlane.xlu0 %2769
    %v2771 = vsub.f32 %v2767, %v2770
    %v2772 = vmul.f32 %v2771, 1.442695
    %v2773 = vpow.pop %v2772
    %v2774 = vsel %vm596, %v2773, 0.0
    %2775 = vadd.xlane.f32.xlu0 %v2774
    %v2776 = vpop.xlane.xlu0 %2775
    %v2777 = vrcp.pop %v2776
    %v2778 = vmul.f32 %v2776, %v2777
    %v2779 = vsub.f32 1.0, %v2778
    %v2780 = vmul.f32 %v2777, %v2779
    %v2781 = vadd.f32 %v2777, %v2780
    %vm2782 = vweird.f32 %v2776
    %vm2783 = vweird.f32 %v2777
    %vm2784 = vmor %vm2782, %vm2783
    %v2785 = vsel %vm2784, %v2777, %v2781
    %v2786 = vand.u32 2147483647, %v2776
    %vm2787 = vcmp.eq.f32.partialorder %v2786, 8.507059e+37
    %v2788 = vand.u32 %v2776, 2147483648
    %v2789 = vor.u32 1.1754944e-38, %v2788
    %v2790 = vsel %vm2787, %v2789, %v2785
    %v2791 = vmul.f32 %v2773, %v2790
    %2792 = vrot.lane.b32.xlu0 %v2504, 104
    %v2793 = vpop.permute.xlu0 %2792
    %v2796 = vsel %vm596, %v2791, 0
    %2798 = vmatpush.msra.mxu0 0.0
    %2799 = vmatpush.msra.mxu0 0.0
    %2800 = vmatpush.msra.mxu0 0.0
    %2801 = vmatpush.msra.mxu0 0.0
    %2802 = vmatpush.msra.mxu0 0.0
    %2803 = vmatpush.msra.mxu0 0.0
    %2804 = vmatpush.msra.mxu0 0.0
    %2805 = vmatpush.msra.mxu0 0.0
    %2806 = vmatpush.msra.mxu0 0.0
    %2807 = vmatpush.msra.mxu0 0.0
    %2808 = vmatpush.msra.mxu0 0.0
    %2809 = vmatpush.msra.mxu0 0.0
    %2810 = vmatpush.msra.mxu0 0.0
    %2811 = vmatpush.msra.mxu0 0.0
    %2812 = vmatpush.msra.mxu0 0.0
    %2813 = vmatpush.msra.mxu0 %v2793
    %2814 = vmatmul.f32.gmra.mxu0 %v2796
    %v2815 = vpop.f32.mrf.mxu0
    %v2816 = vadd.f32 0.0, %v2815
    %2817 = vdwg.mxu0
    %2819 = vrot.lane.b32.xlu0 %v2658, 8
    %v2820 = vpop.permute.xlu0 %2819
    %2823 = vrot.lane.b32.xlu0 %v2737, 16
    %v2824 = vpop.permute.xlu0 %2823
    %2827 = vrot.lane.b32.xlu0 %v2816, 24
    %v2828 = vpop.permute.xlu0 %2827
    %v2830 = vsel %vm596, %v2578, %v2820
    %v2831 = vsel %vm922, %v2830, %v2824
    %v2832 = vsel %vm924, %v2831, %v2828
    %v2833 = vld [vmem:[%s1545] sm:$0xff]
    %v2834 = vld [vmem:[%s1545 + $0x8] sm:$0xff]
    %v2835 = vld [vmem:[%s1545 + $0x10] sm:$0xff]
    %v2836 = vld [vmem:[%s1545 + $0x18] sm:$0xff]
    %v2837 = vld [vmem:[%s1550] sm:$0x1]
    %v2839 = vperm.slane %v2837, 0
    %v2842 = vsel %vm516, %v2832, 0
    %2844 = vmatpush.msra.mxu0 0.0
    %2845 = vmatpush.msra.mxu0 0.0
    %2846 = vmatpush.msra.mxu0 0.0
    %2847 = vmatpush.msra.mxu0 0.0
    %2848 = vmatpush.msra.mxu0 0.0
    %2849 = vmatpush.msra.mxu0 0.0
    %2850 = vmatpush.msra.mxu0 0.0
    %2851 = vmatpush.msra.mxu0 0.0
    %2852 = vmatpush.msra.mxu0 0.0
    %2853 = vmatpush.msra.mxu0 0.0
    %2854 = vmatpush.msra.mxu0 0.0
    %2855 = vmatpush.msra.mxu0 0.0
    %2856 = vmatpush.msra.mxu0 %v2836
    %2857 = vmatpush.msra.mxu0 %v2835
    %2858 = vmatpush.msra.mxu0 %v2834
    %2859 = vmatpush.msra.mxu0 %v2833
    %2860 = vmatmul.f32.gmra.mxu0 %v2842
    %v2861 = vpop.f32.mrf.mxu0
    %v2862 = vadd.f32 %v2839, %v2861
    %2863 = vdwg.mxu0
    %v2864 = vadd.f32 %v2418, %v2862
    %v2865 = vadd.f32 %v2864, %v2418
    %v2866 = vld [vmem:[%s1580] sm:$0x1]
    %v2867 = vld [vmem:[%s1582] sm:$0x1]
    %v2868 = vsel %vm516, %v2865, 0.0
    %2869 = vadd.xlane.f32.xlu0 %v2868
    %v2870 = vpop.xlane.xlu0 %2869
    %v2871 = vmul.f32 %v2870, %v130
    %v2872 = vsub.f32 %v2865, %v2871
    %v2873 = vmul.f32 %v2872, %v2872
    %v2874 = vsel %vm516, %v2873, 0.0
    %2875 = vadd.xlane.f32.xlu0 %v2874
    %v2876 = vpop.xlane.xlu0 %2875
    %v2877 = vmul.f32 %v2876, %v130
    %v2878 = vadd.f32 %v2877, 1e-06
    %v2879 = vrsqrt.pop %v2878
    %v2880 = vmul.f32 %v2879, %v2878
    %v2881 = vmul.f32 %v2880, %v2879
    %v2882 = vmul.f32 0.5, %v2881
    %v2883 = vsub.f32 1.5, %v2882
    %v2884 = vmul.f32 %v2879, %v2883
    %v2885 = vmul.f32 %v2878, %v2884
    %vm2886 = vcmp.eq.f32.partialorder %v2878, inf
    %v2887 = vsel %vm2886, %v2878, %v2885
    %vm2888 = vcmp.eq.f32.partialorder %v2878, 0.0
    %v2889 = vand.u32 %v2878, 2147483648
    %v2890 = vsel %vm2888, %v2889, %v2887
    %v2891 = vrcp.pop %v2890
    %v2892 = vmul.f32 %v2890, %v2891
    %v2893 = vsub.f32 1.0, %v2892
    %v2894 = vmul.f32 %v2891, %v2893
    %v2895 = vadd.f32 %v2891, %v2894
    %vm2896 = vweird.f32 %v2890
    %vm2897 = vweird.f32 %v2891
    %vm2898 = vmor %vm2896, %vm2897
    %v2899 = vsel %vm2898, %v2891, %v2895
    %v2900 = vand.u32 2147483647, %v2890
    %vm2901 = vcmp.eq.f32.partialorder %v2900, 8.507059e+37
    %v2902 = vand.u32 %v2890, 2147483648
    %v2903 = vor.u32 1.1754944e-38, %v2902
    %v2904 = vsel %vm2901, %v2903, %v2899
    %v2905 = vmul.f32 %v2872, %v2904
    %v2907 = vperm.slane %v2866, 0
    %v2909 = vmul.f32 %v2907, %v2905
    %v2911 = vperm.slane %v2867, 0
    %v2913 = vadd.f32 %v2909, %v2911
    %v2914 = vld [vmem:[%s1630] sm:$0xff]
    %v2915 = vld [vmem:[%s1630 + $0x8] sm:$0xff]
    %v2916 = vld [vmem:[%s1630 + $0x10] sm:$0xff]
    %v2917 = vld [vmem:[%s1630 + $0x18] sm:$0xff]
    %v2918 = vld [vmem:[%s1635] sm:$0x1]
    %v2920 = vperm.slane %v2918, 0
    %v2923 = vsel %vm516, %v2913, 0
    %2925 = vmatpush.msra.mxu0 0.0
    %2926 = vmatpush.msra.mxu0 0.0
    %2927 = vmatpush.msra.mxu0 0.0
    %2928 = vmatpush.msra.mxu0 0.0
    %2929 = vmatpush.msra.mxu0 0.0
    %2930 = vmatpush.msra.mxu0 0.0
    %2931 = vmatpush.msra.mxu0 0.0
    %2932 = vmatpush.msra.mxu0 0.0
    %2933 = vmatpush.msra.mxu0 0.0
    %2934 = vmatpush.msra.mxu0 0.0
    %2935 = vmatpush.msra.mxu0 0.0
    %2936 = vmatpush.msra.mxu0 0.0
    %2937 = vmatpush.msra.mxu0 %v2917
    %2938 = vmatpush.msra.mxu0 %v2916
    %2939 = vmatpush.msra.mxu0 %v2915
    %2940 = vmatpush.msra.mxu0 %v2914
    %2941 = vmatmul.f32.gmra.mxu0 %v2923
    %v2942 = vpop.f32.mrf.mxu0
    %v2943 = vadd.f32 %v2920, %v2942
    %2944 = vdwg.mxu0
    %v2945 = vmax.f32 %v2943, 0.0
    %v2946 = vld [vmem:[%s1664] sm:$0xff]
    %v2947 = vld [vmem:[%s1664 + $0x8] sm:$0xff]
    %v2948 = vld [vmem:[%s1664 + $0x10] sm:$0xff]
    %v2949 = vld [vmem:[%s1664 + $0x18] sm:$0xff]
    %v2950 = vld [vmem:[%s1664 + $0x20] sm:$0xff]
    %v2951 = vld [vmem:[%s1664 + $0x28] sm:$0xff]
    %v2952 = vld [vmem:[%s1664 + $0x30] sm:$0xff]
    %v2953 = vld [vmem:[%s1664 + $0x38] sm:$0xff]
    %v2954 = vld [vmem:[%s1673] sm:$0x1]
    %v2956 = vperm.slane %v2954, 0
    %v2959 = vsel %vm1051, %v2945, 0
    %2961 = vmatpush.msra.mxu0 0.0
    %2962 = vmatpush.msra.mxu0 0.0
    %2963 = vmatpush.msra.mxu0 0.0
    %2964 = vmatpush.msra.mxu0 0.0
    %2965 = vmatpush.msra.mxu0 0.0
    %2966 = vmatpush.msra.mxu0 0.0
    %2967 = vmatpush.msra.mxu0 0.0
    %2968 = vmatpush.msra.mxu0 0.0
    %2969 = vmatpush.msra.mxu0 %v2953
    %2970 = vmatpush.msra.mxu0 %v2952
    %2971 = vmatpush.msra.mxu0 %v2951
    %2972 = vmatpush.msra.mxu0 %v2950
    %2973 = vmatpush.msra.mxu0 %v2949
    %2974 = vmatpush.msra.mxu0 %v2948
    %2975 = vmatpush.msra.mxu0 %v2947
    %2976 = vmatpush.msra.mxu0 %v2946
    %2977 = vmatmul.f32.gmra.mxu0 %v2959
    %v2978 = vpop.f32.mrf.mxu0
    %v2979 = vadd.f32 %v2956, %v2978
    %2980 = vdwg.mxu0
    %v2981 = vadd.f32 %v2913, %v2979
    %v2982 = vadd.f32 %v2981, %v2913
    %v2983 = vld [vmem:[%s1703] sm:$0x1]
    %v2984 = vld [vmem:[%s1705] sm:$0x1]
    %v2985 = vsel %vm516, %v2982, 0.0
    %2986 = vadd.xlane.f32.xlu0 %v2985
    %v2987 = vpop.xlane.xlu0 %2986
    %v2988 = vmul.f32 %v2987, %v130
    %v2989 = vsub.f32 %v2982, %v2988
    %v2990 = vmul.f32 %v2989, %v2989
    %v2991 = vsel %vm516, %v2990, 0.0
    %2992 = vadd.xlane.f32.xlu0 %v2991
    %v2993 = vpop.xlane.xlu0 %2992
    %v2994 = vmul.f32 %v2993, %v130
    %v2995 = vadd.f32 %v2994, 1e-06
    %v2996 = vrsqrt.pop %v2995
    %v2997 = vmul.f32 %v2996, %v2995
    %v2998 = vmul.f32 %v2997, %v2996
    %v2999 = vmul.f32 0.5, %v2998
    %v3000 = vsub.f32 1.5, %v2999
    %v3001 = vmul.f32 %v2996, %v3000
    %v3002 = vmul.f32 %v2995, %v3001
    %vm3003 = vcmp.eq.f32.partialorder %v2995, inf
    %v3004 = vsel %vm3003, %v2995, %v3002
    %vm3005 = vcmp.eq.f32.partialorder %v2995, 0.0
    %v3006 = vand.u32 %v2995, 2147483648
    %v3007 = vsel %vm3005, %v3006, %v3004
    %v3008 = vrcp.pop %v3007
    %v3009 = vmul.f32 %v3007, %v3008
    %v3010 = vsub.f32 1.0, %v3009
    %v3011 = vmul.f32 %v3008, %v3010
    %v3012 = vadd.f32 %v3008, %v3011
    %vm3013 = vweird.f32 %v3007
    %vm3014 = vweird.f32 %v3008
    %vm3015 = vmor %vm3013, %vm3014
    %v3016 = vsel %vm3015, %v3008, %v3012
    %v3017 = vand.u32 2147483647, %v3007
    %vm3018 = vcmp.eq.f32.partialorder %v3017, 8.507059e+37
    %v3019 = vand.u32 %v3007, 2147483648
    %v3020 = vor.u32 1.1754944e-38, %v3019
    %v3021 = vsel %vm3018, %v3020, %v3016
    %v3022 = vmul.f32 %v2989, %v3021
    %v3024 = vperm.slane %v2983, 0
    %v3026 = vmul.f32 %v3024, %v3022
    %v3028 = vperm.slane %v2984, 0
    %v3030 = vadd.f32 %v3026, %v3028
    %3031 = vst.msk [vmem:[#allocation9 + $0x8] sm:$0xff] %vm516, %v3030
    // Predicated region
    $region86: #{tpu_custom_call.1} parent=1 // pred_check
      _
    $region87: #{tpu_custom_call.1} parent=1 // pred_check_branch
      %3033 = sbr.rel (0) target = $region89
    $region88: #{tpu_custom_call.1} parent=1 // pred_region
      %3035 = vsyncadd [#allocation4], 0
      %s3036 = sshll.u32 [#allocation9], 4
      %s3037 = int_to_ptr.vmem [resolvable:$true] %s3036
      %s3038 = sshll.u32 %s18, 4
      %s3039 = int_to_ptr.hbm [resolvable:$true] %s3038
      %3044 = dma.vmem_to_hbm [thread:$0]  %s3037, 256, %s3039, [#allocation4], 128, 128, 8
    $region89: #{tpu_custom_call.1} parent=1 // pred_fallthru
      _
    // Predicated region
    $region90: #{tpu_custom_call.1} parent=1 // pred_check
      _
    $region91: #{tpu_custom_call.1} parent=1 // pred_check_branch
      %3046 = sbr.rel (0) target = $region93
    $region92: #{tpu_custom_call.1} parent=1 // pred_region
      %3048 = dma.done [#allocation4], 256
    $region93: #{tpu_custom_call.1} parent=1 // pred_fallthru
      _
    %3049 = vsyncpa [#allocation3], 1
    %3050 = vsyncpa [#allocation8], 1
    %3051 = vsyncpa [#allocation4], 1
    %3052 = vsyncpa [#allocation5], 1

</llo_original>
